<compile_context>
chip_gen: v6e
topology: v6e:2x2x1
jax: 0.10.0
libtpu: 0.0.40
codegen_flags: <defaults>
</compile_context>

<pallas_src>
import functools

import numpy as np
import jax
import jax.numpy as jnp
from jax import lax
from jax.experimental import pallas as pl
from jax.experimental.pallas import tpu as pltpu


# --------------------------------------------------------------------------------------
# Phase (sub-pixel) decomposition helpers -- all done ONCE at parameter-init time.
# --------------------------------------------------------------------------------------
def _phase_tap_displacements(kernel_size, stride, padding):
    """Input displacements d such that output row oh = s*m + r reads x[m + d] through
    kernel tap kh = r + p - s*d (for some phase r)."""
    k, s, p = kernel_size, stride, padding
    ds_ = sorted({(r + p - kh) // s
                  for r in range(s) for kh in range(k) if (r + p - kh) % s == 0})
    return list(range(ds_[0], ds_[-1] + 1))          # contiguous; len == ceil(k/s) typically


def prepare_phase_weights(w_pt, stride, padding, dtype=jnp.bfloat16):
    """PyTorch ConvTranspose2d weight (Ci, Co, kh, kw) -> per-output-row-phase matmul weights
    B of shape (s, nd*nd*Ci, s*Co) such that

      y[s*m+rh, s*n+rw, co] = sum_{dh,dw,ci} x[m+dh, n+dw, ci] * B[rh, (dh,dw,ci), (rw,co)]

    Rows whose tap falls outside the kernel are zero (uniform K keeps one MXU-friendly matmul
    shape per phase).  Done once at init -- no per-call weight transform in HBM."""
    w = np.asarray(w_pt)
    Ci, Co, k, _ = w.shape
    s, p = stride, padding
    D = _phase_tap_displacements(k, s, p)
    nd = len(D)
    B = np.zeros((s, nd, nd, Ci, s, Co), dtype=np.float32)
    for rh in range(s):
        for di, dh in enumerate(D):
            kh = rh + p - s * dh
            if not (0 <= kh < k):
                continue
            for dj, dw in enumerate(D):
                for rw in range(s):
                    kw = rw + p - s * dw
                    if 0 <= kw < k:
                        B[rh, di, dj, :, rw, :] = w[:, :, kh, kw]
    return jnp.asarray(B.reshape(s, nd * nd * Ci, s * Co), dtype=dtype)


# --------------------------------------------------------------------------------------
# Kernel 1: phase-decomposed transposed conv + bias + LeakyReLU + fused BN partial stats.
# --------------------------------------------------------------------------------------
def _convt_relu_stats_kernel(xp_ref, w_ref, b_ref, y_ref, stats_ref,
                             im2col_ref, ybuf_ref, *,
                             s, tile_m, w_in, offsets, relu_slope):
    """xp_ref    : (1, Hp, Wp, Ci)        bf16 halo-padded input (resident per batch element)
       w_ref     : (s, K, s*Co)           bf16 per-row-phase matmul weights, K = nd*nd*Ci
       b_ref     : (1, s*Co)              f32 bias tiled over the w-phase axis
       y_ref     : (1, tile_m*s, W, s*Co) conv+LeakyReLU output (phase layout == NHWC bytes)
       stats_ref : (1, 1, 2, s*Co)        per-tile [sum, sum_sq] per (rw, co) column
       im2col_ref: (tile_m*W, K)          VMEM scratch: taps stacked into the contraction dim
       ybuf_ref  : (tile_m, s, W, s*Co)   VMEM scratch: row-phase interleave assembly
    """
    ci = xp_ref.shape[-1]
    sco = w_ref.shape[-1]
    row0 = pl.multiple_of(pl.program_id(1) * tile_m, tile_m)

    # im2col: nd*nd shifted (tile_m, W, Ci) windows of the *undilated* input, stacked along
    # the contraction (lane) dim -> one K = nd*nd*Ci slab shared by all s row phases.
    for idx, (oh, ow) in enumerate(offsets):
        win = xp_ref[0, pl.ds(row0 + oh, tile_m), ow:ow + w_in, :]
        im2col_ref[:, idx * ci:(idx + 1) * ci] = win.reshape(tile_m * w_in, ci)
    lhs = im2col_ref[...]                                           # (tile_m*W, K) bf16

    bias = b_ref[...].astype(jnp.float32)                           # (1, s*Co)
    ssum = jnp.zeros((1, sco), jnp.float32)
    ssq = jnp.zeros((1, sco), jnp.float32)
    for rh in range(s):                        # s MXU matmuls: (tile_m*W, K) @ (K, s*Co)
        act = jnp.dot(lhs, w_ref[rh], preferred_element_type=jnp.float32) + bias
        act = jnp.where(act >= 0.0, act, act * relu_slope)          # fused LeakyReLU
        ssum = ssum + jnp.sum(act, axis=0, keepdims=True)           # fused BN partial stats
        ssq = ssq + jnp.sum(act * act, axis=0, keepdims=True)
        # Row-phase rh lands on output rows rh, rh+s, ...  (w phases already interleaved for
        # free because columns (rw, co) match NHWC byte order).
        ybuf_ref[:, rh, :, :] = act.reshape(tile_m, w_in, sco).astype(ybuf_ref.dtype)

    y_ref[...] = ybuf_ref[...].reshape(1, tile_m * s, w_in, sco)    # one lane-dense store
    stats_ref[0, 0] = jnp.concatenate([ssum, ssq], axis=0)          # one (2, s*Co) store


# --------------------------------------------------------------------------------------
# Kernel 2: BatchNorm apply, y * scale + shift (elementwise, lane-dense, in place).
# --------------------------------------------------------------------------------------
def _bn_apply_kernel(y_ref, scale_ref, shift_ref, o_ref):
    o_ref[...] = (y_ref[...] * scale_ref[0, :] + shift_ref[0, :]).astype(o_ref.dtype)


# --------------------------------------------------------------------------------------
# Forward wrapper.
# --------------------------------------------------------------------------------------
def conv_transpose_block_forward(x_nchw, w_phase, bias, gamma, beta, *,
                                 kernel_size, stride, padding, output_padding,
                                 relu_slope=0.2, eps=1e-5, tile_m=None,
                                 compute_dtype=jnp.bfloat16):
    N, Ci, H, W = x_nchw.shape
    k, s, p, op = kernel_size, stride, padding, output_padding
    s_w, K, sCo = w_phase.shape
    assert s_w == s
    Co = sCo // s
    H_out = (H - 1) * s - 2 * p + k + op
    W_out = (W - 1) * s - 2 * p + k + op
    # TODO(synk): the phase-decomposed kernel assumes an exact s-fold upsample (true for this
    # module's p=1, op=s-1 whenever k == 3); generalize the per-phase row counts otherwise.
    assert H_out == H * s and W_out == W * s

    D = _phase_tap_displacements(k, s, p)
    nd = len(D)
    assert K == nd * nd * Ci
    pad_lo = max(0, -D[0])
    pad_hi = max(0, D[-1])
    offsets = tuple((dh + pad_lo, dw + pad_lo) for dh in D for dw in D)

    if tile_m is None:
        tile_m = H                             # one whole image per grid step
    assert H % tile_m == 0
    n_row_blocks = H // tile_m

    # Layout glue: NCHW -> NHWC (channels on lanes), tiny halo pad (NOT the s*s-inflated
    # zero-dilated image of the naive formulation), bf16 cast.
    x = jnp.transpose(x_nchw, (0, 2, 3, 1)).astype(compute_dtype)
    xp = lax.pad(x, jnp.zeros((), compute_dtype),
                 ((0, 0, 0), (pad_lo, pad_hi, 0), (pad_lo, pad_hi, 0), (0, 0, 0)))
    Hp, Wp = xp.shape[1], xp.shape[2]

    bias_sco = jnp.tile(bias.astype(jnp.float32), (s,)).reshape(1, sCo)

    kernel1 = functools.partial(_convt_relu_stats_kernel,
                                s=s, tile_m=tile_m, w_in=W,
                                offsets=offsets, relu_slope=relu_slope)

    y_ph, stats = pl.pallas_call(
        kernel1,
        grid=(N, n_row_blocks),
        in_specs=[
            # whole padded image of the current batch element (resident across row blocks)
            pl.BlockSpec((1, Hp, Wp, Ci), lambda n, i: (n, 0, 0, 0)),
            pl.BlockSpec((s, K, sCo), lambda n, i: (0, 0, 0)),
            pl.BlockSpec((1, sCo), lambda n, i: (0, 0)),
        ],
        out_specs=[
            pl.BlockSpec((1, tile_m * s, W_out // s, sCo), lambda n, i: (n, i, 0, 0)),
            pl.BlockSpec((1, 1, 2, sCo), lambda n, i: (n, i, 0, 0)),
        ],
        out_shape=[
            # phase layout (N, H_out, W_out/s, s*Co) is byte-identical to NHWC
            jax.ShapeDtypeStruct((N, H_out, W_out // s, sCo), x_nchw.dtype),
            jax.ShapeDtypeStruct((N, n_row_blocks, 2, sCo), jnp.float32),
        ],
        scratch_shapes=[
            pltpu.VMEM((tile_m * W, K), compute_dtype),            # im2col slab
            pltpu.VMEM((tile_m, s, W_out // s, sCo), x_nchw.dtype),  # row-phase assembly
        ],
        compiler_params=pltpu.CompilerParams(
            dimension_semantics=("parallel", "parallel")),
    )(xp, w_phase, bias_sco)

    # ---- BatchNorm2d finalize (training-mode batch stats, biased variance) -- a few KB ----
    cnt = N * H_out * W_out
    ssum = jnp.sum(stats[:, :, 0, :], axis=(0, 1)).reshape(s, Co).sum(axis=0)
    ssq = jnp.sum(stats[:, :, 1, :], axis=(0, 1)).reshape(s, Co).sum(axis=0)
    mean = ssum / cnt
    var = jnp.maximum(ssq / cnt - mean * mean, 0.0)
    inv_std = lax.rsqrt(var + eps)
    g32 = gamma.astype(jnp.float32)
    scale = (g32 * inv_std).reshape(1, Co)
    shift = (beta.astype(jnp.float32) - mean * g32 * inv_std).reshape(1, Co)

    y_nhwc = y_ph.reshape(N, H_out, W_out, Co)          # free reshape (same bytes)
    scale = scale.astype(y_nhwc.dtype)
    shift = shift.astype(y_nhwc.dtype)

    out = pl.pallas_call(
        _bn_apply_kernel,
        grid=(N,),
        in_specs=[
            pl.BlockSpec((1, H_out, W_out, Co), lambda n: (n, 0, 0, 0)),
            pl.BlockSpec((1, Co), lambda n: (0, 0)),
            pl.BlockSpec((1, Co), lambda n: (0, 0)),
        ],
        out_specs=pl.BlockSpec((1, H_out, W_out, Co), lambda n: (n, 0, 0, 0)),
        out_shape=jax.ShapeDtypeStruct((N, H_out, W_out, Co), y_nhwc.dtype),
        input_output_aliases={0: 0},                    # normalize y in place
        compiler_params=pltpu.CompilerParams(dimension_semantics=("parallel",)),
    )(y_nhwc, scale, shift)

    return jnp.transpose(out, (0, 3, 1, 2))             # NHWC -> NCHW (PyTorch contract)


# --------------------------------------------------------------------------------------
# Pure-XLA reference (independent path through lax.conv_general_dilated, f32 throughout).
# --------------------------------------------------------------------------------------
def reference_forward(x_nchw, w_pt, bias, gamma, beta, *, stride, padding, output_padding,
                      relu_slope, eps):
    Ci, Co, k, _ = w_pt.shape
    s, p, op = stride, padding, output_padding
    w_conv = jnp.transpose(w_pt[:, :, ::-1, ::-1], (1, 0, 2, 3))  # (Co, Ci, kh, kw)
    y = lax.conv_general_dilated(
        x_nchw, w_conv, window_strides=(1, 1),
        padding=((k - 1 - p, k - 1 - p + op), (k - 1 - p, k - 1 - p + op)),
        lhs_dilation=(s, s), rhs_dilation=(1, 1),
        dimension_numbers=("NCHW", "OIHW", "NCHW"),
        precision=lax.Precision.HIGHEST)
    y = y + bias[None, :, None, None]
    y = jnp.where(y >= 0.0, y, relu_slope * y)
    mean = jnp.mean(y, axis=(0, 2, 3), keepdims=True)
    var = jnp.var(y, axis=(0, 2, 3), keepdims=True)
    y = (y - mean) * lax.rsqrt(var + eps)
    return y * gamma[None, :, None, None] + beta[None, :, None, None]


if __name__ == "__main__":
    # Decoder-style upsampling block: 16x16 -> 32x32, kernel 3, stride 2, padding 1,
    # output_padding = stride - 1 (exact 2x upsample).  Co = 128 keeps stores lane-dense
    # (and s*Co = 256 fills the 256-wide MXU output on v6e/v7x).
    N, Ci, H, W = 2, 32, 16, 16
    Co, k, s = 128, 3, 2
    p, op = 1, s - 1
    relu_slope, eps = 0.2, 1e-5

    key = jax.random.PRNGKey(0)
    kx, kwgt, kb, kg, kbt = jax.random.split(key, 5)
    bound = 1.0 / np.sqrt(Ci * k * k)
    w_pt = jax.random.uniform(kwgt, (Ci, Co, k, k), jnp.float32, -bound, bound)  # torch layout
    bias = jax.random.uniform(kb, (Co,), jnp.float32, -bound, bound)
    gamma = jax.random.uniform(kg, (Co,), jnp.float32, 0.5, 1.5)
    beta = 0.1 * jax.random.normal(kbt, (Co,), jnp.float32)
    x = jax.random.normal(kx, (N, Ci, H, W), jnp.float32)

    # Phase-decomposed bf16 matmul weights -- prepared once, at parameter-init time.
    w_phase = prepare_phase_weights(w_pt, stride=s, padding=p)

    fwd = jax.jit(functools.partial(conv_transpose_block_forward,
                                    kernel_size=k, stride=s, padding=p, output_padding=op,
                                    relu_slope=relu_slope, eps=eps))
    out = jax.block_until_ready(fwd(x, w_phase, bias, gamma, beta))

    ref = reference_forward(x, w_pt, bias, gamma, beta, stride=s, padding=p,
                            output_padding=op, relu_slope=relu_slope, eps=eps)
    # Tolerance accounts for bf16 inputs/weights (f32 accumulation) vs the f32 reference.
    np.testing.assert_allclose(np.asarray(out), np.asarray(ref), rtol=5e-2, atol=5e-2)
    assert out.shape == (N, Co, s * H, s * W)
    print("KERNEL_OK")
</pallas_src>

<mosaic_0001>
module attributes {stable_mosaic.version = 11 : i64} {
  func.func @_convt_relu_stats_kernel(%arg0: i32, %arg1: i32, %arg2: memref<1x17x17x32xbf16, #tpu.memory_space<vmem>>, %arg3: memref<2x128x256xbf16, #tpu.memory_space<vmem>>, %arg4: memref<1x256xf32, #tpu.memory_space<vmem>>, %arg5: memref<1x32x16x256xf32, #tpu.memory_space<vmem>>, %arg6: memref<1x1x2x256xf32, #tpu.memory_space<vmem>>, %arg7: memref<256x128xbf16, #tpu.memory_space<vmem>>, %arg8: memref<16x2x16x256xf32, #tpu.memory_space<vmem>>) attributes {dimension_semantics = [#tpu.dimension_semantics<parallel>, #tpu.dimension_semantics<parallel>], iteration_bounds = array<i64: 2, 1>, scalar_prefetch = 0 : i64, scratch_operands = 2 : i64, tpu.core_type = #tpu.core_type<tc>, window_params = [{transform_indices = @transform_0, window_bounds = array<i64: 1, 17, 17, 32>}, {pipeline_mode = #tpu.pipeline_mode<synchronous>, transform_indices = @transform_1, window_bounds = array<i64: 2, 128, 256>}, {pipeline_mode = #tpu.pipeline_mode<synchronous>, transform_indices = @transform_2, window_bounds = array<i64: 1, 256>}, {transform_indices = @transform_3, window_bounds = array<i64: 1, 32, 16, 256>}, {transform_indices = @transform_4, window_bounds = array<i64: 1, 1, 2, 256>}]} {
    %c16_i32 = arith.constant 16 : i32
    %0 = arith.muli %arg1, %c16_i32 : i32
    %1 = tpu.assume_multiple %0, 16 : i32
    %c0_i32 = arith.constant 0 : i32
    %2 = arith.addi %1, %c0_i32 : i32
    %c0 = arith.constant 0 : index
    %3 = arith.index_cast %2 : i32 to index
    %c0_0 = arith.constant 0 : index
    %c0_1 = arith.constant 0 : index
    %4 = vector.load %arg2[%c0, %3, %c0_0, %c0_1] : memref<1x17x17x32xbf16, #tpu.memory_space<vmem>>, vector<1x16x16x32xbf16>
    %5 = vector.shape_cast %4 : vector<1x16x16x32xbf16> to vector<16x16x32xbf16>
    %6 = vector.shape_cast %5 : vector<16x16x32xbf16> to vector<256x32xbf16>
    %c0_2 = arith.constant 0 : index
    %c0_3 = arith.constant 0 : index
    %7 = vector.load %arg7[%c0_2, %c0_3] : memref<256x128xbf16, #tpu.memory_space<vmem>>, vector<256x32xbf16>
    tpu.vector_store %arg7[%c0_2, %c0_3], %6 {strides = array<i32>} : memref<256x128xbf16, #tpu.memory_space<vmem>>, vector<256x32xbf16>,
    %c0_i32_4 = arith.constant 0 : i32
    %8 = arith.addi %1, %c0_i32_4 : i32
    %c0_5 = arith.constant 0 : index
    %9 = arith.index_cast %8 : i32 to index
    %c1 = arith.constant 1 : index
    %c0_6 = arith.constant 0 : index
    %10 = vector.load %arg2[%c0_5, %9, %c1, %c0_6] : memref<1x17x17x32xbf16, #tpu.memory_space<vmem>>, vector<1x16x16x32xbf16>
    %11 = vector.shape_cast %10 : vector<1x16x16x32xbf16> to vector<16x16x32xbf16>
    %12 = vector.shape_cast %11 : vector<16x16x32xbf16> to vector<256x32xbf16>
    %c0_7 = arith.constant 0 : index
    %c32 = arith.constant 32 : index
    %13 = vector.load %arg7[%c0_7, %c32] : memref<256x128xbf16, #tpu.memory_space<vmem>>, vector<256x32xbf16>
    tpu.vector_store %arg7[%c0_7, %c32], %12 {strides = array<i32>} : memref<256x128xbf16, #tpu.memory_space<vmem>>, vector<256x32xbf16>,
    %c1_i32 = arith.constant 1 : i32
    %14 = arith.addi %1, %c1_i32 : i32
    %c0_8 = arith.constant 0 : index
    %15 = arith.index_cast %14 : i32 to index
    %c0_9 = arith.constant 0 : index
    %c0_10 = arith.constant 0 : index
    %16 = vector.load %arg2[%c0_8, %15, %c0_9, %c0_10] : memref<1x17x17x32xbf16, #tpu.memory_space<vmem>>, vector<1x16x16x32xbf16>
    %17 = vector.shape_cast %16 : vector<1x16x16x32xbf16> to vector<16x16x32xbf16>
    %18 = vector.shape_cast %17 : vector<16x16x32xbf16> to vector<256x32xbf16>
    %c0_11 = arith.constant 0 : index
    %c64 = arith.constant 64 : index
    %19 = vector.load %arg7[%c0_11, %c64] : memref<256x128xbf16, #tpu.memory_space<vmem>>, vector<256x32xbf16>
    tpu.vector_store %arg7[%c0_11, %c64], %18 {strides = array<i32>} : memref<256x128xbf16, #tpu.memory_space<vmem>>, vector<256x32xbf16>,
    %c1_i32_12 = arith.constant 1 : i32
    %20 = arith.addi %1, %c1_i32_12 : i32
    %c0_13 = arith.constant 0 : index
    %21 = arith.index_cast %20 : i32 to index
    %c1_14 = arith.constant 1 : index
    %c0_15 = arith.constant 0 : index
    %22 = vector.load %arg2[%c0_13, %21, %c1_14, %c0_15] : memref<1x17x17x32xbf16, #tpu.memory_space<vmem>>, vector<1x16x16x32xbf16>
    %23 = vector.shape_cast %22 : vector<1x16x16x32xbf16> to vector<16x16x32xbf16>
    %24 = vector.shape_cast %23 : vector<16x16x32xbf16> to vector<256x32xbf16>
    %c0_16 = arith.constant 0 : index
    %c96 = arith.constant 96 : index
    %25 = vector.load %arg7[%c0_16, %c96] : memref<256x128xbf16, #tpu.memory_space<vmem>>, vector<256x32xbf16>
    tpu.vector_store %arg7[%c0_16, %c96], %24 {strides = array<i32>} : memref<256x128xbf16, #tpu.memory_space<vmem>>, vector<256x32xbf16>,
    %c0_17 = arith.constant 0 : index
    %c0_18 = arith.constant 0 : index
    %26 = vector.load %arg7[%c0_17, %c0_18] : memref<256x128xbf16, #tpu.memory_space<vmem>>, vector<256x128xbf16>
    %c0_19 = arith.constant 0 : index
    %c0_20 = arith.constant 0 : index
    %27 = vector.load %arg4[%c0_19, %c0_20] : memref<1x256xf32, #tpu.memory_space<vmem>>, vector<1x256xf32>
    %cst = arith.constant 0.000000e+00 : f32
    %28 = vector.broadcast %cst : f32 to vector<1x256xf32>
    %cst_21 = arith.constant 0.000000e+00 : f32
    %29 = vector.broadcast %cst_21 : f32 to vector<1x256xf32>
    %c0_22 = arith.constant 0 : index
    %c0_23 = arith.constant 0 : index
    %c0_24 = arith.constant 0 : index
    %30 = vector.load %arg3[%c0_22, %c0_23, %c0_24] : memref<2x128x256xbf16, #tpu.memory_space<vmem>>, vector<1x128x256xbf16>
    %31 = vector.shape_cast %30 : vector<1x128x256xbf16> to vector<128x256xbf16>
    %cst_25 = arith.constant dense<0.000000e+00> : vector<256x256xf32>
    %32 = tpu.matmul %26, %31, %cst_25 {dimension_numbers = #tpu.dot_dimension_numbers<[1], [0], [0], [1], [0, 0, 1, 1], [], []>} : vector<256x128xbf16>, vector<128x256xbf16>, vector<256x256xf32> -> vector<256x256xf32>
    %33 = vector.broadcast %27 : vector<1x256xf32> to vector<256x256xf32>
    %34 = arith.addf %32, %33 : vector<256x256xf32>
    %cst_26 = arith.constant 0.000000e+00 : f32
    %35 = vector.broadcast %cst_26 : f32 to vector<256x256xf32>
    %36 = arith.cmpf oge, %34, %35 : vector<256x256xf32>
    %cst_27 = arith.constant 2.000000e-01 : f32
    %37 = vector.broadcast %cst_27 : f32 to vector<256x256xf32>
    %38 = arith.mulf %34, %37 : vector<256x256xf32>
    %39 = arith.select %36, %34, %38 : vector<256x256xi1>, vector<256x256xf32>
    %cst_28 = arith.constant dense<0.000000e+00> : vector<256xf32>
    %40 = vector.multi_reduction <add>, %39, %cst_28 [0] : vector<256x256xf32> to vector<256xf32>
    %41 = vector.shape_cast %40 : vector<256xf32> to vector<1x256xf32>
    %42 = arith.addf %28, %41 : vector<1x256xf32>
    %43 = arith.mulf %39, %39 : vector<256x256xf32>
    %cst_29 = arith.constant dense<0.000000e+00> : vector<256xf32>
    %44 = vector.multi_reduction <add>, %43, %cst_29 [0] : vector<256x256xf32> to vector<256xf32>
    %45 = vector.shape_cast %44 : vector<256xf32> to vector<1x256xf32>
    %46 = arith.addf %29, %45 : vector<1x256xf32>
    %47 = vector.shape_cast %39 : vector<256x256xf32> to vector<16x16x256xf32>
    %c0_30 = arith.constant 0 : index
    %c0_31 = arith.constant 0 : index
    %c0_32 = arith.constant 0 : index
    %c0_33 = arith.constant 0 : index
    %48 = vector.load %arg8[%c0_30, %c0_31, %c0_32, %c0_33] : memref<16x2x16x256xf32, #tpu.memory_space<vmem>>, vector<16x1x16x256xf32>
    %49 = vector.shape_cast %48 : vector<16x1x16x256xf32> to vector<16x16x256xf32>
    %50 = vector.shape_cast %47 : vector<16x16x256xf32> to vector<16x1x16x256xf32>
    tpu.vector_store %arg8[%c0_30, %c0_31, %c0_32, %c0_33], %50 {strides = array<i32>} : memref<16x2x16x256xf32, #tpu.memory_space<vmem>>, vector<16x1x16x256xf32>,
    %c1_34 = arith.constant 1 : index
    %c0_35 = arith.constant 0 : index
    %c0_36 = arith.constant 0 : index
    %51 = vector.load %arg3[%c1_34, %c0_35, %c0_36] : memref<2x128x256xbf16, #tpu.memory_space<vmem>>, vector<1x128x256xbf16>
    %52 = vector.shape_cast %51 : vector<1x128x256xbf16> to vector<128x256xbf16>
    %cst_37 = arith.constant dense<0.000000e+00> : vector<256x256xf32>
    %53 = tpu.matmul %26, %52, %cst_37 {dimension_numbers = #tpu.dot_dimension_numbers<[1], [0], [0], [1], [0, 0, 1, 1], [], []>} : vector<256x128xbf16>, vector<128x256xbf16>, vector<256x256xf32> -> vector<256x256xf32>
    %54 = vector.broadcast %27 : vector<1x256xf32> to vector<256x256xf32>
    %55 = arith.addf %53, %54 : vector<256x256xf32>
    %cst_38 = arith.constant 0.000000e+00 : f32
    %56 = vector.broadcast %cst_38 : f32 to vector<256x256xf32>
    %57 = arith.cmpf oge, %55, %56 : vector<256x256xf32>
    %cst_39 = arith.constant 2.000000e-01 : f32
    %58 = vector.broadcast %cst_39 : f32 to vector<256x256xf32>
    %59 = arith.mulf %55, %58 : vector<256x256xf32>
    %60 = arith.select %57, %55, %59 : vector<256x256xi1>, vector<256x256xf32>
    %cst_40 = arith.constant dense<0.000000e+00> : vector<256xf32>
    %61 = vector.multi_reduction <add>, %60, %cst_40 [0] : vector<256x256xf32> to vector<256xf32>
    %62 = vector.shape_cast %61 : vector<256xf32> to vector<1x256xf32>
    %63 = arith.addf %42, %62 : vector<1x256xf32>
    %64 = arith.mulf %60, %60 : vector<256x256xf32>
    %cst_41 = arith.constant dense<0.000000e+00> : vector<256xf32>
    %65 = vector.multi_reduction <add>, %64, %cst_41 [0] : vector<256x256xf32> to vector<256xf32>
    %66 = vector.shape_cast %65 : vector<256xf32> to vector<1x256xf32>
    %67 = arith.addf %46, %66 : vector<1x256xf32>
    %68 = vector.shape_cast %60 : vector<256x256xf32> to vector<16x16x256xf32>
    %c0_42 = arith.constant 0 : index
    %c1_43 = arith.constant 1 : index
    %c0_44 = arith.constant 0 : index
    %c0_45 = arith.constant 0 : index
    %69 = vector.load %arg8[%c0_42, %c1_43, %c0_44, %c0_45] : memref<16x2x16x256xf32, #tpu.memory_space<vmem>>, vector<16x1x16x256xf32>
    %70 = vector.shape_cast %69 : vector<16x1x16x256xf32> to vector<16x16x256xf32>
    %71 = vector.shape_cast %68 : vector<16x16x256xf32> to vector<16x1x16x256xf32>
    tpu.vector_store %arg8[%c0_42, %c1_43, %c0_44, %c0_45], %71 {strides = array<i32>} : memref<16x2x16x256xf32, #tpu.memory_space<vmem>>, vector<16x1x16x256xf32>,
    %c0_46 = arith.constant 0 : index
    %c0_47 = arith.constant 0 : index
    %c0_48 = arith.constant 0 : index
    %c0_49 = arith.constant 0 : index
    %72 = vector.load %arg8[%c0_46, %c0_47, %c0_48, %c0_49] : memref<16x2x16x256xf32, #tpu.memory_space<vmem>>, vector<16x2x16x256xf32>
    %73 = vector.shape_cast %72 : vector<16x2x16x256xf32> to vector<1x32x16x256xf32>
    %c0_50 = arith.constant 0 : index
    %c0_51 = arith.constant 0 : index
    %c0_52 = arith.constant 0 : index
    %c0_53 = arith.constant 0 : index
    %74 = vector.load %arg5[%c0_50, %c0_51, %c0_52, %c0_53] : memref<1x32x16x256xf32, #tpu.memory_space<vmem>>, vector<1x32x16x256xf32>
    tpu.vector_store %arg5[%c0_50, %c0_51, %c0_52, %c0_53], %73 {strides = array<i32>} : memref<1x32x16x256xf32, #tpu.memory_space<vmem>>, vector<1x32x16x256xf32>,
    %75 = tpu.concatenate %63, %67 in 0 : vector<1x256xf32>, vector<1x256xf32> -> vector<2x256xf32>
    %c0_54 = arith.constant 0 : index
    %c0_55 = arith.constant 0 : index
    %c0_56 = arith.constant 0 : index
    %c0_57 = arith.constant 0 : index
    %76 = vector.load %arg6[%c0_54, %c0_55, %c0_56, %c0_57] : memref<1x1x2x256xf32, #tpu.memory_space<vmem>>, vector<1x1x2x256xf32>
    %77 = vector.shape_cast %76 : vector<1x1x2x256xf32> to vector<2x256xf32>
    %78 = vector.shape_cast %75 : vector<2x256xf32> to vector<1x1x2x256xf32>
    tpu.vector_store %arg6[%c0_54, %c0_55, %c0_56, %c0_57], %78 {strides = array<i32>} : memref<1x1x2x256xf32, #tpu.memory_space<vmem>>, vector<1x1x2x256xf32>,
    return
  }
  func.func @transform_0(%arg0: i32, %arg1: i32) -> (i32, i32, i32, i32) {
    %c0_i32 = arith.constant 0 : i32
    %c0_i32_0 = arith.constant 0 : i32
    %c0_i32_1 = arith.constant 0 : i32
    %c0_i32_2 = arith.constant 0 : i32
    return %arg0, %c0_i32, %c0_i32_0, %c0_i32_1 : i32, i32, i32, i32
  }
  func.func @transform_1(%arg0: i32, %arg1: i32) -> (i32, i32, i32) {
    %c0_i32 = arith.constant 0 : i32
    %c0_i32_0 = arith.constant 0 : i32
    %c0_i32_1 = arith.constant 0 : i32
    %c0_i32_2 = arith.constant 0 : i32
    return %c0_i32, %c0_i32_0, %c0_i32_1 : i32, i32, i32
  }
  func.func @transform_2(%arg0: i32, %arg1: i32) -> (i32, i32) {
    %c0_i32 = arith.constant 0 : i32
    %c0_i32_0 = arith.constant 0 : i32
    %c0_i32_1 = arith.constant 0 : i32
    return %c0_i32, %c0_i32_0 : i32, i32
  }
  func.func @transform_3(%arg0: i32, %arg1: i32) -> (i32, i32, i32, i32) {
    %c0_i32 = arith.constant 0 : i32
    %c0_i32_0 = arith.constant 0 : i32
    %c0_i32_1 = arith.constant 0 : i32
    return %arg0, %arg1, %c0_i32, %c0_i32_0 : i32, i32, i32, i32
  }
  func.func @transform_4(%arg0: i32, %arg1: i32) -> (i32, i32, i32, i32) {
    %c0_i32 = arith.constant 0 : i32
    %c0_i32_0 = arith.constant 0 : i32
    %c0_i32_1 = arith.constant 0 : i32
    return %arg0, %arg1, %c0_i32, %c0_i32_0 : i32, i32, i32, i32
  }
}

module attributes {stable_mosaic.version = 11 : i64} {
  func.func @_bn_apply_kernel(%arg0: i32, %arg1: memref<1x32x32x128xf32, #tpu.memory_space<vmem>>, %arg2: memref<1x128xf32, #tpu.memory_space<vmem>>, %arg3: memref<1x128xf32, #tpu.memory_space<vmem>>, %arg4: memref<1x32x32x128xf32, #tpu.memory_space<vmem>>) attributes {dimension_semantics = [#tpu.dimension_semantics<parallel>], iteration_bounds = array<i64: 2>, scalar_prefetch = 0 : i64, scratch_operands = 0 : i64, tpu.core_type = #tpu.core_type<tc>, window_params = [{transform_indices = @transform_0, window_bounds = array<i64: 1, 32, 32, 128>}, {pipeline_mode = #tpu.pipeline_mode<synchronous>, transform_indices = @transform_1, window_bounds = array<i64: 1, 128>}, {pipeline_mode = #tpu.pipeline_mode<synchronous>, transform_indices = @transform_2, window_bounds = array<i64: 1, 128>}, {transform_indices = @transform_3, window_bounds = array<i64: 1, 32, 32, 128>}]} {
    %c0 = arith.constant 0 : index
    %c0_0 = arith.constant 0 : index
    %c0_1 = arith.constant 0 : index
    %c0_2 = arith.constant 0 : index
    %0 = vector.load %arg1[%c0, %c0_0, %c0_1, %c0_2] : memref<1x32x32x128xf32, #tpu.memory_space<vmem>>, vector<1x32x32x128xf32>
    %c0_3 = arith.constant 0 : index
    %c0_4 = arith.constant 0 : index
    %1 = vector.load %arg2[%c0_3, %c0_4] : memref<1x128xf32, #tpu.memory_space<vmem>>, vector<1x128xf32>
    %2 = vector.shape_cast %1 : vector<1x128xf32> to vector<128xf32>
    %3 = vector.shape_cast %2 : vector<128xf32> to vector<1x1x1x128xf32>
    %4 = vector.broadcast %3 : vector<1x1x1x128xf32> to vector<1x32x32x128xf32>
    %5 = arith.mulf %0, %4 : vector<1x32x32x128xf32>
    %c0_5 = arith.constant 0 : index
    %c0_6 = arith.constant 0 : index
    %6 = vector.load %arg3[%c0_5, %c0_6] : memref<1x128xf32, #tpu.memory_space<vmem>>, vector<1x128xf32>
    %7 = vector.shape_cast %6 : vector<1x128xf32> to vector<128xf32>
    %8 = vector.shape_cast %7 : vector<128xf32> to vector<1x1x1x128xf32>
    %9 = vector.broadcast %8 : vector<1x1x1x128xf32> to vector<1x32x32x128xf32>
    %10 = arith.addf %5, %9 : vector<1x32x32x128xf32>
    %c0_7 = arith.constant 0 : index
    %c0_8 = arith.constant 0 : index
    %c0_9 = arith.constant 0 : index
    %c0_10 = arith.constant 0 : index
    %11 = vector.load %arg4[%c0_7, %c0_8, %c0_9, %c0_10] : memref<1x32x32x128xf32, #tpu.memory_space<vmem>>, vector<1x32x32x128xf32>
    tpu.vector_store %arg4[%c0_7, %c0_8, %c0_9, %c0_10], %10 {strides = array<i32>} : memref<1x32x32x128xf32, #tpu.memory_space<vmem>>, vector<1x32x32x128xf32>,
    return
  }
  func.func @transform_0(%arg0: i32) -> (i32, i32, i32, i32) {
    %c0_i32 = arith.constant 0 : i32
    %c0_i32_0 = arith.constant 0 : i32
    %c0_i32_1 = arith.constant 0 : i32
    %c0_i32_2 = arith.constant 0 : i32
    return %arg0, %c0_i32, %c0_i32_0, %c0_i32_1 : i32, i32, i32, i32
  }
  func.func @transform_1(%arg0: i32) -> (i32, i32) {
    %c0_i32 = arith.constant 0 : i32
    %c0_i32_0 = arith.constant 0 : i32
    %c0_i32_1 = arith.constant 0 : i32
    return %c0_i32, %c0_i32_0 : i32, i32
  }
  func.func @transform_2(%arg0: i32) -> (i32, i32) {
    %c0_i32 = arith.constant 0 : i32
    %c0_i32_0 = arith.constant 0 : i32
    %c0_i32_1 = arith.constant 0 : i32
    return %c0_i32, %c0_i32_0 : i32, i32
  }
  func.func @transform_3(%arg0: i32) -> (i32, i32, i32, i32) {
    %c0_i32 = arith.constant 0 : i32
    %c0_i32_0 = arith.constant 0 : i32
    %c0_i32_1 = arith.constant 0 : i32
    %c0_i32_2 = arith.constant 0 : i32
    return %arg0, %c0_i32, %c0_i32_0, %c0_i32_1 : i32, i32, i32, i32
  }
}

</mosaic_0001>

<llo_original>
// kernel: tile.8
$region0: #{tile.8}
  #allocation0 [shape = 's32[1]{0}', space=sflag, size = 0x4, scoped, tag = 'scoped memory for tile.8']
  %s0 = inlined_call_operand.vmem [shape: f32[128], index: 0, kind: input, shape index: {}]
  %s1 = inlined_call_operand.vmem [shape: f32[2,128], index: 1, kind: output, shape index: {}]
  // Predicated region
  $region2: #{tile.8} parent=0 // pred_check
    _
  $region3: #{tile.8} parent=0 // pred_check_branch
    %3 = sbr.rel (0) target = $region5
  $region4: #{tile.8} parent=0 // pred_region
    _
  $region5: #{tile.8} parent=0 // pred_fallthru
    _
  %v4 = vld [vmem:[%s0] ss:$0 sm:$0xff]
  %5 = vst [vmem:[%s1] sm:$0x3] %v4

// kernel: conv_transpose_block_forward.3
$region0: #{conv_transpose_block_forward.3}
  #allocation0 [shape = 'u32[]', space=smem, size = 0x4, offset = 0x4, fixed_abs, tag = 'smem constant byte address 0x4 - core index']
  #allocation1 [shape = 'u32[144,128]{1,0:T(1,128)}', space=vmem, size = 0x12000, scoped, tag = 'internal scratch']
  %s0 = inlined_call_operand.vmem [shape: f32[2,32,32,128], index: 0, kind: input, shape index: {}, may-alias: {0,3}]
  %s1 = inlined_call_operand.vmem [shape: f32[1,128], index: 1, kind: input, shape index: {}]
  %s2 = inlined_call_operand.vmem [shape: f32[1,128], index: 2, kind: input, shape index: {}]
  %s3 = inlined_call_operand.vmem [shape: f32[2,32,32,128], index: 3, kind: output, shape index: {}, may-alias: {0,3}]
  %s4 = sld [smem:[#allocation0]]
  $region45: #{conv_transpose_block_forward.3} parent=0
    _
  %s6 = ssub.s32 1, %s4
  %s7 = scalar_select 0, %s6, %s4
  loop: start=0, step=1, limit=4
  $region2: #{conv_transpose_block_forward.3} parent=0 // loop_pre_header
    _
  $region3: #{conv_transpose_block_forward.3} parent=0 // loop_header
    %s9 = sphi 0, %s13
    %p10 = scmp.ge.s32.totalorder %s9, 4
    %s19 = sphi 0, %s21
    %s22 = sphi 0, %s19
    %s23 = sphi 0, %s22
    %s39 = sphi 0, %s23
    %s43 = sphi 0, %s43
    %s45 = sphi 0, %s43
    %s46 = sphi 0, %s45
    %s60 = sphi 0, %s46
    %s64 = sphi 0, %s64
    %s66 = sphi 0, %s64
    %s67 = sphi 0, %s66
    %s81 = sphi 0, %s67
    %s87 = sphi 0, %s89
    %s90 = sphi 0, %s87
    %s91 = sphi 0, %s90
    %s107 = sphi 0, %s91
  $region4: #{conv_transpose_block_forward.3} parent=0 // loop_header_branch
    %12 = sbr.rel (%p10) target = $region8
  $region5: #{conv_transpose_block_forward.3} parent=0 // loop_body
    %s14 = ssub.s32 %s9, 1
    %s15 = ssub.s32 %s9, 2
    %s16 = sadd.s32 %s9, 1
    %s17 = ssub.s32 %s9, %s16
    %p18 = scmp.eq.s32.totalorder %s17, 0
    %s20 = sadd.s32 %s19, 1
    %s21 = scalar_select %p18, %s19, %s20
    %p24 = pneg %p18
    %p25 = scmp.eq.s32.totalorder %s9, 1
    %p26 = por %p24, %p25
    %p27 = scmp.ne.s32.totalorder %s19, %s22
    %p28 = scmp.eq.s32.totalorder %s9, 0
    %p29 = por %p27, %p28
    %p30 = scmp.ne.s32.totalorder %s19, %s22
    %p31 = scmp.eq.s32.totalorder %s14, 1
    %p32 = por %p30, %p31
    %p33 = scmp.ne.s32.totalorder %s22, %s23
    %p34 = scmp.eq.s32.totalorder %s14, 0
    %p35 = por %p33, %p34
    %p36 = scmp.ne.s32.totalorder %s22, %s23
    %p37 = scmp.eq.s32.totalorder %s15, 1
    %p38 = por %p36, %p37
    %p40 = scmp.ne.s32.totalorder %s23, %s39
    %p41 = scmp.eq.s32.totalorder %s15, 0
    %p42 = por %p40, %p41
    %s44 = sadd.s32 %s43, 1
    %p47 = scmp.eq.s32.totalorder %s9, 1
    %p48 = scmp.ne.s32.totalorder %s43, %s45
    %p49 = scmp.eq.s32.totalorder %s9, 0
    %p50 = por %p48, %p49
    %p51 = scmp.ne.s32.totalorder %s43, %s45
    %p52 = scmp.eq.s32.totalorder %s14, 1
    %p53 = por %p51, %p52
    %p54 = scmp.ne.s32.totalorder %s45, %s46
    %p55 = scmp.eq.s32.totalorder %s14, 0
    %p56 = por %p54, %p55
    %p57 = scmp.ne.s32.totalorder %s45, %s46
    %p58 = scmp.eq.s32.totalorder %s15, 1
    %p59 = por %p57, %p58
    %p61 = scmp.ne.s32.totalorder %s46, %s60
    %p62 = scmp.eq.s32.totalorder %s15, 0
    %p63 = por %p61, %p62
    %s65 = sadd.s32 %s64, 1
    %p68 = scmp.eq.s32.totalorder %s9, 1
    %p69 = scmp.ne.s32.totalorder %s64, %s66
    %p70 = scmp.eq.s32.totalorder %s9, 0
    %p71 = por %p69, %p70
    %p72 = scmp.ne.s32.totalorder %s64, %s66
    %p73 = scmp.eq.s32.totalorder %s14, 1
    %p74 = por %p72, %p73
    %p75 = scmp.ne.s32.totalorder %s66, %s67
    %p76 = scmp.eq.s32.totalorder %s14, 0
    %p77 = por %p75, %p76
    %p78 = scmp.ne.s32.totalorder %s66, %s67
    %p79 = scmp.eq.s32.totalorder %s15, 1
    %p80 = por %p78, %p79
    %p82 = scmp.ne.s32.totalorder %s67, %s81
    %p83 = scmp.eq.s32.totalorder %s15, 0
    %p84 = por %p82, %p83
    %s85 = ssub.s32 %s9, %s16
    %p86 = scmp.eq.s32.totalorder %s85, 0
    %s88 = sadd.s32 %s87, 1
    %s89 = scalar_select %p86, %s87, %s88
    %p92 = pneg %p86
    %p93 = scmp.eq.s32.totalorder %s9, 1
    %p94 = por %p92, %p93
    %p95 = scmp.ne.s32.totalorder %s87, %s90
    %p96 = scmp.eq.s32.totalorder %s9, 0
    %p97 = por %p95, %p96
    %p98 = scmp.ne.s32.totalorder %s87, %s90
    %p99 = scmp.eq.s32.totalorder %s14, 1
    %p100 = por %p98, %p99
    %p101 = scmp.ne.s32.totalorder %s90, %s91
    %p102 = scmp.eq.s32.totalorder %s14, 0
    %p103 = por %p101, %p102
    %p104 = scmp.ne.s32.totalorder %s90, %s91
    %p105 = scmp.eq.s32.totalorder %s15, 1
    %p106 = por %p104, %p105
    %p108 = scmp.ne.s32.totalorder %s91, %s107
    %p109 = scmp.eq.s32.totalorder %s15, 0
    %p110 = por %p108, %p109
    %p111 = scmp.le.s32.totalorder 1, %s9
    %p112 = scmp.lt.s32.totalorder %s9, 3
    %p113 = pnand %p111, %p112
    %p114 = pneg %p113
    // Predicated region
    $region9: #{conv_transpose_block_forward.3} parent=5 // pred_check
      _
    $region10: #{conv_transpose_block_forward.3} parent=5 // pred_check_branch
      %116 = sbr.rel (%p113) target = $region12
    $region11: #{conv_transpose_block_forward.3} parent=5 // pred_region
      %s117 = ssub.s32 %s9, 1
      // Predicated region
      $region13: #{conv_transpose_block_forward.3} parent=11 // pred_check
        %p118 = pneg %p56
      $region14: #{conv_transpose_block_forward.3} parent=11 // pred_check_branch
        %120 = sbr.rel (%p118) target = $region16
      $region15: #{conv_transpose_block_forward.3} parent=11 // pred_region
        _
      $region16: #{conv_transpose_block_forward.3} parent=11 // pred_fallthru
        _
      // Predicated region
      $region17: #{conv_transpose_block_forward.3} parent=11 // pred_check
        %p121 = pneg %p77
      $region18: #{conv_transpose_block_forward.3} parent=11 // pred_check_branch
        %123 = sbr.rel (%p121) target = $region20
      $region19: #{conv_transpose_block_forward.3} parent=11 // pred_region
        _
      $region20: #{conv_transpose_block_forward.3} parent=11 // pred_fallthru
        _
    $region12: #{conv_transpose_block_forward.3} parent=5 // pred_fallthru
      _
    %p124 = scmp.lt.s32.totalorder %s9, 2
    // Predicated region
    $region21: #{conv_transpose_block_forward.3} parent=5 // pred_check
      %p125 = pneg %p124
    $region22: #{conv_transpose_block_forward.3} parent=5 // pred_check_branch
      %127 = sbr.rel (%p125) target = $region24
    $region23: #{conv_transpose_block_forward.3} parent=5 // pred_region
      // Predicated region
      $region25: #{conv_transpose_block_forward.3} parent=23 // pred_check
        %p128 = pneg %p29
      $region26: #{conv_transpose_block_forward.3} parent=23 // pred_check_branch
        %130 = sbr.rel (%p128) target = $region28
      $region27: #{conv_transpose_block_forward.3} parent=23 // pred_region
        %p131 = scmp.lt.s32.totalorder %s9, 1
        %s132 = scalar_select %p131, %s9, 1
        %s133 = smul.addr %s132, 128
        %s134 = smul.addr %s133, 8
        %s135 = scalar_lea.vmem %s0, %s134
      $region28: #{conv_transpose_block_forward.3} parent=23 // pred_fallthru
        _
    $region24: #{conv_transpose_block_forward.3} parent=5 // pred_fallthru
      _
    %p136 = scmp.le.s32.totalorder 1, %s9
    %p137 = scmp.lt.s32.totalorder %s9, 3
    %p138 = pnand %p136, %p137
    %p139 = pneg %p138
    // Predicated region
    $region29: #{conv_transpose_block_forward.3} parent=5 // pred_check
      _
    $region30: #{conv_transpose_block_forward.3} parent=5 // pred_check_branch
      %141 = sbr.rel (%p138) target = $region32
    $region31: #{conv_transpose_block_forward.3} parent=5 // pred_region
      %s142 = ssub.s32 %s9, 1
      %p143 = scmp.lt.s32.totalorder %s14, 1
      %s144 = scalar_select %p143, %s14, 1
      %s145 = smul.addr %s144, 128
      %s146 = smul.addr %s145, 8
      %s147 = scalar_lea.vmem %s0, %s146
      %p148 = pneg %p35
      %p149 = pneg %p32
      %p150 = pneg %p56
      %p151 = pneg %p53
      %p152 = pneg %p77
      %p153 = pneg %p74
      %p154 = pneg %p103
      %p155 = pneg %p100
      %p156 = scmp.lt.s32.totalorder %s14, 1
      %s157 = scalar_select %p156, %s14, 1
      %s158 = smul.addr %s157, 128
      %s159 = smul.addr %s158, 8
      %s160 = scalar_lea.vmem %s3, %s159
      %p161 = scmp.lt.s32.totalorder %s14, 1
      %s162 = scalar_select %p161, %s14, 1
      %s163 = smul.addr %s162, 128
      %s164 = smul.addr %s163, 8
      %s165 = scalar_lea.vmem %s0, %s164
      %p166 = scmp.lt.s32.totalorder %s14, 1
      %s167 = scalar_select %p166, %s14, 1
      %s168 = smul.addr %s167, 128
      %s169 = smul.addr %s168, 8
      %s170 = scalar_lea.vmem %s3, %s169
      %v171 = vld [vmem:[%s165] sm:$0xff]
      %v172 = vld [vmem:[%s165 + $0x8] sm:$0xff]
      %v173 = vld [vmem:[%s165 + $0x10] sm:$0xff]
      %v174 = vld [vmem:[%s165 + $0x18] sm:$0xff]
      %v175 = vld [vmem:[%s165 + $0x20] sm:$0xff]
      %v176 = vld [vmem:[%s165 + $0x28] sm:$0xff]
      %v177 = vld [vmem:[%s165 + $0x30] sm:$0xff]
      %v178 = vld [vmem:[%s165 + $0x38] sm:$0xff]
      %v179 = vld [vmem:[%s165 + $0x40] sm:$0xff]
      %v180 = vld [vmem:[%s165 + $0x48] sm:$0xff]
      %v181 = vld [vmem:[%s165 + $0x50] sm:$0xff]
      %v182 = vld [vmem:[%s165 + $0x58] sm:$0xff]
      %v183 = vld [vmem:[%s165 + $0x60] sm:$0xff]
      %v184 = vld [vmem:[%s165 + $0x68] sm:$0xff]
      %v185 = vld [vmem:[%s165 + $0x70] sm:$0xff]
      %v186 = vld [vmem:[%s165 + $0x78] sm:$0xff]
      %v187 = vld [vmem:[%s165 + $0x80] sm:$0xff]
      %v188 = vld [vmem:[%s165 + $0x88] sm:$0xff]
      %v189 = vld [vmem:[%s165 + $0x90] sm:$0xff]
      %v190 = vld [vmem:[%s165 + $0x98] sm:$0xff]
      %v191 = vld [vmem:[%s165 + $0xa0] sm:$0xff]
      %v192 = vld [vmem:[%s165 + $0xa8] sm:$0xff]
      %v193 = vld [vmem:[%s165 + $0xb0] sm:$0xff]
      %v194 = vld [vmem:[%s165 + $0xb8] sm:$0xff]
      %v195 = vld [vmem:[%s165 + $0xc0] sm:$0xff]
      %v196 = vld [vmem:[%s165 + $0xc8] sm:$0xff]
      %v197 = vld [vmem:[%s165 + $0xd0] sm:$0xff]
      %v198 = vld [vmem:[%s165 + $0xd8] sm:$0xff]
      %v199 = vld [vmem:[%s165 + $0xe0] sm:$0xff]
      %v200 = vld [vmem:[%s165 + $0xe8] sm:$0xff]
      %v201 = vld [vmem:[%s165 + $0xf0] sm:$0xff]
      %v202 = vld [vmem:[%s165 + $0xf8] sm:$0xff]
      %v203 = vld [vmem:[%s165 + $0x100] sm:$0xff]
      %v204 = vld [vmem:[%s165 + $0x108] sm:$0xff]
      %v205 = vld [vmem:[%s165 + $0x110] sm:$0xff]
      %v206 = vld [vmem:[%s165 + $0x118] sm:$0xff]
      %v207 = vld [vmem:[%s165 + $0x120] sm:$0xff]
      %v208 = vld [vmem:[%s165 + $0x128] sm:$0xff]
      %v209 = vld [vmem:[%s165 + $0x130] sm:$0xff]
      %v210 = vld [vmem:[%s165 + $0x138] sm:$0xff]
      %v211 = vld [vmem:[%s165 + $0x140] sm:$0xff]
      %v212 = vld [vmem:[%s165 + $0x148] sm:$0xff]
      %v213 = vld [vmem:[%s165 + $0x150] sm:$0xff]
      %v214 = vld [vmem:[%s165 + $0x158] sm:$0xff]
      %v215 = vld [vmem:[%s165 + $0x160] sm:$0xff]
      %v216 = vld [vmem:[%s165 + $0x168] sm:$0xff]
      %v217 = vld [vmem:[%s165 + $0x170] sm:$0xff]
      %v218 = vld [vmem:[%s165 + $0x178] sm:$0xff]
      %v219 = vld [vmem:[%s165 + $0x180] sm:$0xff]
      %v220 = vld [vmem:[%s165 + $0x188] sm:$0xff]
      %v221 = vld [vmem:[%s165 + $0x190] sm:$0xff]
      %v222 = vld [vmem:[%s165 + $0x198] sm:$0xff]
      %v223 = vld [vmem:[%s165 + $0x1a0] sm:$0xff]
      %v224 = vld [vmem:[%s165 + $0x1a8] sm:$0xff]
      %v225 = vld [vmem:[%s165 + $0x1b0] sm:$0xff]
      %v226 = vld [vmem:[%s165 + $0x1b8] sm:$0xff]
      %v227 = vld [vmem:[%s165 + $0x1c0] sm:$0xff]
      %v228 = vld [vmem:[%s165 + $0x1c8] sm:$0xff]
      %v229 = vld [vmem:[%s165 + $0x1d0] sm:$0xff]
      %v230 = vld [vmem:[%s165 + $0x1d8] sm:$0xff]
      %v231 = vld [vmem:[%s165 + $0x1e0] sm:$0xff]
      %v232 = vld [vmem:[%s165 + $0x1e8] sm:$0xff]
      %v233 = vld [vmem:[%s165 + $0x1f0] sm:$0xff]
      %v234 = vld [vmem:[%s165 + $0x1f8] sm:$0xff]
      %v235 = vld [vmem:[%s165 + $0x200] sm:$0xff]
      %v236 = vld [vmem:[%s165 + $0x208] sm:$0xff]
      %v237 = vld [vmem:[%s165 + $0x210] sm:$0xff]
      %v238 = vld [vmem:[%s165 + $0x218] sm:$0xff]
      %v239 = vld [vmem:[%s165 + $0x220] sm:$0xff]
      %v240 = vld [vmem:[%s165 + $0x228] sm:$0xff]
      %v241 = vld [vmem:[%s165 + $0x230] sm:$0xff]
      %v242 = vld [vmem:[%s165 + $0x238] sm:$0xff]
      %v243 = vld [vmem:[%s165 + $0x240] sm:$0xff]
      %v244 = vld [vmem:[%s165 + $0x248] sm:$0xff]
      %v245 = vld [vmem:[%s165 + $0x250] sm:$0xff]
      %v246 = vld [vmem:[%s165 + $0x258] sm:$0xff]
      %v247 = vld [vmem:[%s165 + $0x260] sm:$0xff]
      %v248 = vld [vmem:[%s165 + $0x268] sm:$0xff]
      %v249 = vld [vmem:[%s165 + $0x270] sm:$0xff]
      %v250 = vld [vmem:[%s165 + $0x278] sm:$0xff]
      %v251 = vld [vmem:[%s165 + $0x280] sm:$0xff]
      %v252 = vld [vmem:[%s165 + $0x288] sm:$0xff]
      %v253 = vld [vmem:[%s165 + $0x290] sm:$0xff]
      %v254 = vld [vmem:[%s165 + $0x298] sm:$0xff]
      %v255 = vld [vmem:[%s165 + $0x2a0] sm:$0xff]
      %v256 = vld [vmem:[%s165 + $0x2a8] sm:$0xff]
      %v257 = vld [vmem:[%s165 + $0x2b0] sm:$0xff]
      %v258 = vld [vmem:[%s165 + $0x2b8] sm:$0xff]
      %v259 = vld [vmem:[%s165 + $0x2c0] sm:$0xff]
      %v260 = vld [vmem:[%s165 + $0x2c8] sm:$0xff]
      %v261 = vld [vmem:[%s165 + $0x2d0] sm:$0xff]
      %v262 = vld [vmem:[%s165 + $0x2d8] sm:$0xff]
      %v263 = vld [vmem:[%s165 + $0x2e0] sm:$0xff]
      %v264 = vld [vmem:[%s165 + $0x2e8] sm:$0xff]
      %v265 = vld [vmem:[%s165 + $0x2f0] sm:$0xff]
      %v266 = vld [vmem:[%s165 + $0x2f8] sm:$0xff]
      %v267 = vld [vmem:[%s165 + $0x300] sm:$0xff]
      %v268 = vld [vmem:[%s165 + $0x308] sm:$0xff]
      %v269 = vld [vmem:[%s165 + $0x310] sm:$0xff]
      %v270 = vld [vmem:[%s165 + $0x318] sm:$0xff]
      %v271 = vld [vmem:[%s165 + $0x320] sm:$0xff]
      %v272 = vld [vmem:[%s165 + $0x328] sm:$0xff]
      %v273 = vld [vmem:[%s165 + $0x330] sm:$0xff]
      %v274 = vld [vmem:[%s165 + $0x338] sm:$0xff]
      %v275 = vld [vmem:[%s165 + $0x340] sm:$0xff]
      %v276 = vld [vmem:[%s165 + $0x348] sm:$0xff]
      %v277 = vld [vmem:[%s165 + $0x350] sm:$0xff]
      %v278 = vld [vmem:[%s165 + $0x358] sm:$0xff]
      %v279 = vld [vmem:[%s165 + $0x360] sm:$0xff]
      %v280 = vld [vmem:[%s165 + $0x368] sm:$0xff]
      %v281 = vld [vmem:[%s165 + $0x370] sm:$0xff]
      %v282 = vld [vmem:[%s165 + $0x378] sm:$0xff]
      %v283 = vld [vmem:[%s165 + $0x380] sm:$0xff]
      %v284 = vld [vmem:[%s165 + $0x388] sm:$0xff]
      %v285 = vld [vmem:[%s165 + $0x390] sm:$0xff]
      %v286 = vld [vmem:[%s165 + $0x398] sm:$0xff]
      %v287 = vld [vmem:[%s165 + $0x3a0] sm:$0xff]
      %v288 = vld [vmem:[%s165 + $0x3a8] sm:$0xff]
      %v289 = vld [vmem:[%s165 + $0x3b0] sm:$0xff]
      %v290 = vld [vmem:[%s165 + $0x3b8] sm:$0xff]
      %v291 = vld [vmem:[%s165 + $0x3c0] sm:$0xff]
      %v292 = vld [vmem:[%s165 + $0x3c8] sm:$0xff]
      %v293 = vld [vmem:[%s165 + $0x3d0] sm:$0xff]
      %v294 = vld [vmem:[%s165 + $0x3d8] sm:$0xff]
      %v295 = vld [vmem:[%s165 + $0x3e0] sm:$0xff]
      %v296 = vld [vmem:[%s165 + $0x3e8] sm:$0xff]
      %v297 = vld [vmem:[%s165 + $0x3f0] sm:$0xff]
      %v298 = vld [vmem:[%s165 + $0x3f8] sm:$0xff]
      %v299 = vld [vmem:[%s1] sm:$0x1]
      %v301 = vlaneseq
      %v302 = vshrl.u32 %v301, 7
      %v303 = vsub.s32 0, %v302
      %v304 = vrot.slane %v299, %v303
      %v306 = vmul.f32 %v171, %v304
      %v307 = vmul.f32 %v172, %v304
      %v308 = vmul.f32 %v173, %v304
      %v309 = vmul.f32 %v174, %v304
      %v310 = vmul.f32 %v175, %v304
      %v311 = vmul.f32 %v176, %v304
      %v312 = vmul.f32 %v177, %v304
      %v313 = vmul.f32 %v178, %v304
      %v314 = vmul.f32 %v179, %v304
      %v315 = vmul.f32 %v180, %v304
      %v316 = vmul.f32 %v181, %v304
      %v317 = vmul.f32 %v182, %v304
      %v318 = vmul.f32 %v183, %v304
      %v319 = vmul.f32 %v184, %v304
      %v320 = vmul.f32 %v185, %v304
      %v321 = vmul.f32 %v186, %v304
      %v322 = vmul.f32 %v187, %v304
      %v323 = vmul.f32 %v188, %v304
      %v324 = vmul.f32 %v189, %v304
      %v325 = vmul.f32 %v190, %v304
      %v326 = vmul.f32 %v191, %v304
      %v327 = vmul.f32 %v192, %v304
      %v328 = vmul.f32 %v193, %v304
      %v329 = vmul.f32 %v194, %v304
      %v330 = vmul.f32 %v195, %v304
      %v331 = vmul.f32 %v196, %v304
      %v332 = vmul.f32 %v197, %v304
      %v333 = vmul.f32 %v198, %v304
      %v334 = vmul.f32 %v199, %v304
      %v335 = vmul.f32 %v200, %v304
      %v336 = vmul.f32 %v201, %v304
      %v337 = vmul.f32 %v202, %v304
      %v338 = vmul.f32 %v203, %v304
      %v339 = vmul.f32 %v204, %v304
      %v340 = vmul.f32 %v205, %v304
      %v341 = vmul.f32 %v206, %v304
      %v342 = vmul.f32 %v207, %v304
      %v343 = vmul.f32 %v208, %v304
      %v344 = vmul.f32 %v209, %v304
      %v345 = vmul.f32 %v210, %v304
      %v346 = vmul.f32 %v211, %v304
      %v347 = vmul.f32 %v212, %v304
      %v348 = vmul.f32 %v213, %v304
      %v349 = vmul.f32 %v214, %v304
      %v350 = vmul.f32 %v215, %v304
      %v351 = vmul.f32 %v216, %v304
      %v352 = vmul.f32 %v217, %v304
      %v353 = vmul.f32 %v218, %v304
      %v354 = vmul.f32 %v219, %v304
      %v355 = vmul.f32 %v220, %v304
      %v356 = vmul.f32 %v221, %v304
      %v357 = vmul.f32 %v222, %v304
      %v358 = vmul.f32 %v223, %v304
      %v359 = vmul.f32 %v224, %v304
      %v360 = vmul.f32 %v225, %v304
      %v361 = vmul.f32 %v226, %v304
      %v362 = vmul.f32 %v227, %v304
      %v363 = vmul.f32 %v228, %v304
      %v364 = vmul.f32 %v229, %v304
      %v365 = vmul.f32 %v230, %v304
      %v366 = vmul.f32 %v231, %v304
      %v367 = vmul.f32 %v232, %v304
      %v368 = vmul.f32 %v233, %v304
      %v369 = vmul.f32 %v234, %v304
      %v370 = vmul.f32 %v235, %v304
      %v371 = vmul.f32 %v236, %v304
      %v372 = vmul.f32 %v237, %v304
      %v373 = vmul.f32 %v238, %v304
      %v374 = vmul.f32 %v239, %v304
      %v375 = vmul.f32 %v240, %v304
      %v376 = vmul.f32 %v241, %v304
      %v377 = vmul.f32 %v242, %v304
      %v378 = vmul.f32 %v243, %v304
      %v379 = vmul.f32 %v244, %v304
      %v380 = vmul.f32 %v245, %v304
      %v381 = vmul.f32 %v246, %v304
      %v382 = vmul.f32 %v247, %v304
      %v383 = vmul.f32 %v248, %v304
      %v384 = vmul.f32 %v249, %v304
      %v385 = vmul.f32 %v250, %v304
      %v386 = vmul.f32 %v251, %v304
      %v387 = vmul.f32 %v252, %v304
      %v388 = vmul.f32 %v253, %v304
      %v389 = vmul.f32 %v254, %v304
      %v390 = vmul.f32 %v255, %v304
      %v391 = vmul.f32 %v256, %v304
      %v392 = vmul.f32 %v257, %v304
      %v393 = vmul.f32 %v258, %v304
      %v394 = vmul.f32 %v259, %v304
      %v395 = vmul.f32 %v260, %v304
      %v396 = vmul.f32 %v261, %v304
      %v397 = vmul.f32 %v262, %v304
      %v398 = vmul.f32 %v263, %v304
      %v399 = vmul.f32 %v264, %v304
      %v400 = vmul.f32 %v265, %v304
      %v401 = vmul.f32 %v266, %v304
      %v402 = vmul.f32 %v267, %v304
      %v403 = vmul.f32 %v268, %v304
      %v404 = vmul.f32 %v269, %v304
      %v405 = vmul.f32 %v270, %v304
      %v406 = vmul.f32 %v271, %v304
      %v407 = vmul.f32 %v272, %v304
      %v408 = vmul.f32 %v273, %v304
      %v409 = vmul.f32 %v274, %v304
      %v410 = vmul.f32 %v275, %v304
      %v411 = vmul.f32 %v276, %v304
      %v412 = vmul.f32 %v277, %v304
      %v413 = vmul.f32 %v278, %v304
      %v414 = vmul.f32 %v279, %v304
      %v415 = vmul.f32 %v280, %v304
      %v416 = vmul.f32 %v281, %v304
      %v417 = vmul.f32 %v282, %v304
      %v418 = vmul.f32 %v283, %v304
      %v419 = vmul.f32 %v284, %v304
      %v420 = vmul.f32 %v285, %v304
      %v421 = vmul.f32 %v286, %v304
      %v422 = vmul.f32 %v287, %v304
      %v423 = vmul.f32 %v288, %v304
      %v424 = vmul.f32 %v289, %v304
      %v425 = vmul.f32 %v290, %v304
      %v426 = vmul.f32 %v291, %v304
      %v427 = vmul.f32 %v292, %v304
      %v428 = vmul.f32 %v293, %v304
      %v429 = vmul.f32 %v294, %v304
      %v430 = vmul.f32 %v295, %v304
      %v431 = vmul.f32 %v296, %v304
      %v432 = vmul.f32 %v297, %v304
      %v433 = vmul.f32 %v298, %v304
      %v434 = vld [vmem:[%s2] sm:$0x1]
      %v436 = vlaneseq
      %v437 = vshrl.u32 %v436, 7
      %v438 = vsub.s32 0, %v437
      %v439 = vrot.slane %v434, %v438
      %v441 = vadd.f32 %v306, %v439
      %v442 = vadd.f32 %v307, %v439
      %v443 = vadd.f32 %v308, %v439
      %v444 = vadd.f32 %v309, %v439
      %v445 = vadd.f32 %v310, %v439
      %v446 = vadd.f32 %v311, %v439
      %v447 = vadd.f32 %v312, %v439
      %v448 = vadd.f32 %v313, %v439
      %v449 = vadd.f32 %v314, %v439
      %v450 = vadd.f32 %v315, %v439
      %v451 = vadd.f32 %v316, %v439
      %v452 = vadd.f32 %v317, %v439
      %v453 = vadd.f32 %v318, %v439
      %v454 = vadd.f32 %v319, %v439
      %v455 = vadd.f32 %v320, %v439
      %v456 = vadd.f32 %v321, %v439
      %v457 = vadd.f32 %v322, %v439
      %v458 = vadd.f32 %v323, %v439
      %v459 = vadd.f32 %v324, %v439
      %v460 = vadd.f32 %v325, %v439
      %v461 = vadd.f32 %v326, %v439
      %v462 = vadd.f32 %v327, %v439
      %v463 = vadd.f32 %v328, %v439
      %v464 = vadd.f32 %v329, %v439
      %v465 = vadd.f32 %v330, %v439
      %v466 = vadd.f32 %v331, %v439
      %v467 = vadd.f32 %v332, %v439
      %v468 = vadd.f32 %v333, %v439
      %v469 = vadd.f32 %v334, %v439
      %v470 = vadd.f32 %v335, %v439
      %v471 = vadd.f32 %v336, %v439
      %v472 = vadd.f32 %v337, %v439
      %v473 = vadd.f32 %v338, %v439
      %v474 = vadd.f32 %v339, %v439
      %v475 = vadd.f32 %v340, %v439
      %v476 = vadd.f32 %v341, %v439
      %v477 = vadd.f32 %v342, %v439
      %v478 = vadd.f32 %v343, %v439
      %v479 = vadd.f32 %v344, %v439
      %v480 = vadd.f32 %v345, %v439
      %v481 = vadd.f32 %v346, %v439
      %v482 = vadd.f32 %v347, %v439
      %v483 = vadd.f32 %v348, %v439
      %v484 = vadd.f32 %v349, %v439
      %v485 = vadd.f32 %v350, %v439
      %v486 = vadd.f32 %v351, %v439
      %v487 = vadd.f32 %v352, %v439
      %v488 = vadd.f32 %v353, %v439
      %v489 = vadd.f32 %v354, %v439
      %v490 = vadd.f32 %v355, %v439
      %v491 = vadd.f32 %v356, %v439
      %v492 = vadd.f32 %v357, %v439
      %v493 = vadd.f32 %v358, %v439
      %v494 = vadd.f32 %v359, %v439
      %v495 = vadd.f32 %v360, %v439
      %v496 = vadd.f32 %v361, %v439
      %v497 = vadd.f32 %v362, %v439
      %v498 = vadd.f32 %v363, %v439
      %v499 = vadd.f32 %v364, %v439
      %v500 = vadd.f32 %v365, %v439
      %v501 = vadd.f32 %v366, %v439
      %v502 = vadd.f32 %v367, %v439
      %v503 = vadd.f32 %v368, %v439
      %v504 = vadd.f32 %v369, %v439
      %v505 = vadd.f32 %v370, %v439
      %v506 = vadd.f32 %v371, %v439
      %v507 = vadd.f32 %v372, %v439
      %v508 = vadd.f32 %v373, %v439
      %v509 = vadd.f32 %v374, %v439
      %v510 = vadd.f32 %v375, %v439
      %v511 = vadd.f32 %v376, %v439
      %v512 = vadd.f32 %v377, %v439
      %v513 = vadd.f32 %v378, %v439
      %v514 = vadd.f32 %v379, %v439
      %v515 = vadd.f32 %v380, %v439
      %v516 = vadd.f32 %v381, %v439
      %v517 = vadd.f32 %v382, %v439
      %v518 = vadd.f32 %v383, %v439
      %v519 = vadd.f32 %v384, %v439
      %v520 = vadd.f32 %v385, %v439
      %v521 = vadd.f32 %v386, %v439
      %v522 = vadd.f32 %v387, %v439
      %v523 = vadd.f32 %v388, %v439
      %v524 = vadd.f32 %v389, %v439
      %v525 = vadd.f32 %v390, %v439
      %v526 = vadd.f32 %v391, %v439
      %v527 = vadd.f32 %v392, %v439
      %v528 = vadd.f32 %v393, %v439
      %v529 = vadd.f32 %v394, %v439
      %v530 = vadd.f32 %v395, %v439
      %v531 = vadd.f32 %v396, %v439
      %v532 = vadd.f32 %v397, %v439
      %v533 = vadd.f32 %v398, %v439
      %v534 = vadd.f32 %v399, %v439
      %v535 = vadd.f32 %v400, %v439
      %v536 = vadd.f32 %v401, %v439
      %v537 = vadd.f32 %v402, %v439
      %v538 = vadd.f32 %v403, %v439
      %v539 = vadd.f32 %v404, %v439
      %v540 = vadd.f32 %v405, %v439
      %v541 = vadd.f32 %v406, %v439
      %v542 = vadd.f32 %v407, %v439
      %v543 = vadd.f32 %v408, %v439
      %v544 = vadd.f32 %v409, %v439
      %v545 = vadd.f32 %v410, %v439
      %v546 = vadd.f32 %v411, %v439
      %v547 = vadd.f32 %v412, %v439
      %v548 = vadd.f32 %v413, %v439
      %v549 = vadd.f32 %v414, %v439
      %v550 = vadd.f32 %v415, %v439
      %v551 = vadd.f32 %v416, %v439
      %v552 = vadd.f32 %v417, %v439
      %v553 = vadd.f32 %v418, %v439
      %v554 = vadd.f32 %v419, %v439
      %v555 = vadd.f32 %v420, %v439
      %v556 = vadd.f32 %v421, %v439
      %v557 = vadd.f32 %v422, %v439
      %v558 = vadd.f32 %v423, %v439
      %v559 = vadd.f32 %v424, %v439
      %v560 = vadd.f32 %v425, %v439
      %v561 = vadd.f32 %v426, %v439
      %v562 = vadd.f32 %v427, %v439
      %v563 = vadd.f32 %v428, %v439
      %v564 = vadd.f32 %v429, %v439
      %v565 = vadd.f32 %v430, %v439
      %v566 = vadd.f32 %v431, %v439
      %v567 = vadd.f32 %v432, %v439
      %v568 = vadd.f32 %v433, %v439
      %569 = vst [vmem:[%s170] sm:$0xff] %v441
      %570 = vst [vmem:[%s170 + $0x8] sm:$0xff] %v442
      %571 = vst [vmem:[%s170 + $0x10] sm:$0xff] %v443
      %572 = vst [vmem:[%s170 + $0x18] sm:$0xff] %v444
      %573 = vst [vmem:[%s170 + $0x20] sm:$0xff] %v445
      %574 = vst [vmem:[%s170 + $0x28] sm:$0xff] %v446
      %575 = vst [vmem:[%s170 + $0x30] sm:$0xff] %v447
      %576 = vst [vmem:[%s170 + $0x38] sm:$0xff] %v448
      %577 = vst [vmem:[%s170 + $0x40] sm:$0xff] %v449
      %578 = vst [vmem:[%s170 + $0x48] sm:$0xff] %v450
      %579 = vst [vmem:[%s170 + $0x50] sm:$0xff] %v451
      %580 = vst [vmem:[%s170 + $0x58] sm:$0xff] %v452
      %581 = vst [vmem:[%s170 + $0x60] sm:$0xff] %v453
      %582 = vst [vmem:[%s170 + $0x68] sm:$0xff] %v454
      %583 = vst [vmem:[%s170 + $0x70] sm:$0xff] %v455
      %584 = vst [vmem:[%s170 + $0x78] sm:$0xff] %v456
      %585 = vst [vmem:[%s170 + $0x80] sm:$0xff] %v457
      %586 = vst [vmem:[%s170 + $0x88] sm:$0xff] %v458
      %587 = vst [vmem:[%s170 + $0x90] sm:$0xff] %v459
      %588 = vst [vmem:[%s170 + $0x98] sm:$0xff] %v460
      %589 = vst [vmem:[%s170 + $0xa0] sm:$0xff] %v461
      %590 = vst [vmem:[%s170 + $0xa8] sm:$0xff] %v462
      %591 = vst [vmem:[%s170 + $0xb0] sm:$0xff] %v463
      %592 = vst [vmem:[%s170 + $0xb8] sm:$0xff] %v464
      %593 = vst [vmem:[%s170 + $0xc0] sm:$0xff] %v465
      %594 = vst [vmem:[%s170 + $0xc8] sm:$0xff] %v466
      %595 = vst [vmem:[%s170 + $0xd0] sm:$0xff] %v467
      %596 = vst [vmem:[%s170 + $0xd8] sm:$0xff] %v468
      %597 = vst [vmem:[%s170 + $0xe0] sm:$0xff] %v469
      %598 = vst [vmem:[%s170 + $0xe8] sm:$0xff] %v470
      %599 = vst [vmem:[%s170 + $0xf0] sm:$0xff] %v471
      %600 = vst [vmem:[%s170 + $0xf8] sm:$0xff] %v472
      %601 = vst [vmem:[%s170 + $0x100] sm:$0xff] %v473
      %602 = vst [vmem:[%s170 + $0x108] sm:$0xff] %v474
      %603 = vst [vmem:[%s170 + $0x110] sm:$0xff] %v475
      %604 = vst [vmem:[%s170 + $0x118] sm:$0xff] %v476
      %605 = vst [vmem:[%s170 + $0x120] sm:$0xff] %v477
      %606 = vst [vmem:[%s170 + $0x128] sm:$0xff] %v478
      %607 = vst [vmem:[%s170 + $0x130] sm:$0xff] %v479
      %608 = vst [vmem:[%s170 + $0x138] sm:$0xff] %v480
      %609 = vst [vmem:[%s170 + $0x140] sm:$0xff] %v481
      %610 = vst [vmem:[%s170 + $0x148] sm:$0xff] %v482
      %611 = vst [vmem:[%s170 + $0x150] sm:$0xff] %v483
      %612 = vst [vmem:[%s170 + $0x158] sm:$0xff] %v484
      %613 = vst [vmem:[%s170 + $0x160] sm:$0xff] %v485
      %614 = vst [vmem:[%s170 + $0x168] sm:$0xff] %v486
      %615 = vst [vmem:[%s170 + $0x170] sm:$0xff] %v487
      %616 = vst [vmem:[%s170 + $0x178] sm:$0xff] %v488
      %617 = vst [vmem:[%s170 + $0x180] sm:$0xff] %v489
      %618 = vst [vmem:[%s170 + $0x188] sm:$0xff] %v490
      %619 = vst [vmem:[%s170 + $0x190] sm:$0xff] %v491
      %620 = vst [vmem:[%s170 + $0x198] sm:$0xff] %v492
      %621 = vst [vmem:[%s170 + $0x1a0] sm:$0xff] %v493
      %622 = vst [vmem:[%s170 + $0x1a8] sm:$0xff] %v494
      %623 = vst [vmem:[%s170 + $0x1b0] sm:$0xff] %v495
      %624 = vst [vmem:[%s170 + $0x1b8] sm:$0xff] %v496
      %625 = vst [vmem:[%s170 + $0x1c0] sm:$0xff] %v497
      %626 = vst [vmem:[%s170 + $0x1c8] sm:$0xff] %v498
      %627 = vst [vmem:[%s170 + $0x1d0] sm:$0xff] %v499
      %628 = vst [vmem:[%s170 + $0x1d8] sm:$0xff] %v500
      %629 = vst [vmem:[%s170 + $0x1e0] sm:$0xff] %v501
      %630 = vst [vmem:[%s170 + $0x1e8] sm:$0xff] %v502
      %631 = vst [vmem:[%s170 + $0x1f0] sm:$0xff] %v503
      %632 = vst [vmem:[%s170 + $0x1f8] sm:$0xff] %v504
      %633 = vst [vmem:[%s170 + $0x200] sm:$0xff] %v505
      %634 = vst [vmem:[%s170 + $0x208] sm:$0xff] %v506
      %635 = vst [vmem:[%s170 + $0x210] sm:$0xff] %v507
      %636 = vst [vmem:[%s170 + $0x218] sm:$0xff] %v508
      %637 = vst [vmem:[%s170 + $0x220] sm:$0xff] %v509
      %638 = vst [vmem:[%s170 + $0x228] sm:$0xff] %v510
      %639 = vst [vmem:[%s170 + $0x230] sm:$0xff] %v511
      %640 = vst [vmem:[%s170 + $0x238] sm:$0xff] %v512
      %641 = vst [vmem:[%s170 + $0x240] sm:$0xff] %v513
      %642 = vst [vmem:[%s170 + $0x248] sm:$0xff] %v514
      %643 = vst [vmem:[%s170 + $0x250] sm:$0xff] %v515
      %644 = vst [vmem:[%s170 + $0x258] sm:$0xff] %v516
      %645 = vst [vmem:[%s170 + $0x260] sm:$0xff] %v517
      %646 = vst [vmem:[%s170 + $0x268] sm:$0xff] %v518
      %647 = vst [vmem:[%s170 + $0x270] sm:$0xff] %v519
      %648 = vst [vmem:[%s170 + $0x278] sm:$0xff] %v520
      %649 = vst [vmem:[%s170 + $0x280] sm:$0xff] %v521
      %650 = vst [vmem:[%s170 + $0x288] sm:$0xff] %v522
      %651 = vst [vmem:[%s170 + $0x290] sm:$0xff] %v523
      %652 = vst [vmem:[%s170 + $0x298] sm:$0xff] %v524
      %653 = vst [vmem:[%s170 + $0x2a0] sm:$0xff] %v525
      %654 = vst [vmem:[%s170 + $0x2a8] sm:$0xff] %v526
      %655 = vst [vmem:[%s170 + $0x2b0] sm:$0xff] %v527
      %656 = vst [vmem:[%s170 + $0x2b8] sm:$0xff] %v528
      %657 = vst [vmem:[%s170 + $0x2c0] sm:$0xff] %v529
      %658 = vst [vmem:[%s170 + $0x2c8] sm:$0xff] %v530
      %659 = vst [vmem:[%s170 + $0x2d0] sm:$0xff] %v531
      %660 = vst [vmem:[%s170 + $0x2d8] sm:$0xff] %v532
      %661 = vst [vmem:[%s170 + $0x2e0] sm:$0xff] %v533
      %662 = vst [vmem:[%s170 + $0x2e8] sm:$0xff] %v534
      %663 = vst [vmem:[%s170 + $0x2f0] sm:$0xff] %v535
      %664 = vst [vmem:[%s170 + $0x2f8] sm:$0xff] %v536
      %665 = vst [vmem:[%s170 + $0x300] sm:$0xff] %v537
      %666 = vst [vmem:[%s170 + $0x308] sm:$0xff] %v538
      %667 = vst [vmem:[%s170 + $0x310] sm:$0xff] %v539
      %668 = vst [vmem:[%s170 + $0x318] sm:$0xff] %v540
      %669 = vst [vmem:[%s170 + $0x320] sm:$0xff] %v541
      %670 = vst [vmem:[%s170 + $0x328] sm:$0xff] %v542
      %671 = vst [vmem:[%s170 + $0x330] sm:$0xff] %v543
      %672 = vst [vmem:[%s170 + $0x338] sm:$0xff] %v544
      %673 = vst [vmem:[%s170 + $0x340] sm:$0xff] %v545
      %674 = vst [vmem:[%s170 + $0x348] sm:$0xff] %v546
      %675 = vst [vmem:[%s170 + $0x350] sm:$0xff] %v547
      %676 = vst [vmem:[%s170 + $0x358] sm:$0xff] %v548
      %677 = vst [vmem:[%s170 + $0x360] sm:$0xff] %v549
      %678 = vst [vmem:[%s170 + $0x368] sm:$0xff] %v550
      %679 = vst [vmem:[%s170 + $0x370] sm:$0xff] %v551
      %680 = vst [vmem:[%s170 + $0x378] sm:$0xff] %v552
      %681 = vst [vmem:[%s170 + $0x380] sm:$0xff] %v553
      %682 = vst [vmem:[%s170 + $0x388] sm:$0xff] %v554
      %683 = vst [vmem:[%s170 + $0x390] sm:$0xff] %v555
      %684 = vst [vmem:[%s170 + $0x398] sm:$0xff] %v556
      %685 = vst [vmem:[%s170 + $0x3a0] sm:$0xff] %v557
      %686 = vst [vmem:[%s170 + $0x3a8] sm:$0xff] %v558
      %687 = vst [vmem:[%s170 + $0x3b0] sm:$0xff] %v559
      %688 = vst [vmem:[%s170 + $0x3b8] sm:$0xff] %v560
      %689 = vst [vmem:[%s170 + $0x3c0] sm:$0xff] %v561
      %690 = vst [vmem:[%s170 + $0x3c8] sm:$0xff] %v562
      %691 = vst [vmem:[%s170 + $0x3d0] sm:$0xff] %v563
      %692 = vst [vmem:[%s170 + $0x3d8] sm:$0xff] %v564
      %693 = vst [vmem:[%s170 + $0x3e0] sm:$0xff] %v565
      %694 = vst [vmem:[%s170 + $0x3e8] sm:$0xff] %v566
      %695 = vst [vmem:[%s170 + $0x3f0] sm:$0xff] %v567
      %696 = vst [vmem:[%s170 + $0x3f8] sm:$0xff] %v568
      %p697 = scmp.lt.s32.totalorder %s14, 1
      %s698 = scalar_select %p697, %s14, 1
      %s699 = smul.addr %s698, 128
      %s700 = smul.addr %s699, 8
      %s701 = scalar_lea.vmem %s3, %s700
      // Predicated region
      $region33: #{conv_transpose_block_forward.3} parent=31 // pred_check
        %p702 = pneg %p100
      $region34: #{conv_transpose_block_forward.3} parent=31 // pred_check_branch
        %704 = sbr.rel (%p702) target = $region36
      $region35: #{conv_transpose_block_forward.3} parent=31 // pred_region
        _
      $region36: #{conv_transpose_block_forward.3} parent=31 // pred_fallthru
        _
    $region32: #{conv_transpose_block_forward.3} parent=5 // pred_fallthru
      _
    %p705 = scmp.le.s32.totalorder 2, %s9
    // Predicated region
    $region37: #{conv_transpose_block_forward.3} parent=5 // pred_check
      %p706 = pneg %p705
    $region38: #{conv_transpose_block_forward.3} parent=5 // pred_check_branch
      %708 = sbr.rel (%p706) target = $region40
    $region39: #{conv_transpose_block_forward.3} parent=5 // pred_region
      %s709 = ssub.s32 %s9, 2
      // Predicated region
      $region41: #{conv_transpose_block_forward.3} parent=39 // pred_check
        %p710 = pneg %p106
      $region42: #{conv_transpose_block_forward.3} parent=39 // pred_check_branch
        %712 = sbr.rel (%p710) target = $region44
      $region43: #{conv_transpose_block_forward.3} parent=39 // pred_region
        %p713 = scmp.lt.s32.totalorder %s15, 1
        %s714 = scalar_select %p713, %s15, 1
        %s715 = smul.addr %s714, 128
        %s716 = smul.addr %s715, 8
        %s717 = scalar_lea.vmem %s3, %s716
      $region44: #{conv_transpose_block_forward.3} parent=39 // pred_fallthru
        _
    $region40: #{conv_transpose_block_forward.3} parent=5 // pred_fallthru
      _
  $region6: #{conv_transpose_block_forward.3} parent=0 // loop_footer
    %s13 = sadd.s32 1, %s9
  $region7: #{conv_transpose_block_forward.3} parent=0 // loop_footer_branch
    %8 = sbr.rel target = $region3
  $region8: #{conv_transpose_block_forward.3} parent=0 // loop_exit
    _

// kernel: conv_transpose_block_forward.2
$region0: #{conv_transpose_block_forward.2}
  #allocation0 [shape = 'u32[]', space=smem, size = 0x4, offset = 0x4, fixed_abs, tag = 'smem constant byte address 0x4 - core index']
  #allocation1 [shape = 'u32[144,128]{1,0:T(1,128)}', space=vmem, size = 0x12000, scoped, tag = 'internal scratch']
  #allocation2 [shape = 'bf16[256,128]{1,0:T(8,128)(2,1)}', space=vmem, size = 0x10000, scoped, tag = 'scratch operand']
  #allocation3 [shape = 'f32[16,2,16,256]{3,2,1,0:T(8,128)}', space=vmem, size = 0x80000, scoped, tag = 'scratch operand']
  %s0 = inlined_call_operand.vmem [shape: bf16[2,17,17,32], index: 0, kind: input, shape index: {}]
  %s1 = inlined_call_operand.vmem [shape: bf16[2,128,256], index: 1, kind: input, shape index: {}]
  %s2 = inlined_call_operand.vmem [shape: f32[1,256], index: 2, kind: input, shape index: {}]
  %s3 = inlined_call_operand.vmem [shape: f32[2,32,16,256], index: 3, kind: output, shape index: {0}]
  %s4 = inlined_call_operand.vmem [shape: f32[2,1,2,256], index: 4, kind: output, shape index: {1}]
  %5 = xla_tuple %s3, %s4
  %s6 = sld [smem:[#allocation0]]
  $region53: #{conv_transpose_block_forward.2} parent=0
    _
  %s8 = ssub.s32 1, %s6
  %s9 = scalar_select 0, %s8, %s6
  loop: start=0, step=1, limit=4
  $region2: #{conv_transpose_block_forward.2} parent=0 // loop_pre_header
    _
  $region3: #{conv_transpose_block_forward.2} parent=0 // loop_header
    %s11 = sphi 0, %s15
    %p12 = scmp.ge.s32.totalorder %s11, 4
    %s18 = sphi 0, %s30
    %s19 = sphi 0, %s26
    %s20 = sphi 0, %s18
    %s21 = sphi 0, %s19
    %s22 = sphi 0, %s20
    %s23 = sphi 0, %s21
    %s33 = sphi 0, %s35
    %s36 = sphi 0, %s33
    %s37 = sphi 0, %s36
    %s53 = sphi 0, %s37
    %s57 = sphi 0, %s57
    %s59 = sphi 0, %s57
    %s60 = sphi 0, %s59
    %s74 = sphi 0, %s60
    %s78 = sphi 0, %s78
    %s80 = sphi 0, %s78
    %s81 = sphi 0, %s80
    %s95 = sphi 0, %s81
    %s103 = sphi 0, %s105
    %s106 = sphi 0, %s103
    %s107 = sphi 0, %s106
    %s123 = sphi 0, %s107
    %s131 = sphi 0, %s133
    %s134 = sphi 0, %s131
    %s135 = sphi 0, %s134
    %s151 = sphi 0, %s135
  $region4: #{conv_transpose_block_forward.2} parent=0 // loop_header_branch
    %14 = sbr.rel (%p12) target = $region8
  $region5: #{conv_transpose_block_forward.2} parent=0 // loop_body
    %s16 = ssub.s32 %s11, 1
    %s17 = ssub.s32 %s11, 2
    %s24 = sadd.s32 1, %s19
    %p25 = scmp.ge.s32.totalorder %s24, 1
    %s26 = scalar_select %p25, 0, %s24
    %s27 = sadd.s32 1, %s18
    %s28 = scalar_select %p25, %s27, %s18
    %p29 = scmp.ge.s32.totalorder %s28, 2
    %s30 = scalar_select %p29, 0, %s28
    %s31 = ssub.s32 %s18, %s30
    %p32 = scmp.eq.s32.totalorder %s31, 0
    %s34 = sadd.s32 %s33, 1
    %s35 = scalar_select %p32, %s33, %s34
    %p38 = pneg %p32
    %p39 = scmp.eq.s32.totalorder %s11, 1
    %p40 = por %p38, %p39
    %p41 = scmp.ne.s32.totalorder %s33, %s36
    %p42 = scmp.eq.s32.totalorder %s11, 0
    %p43 = por %p41, %p42
    %p44 = scmp.ne.s32.totalorder %s33, %s36
    %p45 = scmp.eq.s32.totalorder %s16, 1
    %p46 = por %p44, %p45
    %p47 = scmp.ne.s32.totalorder %s36, %s37
    %p48 = scmp.eq.s32.totalorder %s16, 0
    %p49 = por %p47, %p48
    %p50 = scmp.ne.s32.totalorder %s36, %s37
    %p51 = scmp.eq.s32.totalorder %s17, 1
    %p52 = por %p50, %p51
    %p54 = scmp.ne.s32.totalorder %s37, %s53
    %p55 = scmp.eq.s32.totalorder %s17, 0
    %p56 = por %p54, %p55
    %s58 = sadd.s32 %s57, 1
    %p61 = scmp.eq.s32.totalorder %s11, 1
    %p62 = scmp.ne.s32.totalorder %s57, %s59
    %p63 = scmp.eq.s32.totalorder %s11, 0
    %p64 = por %p62, %p63
    %p65 = scmp.ne.s32.totalorder %s57, %s59
    %p66 = scmp.eq.s32.totalorder %s16, 1
    %p67 = por %p65, %p66
    %p68 = scmp.ne.s32.totalorder %s59, %s60
    %p69 = scmp.eq.s32.totalorder %s16, 0
    %p70 = por %p68, %p69
    %p71 = scmp.ne.s32.totalorder %s59, %s60
    %p72 = scmp.eq.s32.totalorder %s17, 1
    %p73 = por %p71, %p72
    %p75 = scmp.ne.s32.totalorder %s60, %s74
    %p76 = scmp.eq.s32.totalorder %s17, 0
    %p77 = por %p75, %p76
    %s79 = sadd.s32 %s78, 1
    %p82 = scmp.eq.s32.totalorder %s11, 1
    %p83 = scmp.ne.s32.totalorder %s78, %s80
    %p84 = scmp.eq.s32.totalorder %s11, 0
    %p85 = por %p83, %p84
    %p86 = scmp.ne.s32.totalorder %s78, %s80
    %p87 = scmp.eq.s32.totalorder %s16, 1
    %p88 = por %p86, %p87
    %p89 = scmp.ne.s32.totalorder %s80, %s81
    %p90 = scmp.eq.s32.totalorder %s16, 0
    %p91 = por %p89, %p90
    %p92 = scmp.ne.s32.totalorder %s80, %s81
    %p93 = scmp.eq.s32.totalorder %s17, 1
    %p94 = por %p92, %p93
    %p96 = scmp.ne.s32.totalorder %s81, %s95
    %p97 = scmp.eq.s32.totalorder %s17, 0
    %p98 = por %p96, %p97
    %s99 = ssub.s32 %s18, %s30
    %s100 = ssub.s32 %s19, %s26
    %s101 = sor.u32 %s99, %s100
    %p102 = scmp.eq.s32.totalorder %s101, 0
    %s104 = sadd.s32 %s103, 1
    %s105 = scalar_select %p102, %s103, %s104
    %p108 = pneg %p102
    %p109 = scmp.eq.s32.totalorder %s11, 1
    %p110 = por %p108, %p109
    %p111 = scmp.ne.s32.totalorder %s103, %s106
    %p112 = scmp.eq.s32.totalorder %s11, 0
    %p113 = por %p111, %p112
    %p114 = scmp.ne.s32.totalorder %s103, %s106
    %p115 = scmp.eq.s32.totalorder %s16, 1
    %p116 = por %p114, %p115
    %p117 = scmp.ne.s32.totalorder %s106, %s107
    %p118 = scmp.eq.s32.totalorder %s16, 0
    %p119 = por %p117, %p118
    %p120 = scmp.ne.s32.totalorder %s106, %s107
    %p121 = scmp.eq.s32.totalorder %s17, 1
    %p122 = por %p120, %p121
    %p124 = scmp.ne.s32.totalorder %s107, %s123
    %p125 = scmp.eq.s32.totalorder %s17, 0
    %p126 = por %p124, %p125
    %s127 = ssub.s32 %s18, %s30
    %s128 = ssub.s32 %s19, %s26
    %s129 = sor.u32 %s127, %s128
    %p130 = scmp.eq.s32.totalorder %s129, 0
    %s132 = sadd.s32 %s131, 1
    %s133 = scalar_select %p130, %s131, %s132
    %p136 = pneg %p130
    %p137 = scmp.eq.s32.totalorder %s11, 1
    %p138 = por %p136, %p137
    %p139 = scmp.ne.s32.totalorder %s131, %s134
    %p140 = scmp.eq.s32.totalorder %s11, 0
    %p141 = por %p139, %p140
    %p142 = scmp.ne.s32.totalorder %s131, %s134
    %p143 = scmp.eq.s32.totalorder %s16, 1
    %p144 = por %p142, %p143
    %p145 = scmp.ne.s32.totalorder %s134, %s135
    %p146 = scmp.eq.s32.totalorder %s16, 0
    %p147 = por %p145, %p146
    %p148 = scmp.ne.s32.totalorder %s134, %s135
    %p149 = scmp.eq.s32.totalorder %s17, 1
    %p150 = por %p148, %p149
    %p152 = scmp.ne.s32.totalorder %s135, %s151
    %p153 = scmp.eq.s32.totalorder %s17, 0
    %p154 = por %p152, %p153
    %p155 = scmp.le.s32.totalorder 1, %s11
    %p156 = scmp.lt.s32.totalorder %s11, 3
    %p157 = pnand %p155, %p156
    %p158 = pneg %p157
    // Predicated region
    $region9: #{conv_transpose_block_forward.2} parent=5 // pred_check
      _
    $region10: #{conv_transpose_block_forward.2} parent=5 // pred_check_branch
      %160 = sbr.rel (%p157) target = $region12
    $region11: #{conv_transpose_block_forward.2} parent=5 // pred_region
      %s161 = ssub.s32 %s11, 1
      // Predicated region
      $region13: #{conv_transpose_block_forward.2} parent=11 // pred_check
        %p162 = pneg %p70
      $region14: #{conv_transpose_block_forward.2} parent=11 // pred_check_branch
        %164 = sbr.rel (%p162) target = $region16
      $region15: #{conv_transpose_block_forward.2} parent=11 // pred_region
        _
      $region16: #{conv_transpose_block_forward.2} parent=11 // pred_fallthru
        _
      // Predicated region
      $region17: #{conv_transpose_block_forward.2} parent=11 // pred_check
        %p165 = pneg %p91
      $region18: #{conv_transpose_block_forward.2} parent=11 // pred_check_branch
        %167 = sbr.rel (%p165) target = $region20
      $region19: #{conv_transpose_block_forward.2} parent=11 // pred_region
        _
      $region20: #{conv_transpose_block_forward.2} parent=11 // pred_fallthru
        _
    $region12: #{conv_transpose_block_forward.2} parent=5 // pred_fallthru
      _
    %p168 = scmp.lt.s32.totalorder %s11, 2
    // Predicated region
    $region21: #{conv_transpose_block_forward.2} parent=5 // pred_check
      %p169 = pneg %p168
    $region22: #{conv_transpose_block_forward.2} parent=5 // pred_check_branch
      %171 = sbr.rel (%p169) target = $region24
    $region23: #{conv_transpose_block_forward.2} parent=5 // pred_region
      // Predicated region
      $region25: #{conv_transpose_block_forward.2} parent=23 // pred_check
        %p172 = pneg %p43
      $region26: #{conv_transpose_block_forward.2} parent=23 // pred_check_branch
        %174 = sbr.rel (%p172) target = $region28
      $region27: #{conv_transpose_block_forward.2} parent=23 // pred_region
        %p175 = scmp.lt.s32.totalorder %s18, 1
        %s176 = scalar_select %p175, %s18, 1
        %s177 = smul.addr %s176, 51
        %s178 = smul.addr %s177, 4
        %s179 = scalar_lea.vmem %s0, %s178
      $region28: #{conv_transpose_block_forward.2} parent=23 // pred_fallthru
        _
    $region24: #{conv_transpose_block_forward.2} parent=5 // pred_fallthru
      _
    %p180 = scmp.le.s32.totalorder 1, %s11
    %p181 = scmp.lt.s32.totalorder %s11, 3
    %p182 = pnand %p180, %p181
    %p183 = pneg %p182
    // Predicated region
    $region29: #{conv_transpose_block_forward.2} parent=5 // pred_check
      _
    $region30: #{conv_transpose_block_forward.2} parent=5 // pred_check_branch
      %185 = sbr.rel (%p182) target = $region32
    $region31: #{conv_transpose_block_forward.2} parent=5 // pred_region
      %s186 = ssub.s32 %s11, 1
      %p187 = scmp.lt.s32.totalorder %s20, 1
      %s188 = scalar_select %p187, %s20, 1
      %s189 = smul.addr %s188, 51
      %s190 = smul.addr %s189, 4
      %s191 = scalar_lea.vmem %s0, %s190
      %p192 = pneg %p49
      %p193 = pneg %p46
      %p194 = pneg %p70
      %p195 = pneg %p67
      %p196 = pneg %p91
      %p197 = pneg %p88
      %p198 = pneg %p119
      %p199 = pneg %p116
      %s200 = smul.u32 32, %s21
      %p201 = scmp.lt.s32.totalorder %s20, 1
      %s202 = scalar_select %p201, %s20, 1
      %p203 = scmp.lt.s32.totalorder %s200, 31
      %s204 = scalar_select %p203, %s200, 31
      %s205 = smul.addr %s204, 4
      %s206 = smul.addr %s202, 128
      %s207 = sadd.s32 %s205, %s206
      %s208 = smul.addr %s207, 8
      %s209 = scalar_lea.vmem %s3, %s208
      %p210 = pneg %p147
      %p211 = pneg %p144
      %p212 = scmp.lt.s32.totalorder %s20, 1
      %s213 = scalar_select %p212, %s20, 1
      %p214 = scmp.lt.s32.totalorder %s21, 0
      %s215 = scalar_select %p214, %s21, 0
      %s216 = smul.addr %s215, 2
      %s217 = smul.addr %s213, 2
      %s218 = sadd.s32 %s216, %s217
      %s219 = smul.addr %s218, 2
      %s220 = scalar_lea.vmem %s4, %s219
      %p221 = scmp.lt.s32.totalorder %s20, 1
      %s222 = scalar_select %p221, %s20, 1
      %s223 = smul.addr %s222, 51
      %s224 = smul.addr %s223, 4
      %s225 = scalar_lea.vmem %s0, %s224
      %s226 = smul.u32 32, %s21
      %p227 = scmp.lt.s32.totalorder %s20, 1
      %s228 = scalar_select %p227, %s20, 1
      %p229 = scmp.lt.s32.totalorder %s226, 31
      %s230 = scalar_select %p229, %s226, 31
      %s231 = smul.addr %s230, 4
      %s232 = smul.addr %s228, 128
      %s233 = sadd.s32 %s231, %s232
      %s234 = smul.addr %s233, 8
      %s235 = scalar_lea.vmem %s3, %s234
      %s236 = smul.u32 32, %s21
      %p237 = scmp.lt.s32.totalorder %s20, 1
      %s238 = scalar_select %p237, %s20, 1
      %p239 = scmp.lt.s32.totalorder %s21, 0
      %s240 = scalar_select %p239, %s21, 0
      %s241 = smul.addr %s240, 2
      %s242 = smul.addr %s238, 2
      %s243 = sadd.s32 %s241, %s242
      %s244 = smul.addr %s243, 2
      %s245 = scalar_lea.vmem %s4, %s244
      %s247 = smul.u32 %s21, 16
      %s248 = smul.u32 %s247, 3
      %s249 = smul.addr %s248, 4
      %s250 = scalar_lea.vmem %s225, %s249
      %v251 = vld [vmem:[%s250] sm:$0xf]
      %v252 = vld [vmem:[%s250 + $0x4] sm:$0xf]
      %v253 = vld [vmem:[%s250 + $0xc] sm:$0xf]
      %v254 = vld [vmem:[%s250 + $0x10] sm:$0xf]
      %v255 = vld [vmem:[%s250 + $0x18] sm:$0xf]
      %v256 = vld [vmem:[%s250 + $0x1c] sm:$0xf]
      %v257 = vld [vmem:[%s250 + $0x24] sm:$0xf]
      %v258 = vld [vmem:[%s250 + $0x28] sm:$0xf]
      %v259 = vld [vmem:[%s250 + $0x30] sm:$0xf]
      %v260 = vld [vmem:[%s250 + $0x34] sm:$0xf]
      %v261 = vld [vmem:[%s250 + $0x3c] sm:$0xf]
      %v262 = vld [vmem:[%s250 + $0x40] sm:$0xf]
      %v263 = vld [vmem:[%s250 + $0x48] sm:$0xf]
      %v264 = vld [vmem:[%s250 + $0x4c] sm:$0xf]
      %v265 = vld [vmem:[%s250 + $0x54] sm:$0xf]
      %v266 = vld [vmem:[%s250 + $0x58] sm:$0xf]
      %v267 = vld [vmem:[%s250 + $0x60] sm:$0xf]
      %v268 = vld [vmem:[%s250 + $0x64] sm:$0xf]
      %v269 = vld [vmem:[%s250 + $0x6c] sm:$0xf]
      %v270 = vld [vmem:[%s250 + $0x70] sm:$0xf]
      %v271 = vld [vmem:[%s250 + $0x78] sm:$0xf]
      %v272 = vld [vmem:[%s250 + $0x7c] sm:$0xf]
      %v273 = vld [vmem:[%s250 + $0x84] sm:$0xf]
      %v274 = vld [vmem:[%s250 + $0x88] sm:$0xf]
      %v275 = vld [vmem:[%s250 + $0x90] sm:$0xf]
      %v276 = vld [vmem:[%s250 + $0x94] sm:$0xf]
      %v277 = vld [vmem:[%s250 + $0x9c] sm:$0xf]
      %v278 = vld [vmem:[%s250 + $0xa0] sm:$0xf]
      %v279 = vld [vmem:[%s250 + $0xa8] sm:$0xf]
      %v280 = vld [vmem:[%s250 + $0xac] sm:$0xf]
      %v281 = vld [vmem:[%s250 + $0xb4] sm:$0xf]
      %v282 = vld [vmem:[%s250 + $0xb8] sm:$0xf]
      %vm283 = vcmask 257024
      %284 = vst.msk [vmem:[#allocation2] sm:$0xf] %vm283, %v251
      %285 = vst.msk [vmem:[#allocation2 + $0x4] sm:$0xf] %vm283, %v252
      %286 = vst.msk [vmem:[#allocation2 + $0x8] sm:$0xf] %vm283, %v253
      %287 = vst.msk [vmem:[#allocation2 + $0xc] sm:$0xf] %vm283, %v254
      %288 = vst.msk [vmem:[#allocation2 + $0x10] sm:$0xf] %vm283, %v255
      %289 = vst.msk [vmem:[#allocation2 + $0x14] sm:$0xf] %vm283, %v256
      %290 = vst.msk [vmem:[#allocation2 + $0x18] sm:$0xf] %vm283, %v257
      %291 = vst.msk [vmem:[#allocation2 + $0x1c] sm:$0xf] %vm283, %v258
      %292 = vst.msk [vmem:[#allocation2 + $0x20] sm:$0xf] %vm283, %v259
      %293 = vst.msk [vmem:[#allocation2 + $0x24] sm:$0xf] %vm283, %v260
      %294 = vst.msk [vmem:[#allocation2 + $0x28] sm:$0xf] %vm283, %v261
      %295 = vst.msk [vmem:[#allocation2 + $0x2c] sm:$0xf] %vm283, %v262
      %296 = vst.msk [vmem:[#allocation2 + $0x30] sm:$0xf] %vm283, %v263
      %297 = vst.msk [vmem:[#allocation2 + $0x34] sm:$0xf] %vm283, %v264
      %298 = vst.msk [vmem:[#allocation2 + $0x38] sm:$0xf] %vm283, %v265
      %299 = vst.msk [vmem:[#allocation2 + $0x3c] sm:$0xf] %vm283, %v266
      %300 = vst.msk [vmem:[#allocation2 + $0x40] sm:$0xf] %vm283, %v267
      %301 = vst.msk [vmem:[#allocation2 + $0x44] sm:$0xf] %vm283, %v268
      %302 = vst.msk [vmem:[#allocation2 + $0x48] sm:$0xf] %vm283, %v269
      %303 = vst.msk [vmem:[#allocation2 + $0x4c] sm:$0xf] %vm283, %v270
      %304 = vst.msk [vmem:[#allocation2 + $0x50] sm:$0xf] %vm283, %v271
      %305 = vst.msk [vmem:[#allocation2 + $0x54] sm:$0xf] %vm283, %v272
      %306 = vst.msk [vmem:[#allocation2 + $0x58] sm:$0xf] %vm283, %v273
      %307 = vst.msk [vmem:[#allocation2 + $0x5c] sm:$0xf] %vm283, %v274
      %308 = vst.msk [vmem:[#allocation2 + $0x60] sm:$0xf] %vm283, %v275
      %309 = vst.msk [vmem:[#allocation2 + $0x64] sm:$0xf] %vm283, %v276
      %310 = vst.msk [vmem:[#allocation2 + $0x68] sm:$0xf] %vm283, %v277
      %311 = vst.msk [vmem:[#allocation2 + $0x6c] sm:$0xf] %vm283, %v278
      %312 = vst.msk [vmem:[#allocation2 + $0x70] sm:$0xf] %vm283, %v279
      %313 = vst.msk [vmem:[#allocation2 + $0x74] sm:$0xf] %vm283, %v280
      %314 = vst.msk [vmem:[#allocation2 + $0x78] sm:$0xf] %vm283, %v281
      %315 = vst.msk [vmem:[#allocation2 + $0x7c] sm:$0xf] %vm283, %v282
      %v316 = vld [vmem:[%s250] sm:$0xf]
      %v317 = vld [vmem:[%s250 + $0x4] sm:$0xf]
      %v318 = vld [vmem:[%s250 + $0x8] sm:$0x1]
      %v319 = vld [vmem:[%s250 + $0xc] sm:$0xf]
      %v320 = vld [vmem:[%s250 + $0x10] sm:$0xf]
      %v321 = vld [vmem:[%s250 + $0x14] sm:$0x1]
      %v322 = vld [vmem:[%s250 + $0x18] sm:$0xf]
      %v323 = vld [vmem:[%s250 + $0x1c] sm:$0xf]
      %v324 = vld [vmem:[%s250 + $0x20] sm:$0x1]
      %v325 = vld [vmem:[%s250 + $0x24] sm:$0xf]
      %v326 = vld [vmem:[%s250 + $0x28] sm:$0xf]
      %v327 = vld [vmem:[%s250 + $0x2c] sm:$0x1]
      %v328 = vld [vmem:[%s250 + $0x30] sm:$0xf]
      %v329 = vld [vmem:[%s250 + $0x34] sm:$0xf]
      %v330 = vld [vmem:[%s250 + $0x38] sm:$0x1]
      %v331 = vld [vmem:[%s250 + $0x3c] sm:$0xf]
      %v332 = vld [vmem:[%s250 + $0x40] sm:$0xf]
      %v333 = vld [vmem:[%s250 + $0x44] sm:$0x1]
      %v334 = vld [vmem:[%s250 + $0x48] sm:$0xf]
      %v335 = vld [vmem:[%s250 + $0x4c] sm:$0xf]
      %v336 = vld [vmem:[%s250 + $0x50] sm:$0x1]
      %v337 = vld [vmem:[%s250 + $0x54] sm:$0xf]
      %v338 = vld [vmem:[%s250 + $0x58] sm:$0xf]
      %v339 = vld [vmem:[%s250 + $0x5c] sm:$0x1]
      %v340 = vld [vmem:[%s250 + $0x60] sm:$0xf]
      %v341 = vld [vmem:[%s250 + $0x64] sm:$0xf]
      %v342 = vld [vmem:[%s250 + $0x68] sm:$0x1]
      %v343 = vld [vmem:[%s250 + $0x6c] sm:$0xf]
      %v344 = vld [vmem:[%s250 + $0x70] sm:$0xf]
      %v345 = vld [vmem:[%s250 + $0x74] sm:$0x1]
      %v346 = vld [vmem:[%s250 + $0x78] sm:$0xf]
      %v347 = vld [vmem:[%s250 + $0x7c] sm:$0xf]
      %v348 = vld [vmem:[%s250 + $0x80] sm:$0x1]
      %v349 = vld [vmem:[%s250 + $0x84] sm:$0xf]
      %v350 = vld [vmem:[%s250 + $0x88] sm:$0xf]
      %v351 = vld [vmem:[%s250 + $0x8c] sm:$0x1]
      %v352 = vld [vmem:[%s250 + $0x90] sm:$0xf]
      %v353 = vld [vmem:[%s250 + $0x94] sm:$0xf]
      %v354 = vld [vmem:[%s250 + $0x98] sm:$0x1]
      %v355 = vld [vmem:[%s250 + $0x9c] sm:$0xf]
      %v356 = vld [vmem:[%s250 + $0xa0] sm:$0xf]
      %v357 = vld [vmem:[%s250 + $0xa4] sm:$0x1]
      %v358 = vld [vmem:[%s250 + $0xa8] sm:$0xf]
      %v359 = vld [vmem:[%s250 + $0xac] sm:$0xf]
      %v360 = vld [vmem:[%s250 + $0xb0] sm:$0x1]
      %v361 = vld [vmem:[%s250 + $0xb4] sm:$0xf]
      %v362 = vld [vmem:[%s250 + $0xb8] sm:$0xf]
      %v363 = vld [vmem:[%s250 + $0xbc] sm:$0x1]
      %vm364 = vsmask.f32 3328
      %vm365 = vsmask.f32 7440
      %vm366 = vmor %vm364, %vm365
      %v368 = vshrl.u32 %v316, 16
      %v370 = vrot.slane %v368, 4
      %v371 = vshll.u32 %v316, 16
      %v373 = vrot.slane %v371, 5
      %v374 = vor.u32 %v370, %v373
      %v375 = vrot.slane %v374, 4
      %v377 = vshll.u32 %v317, 16
      %v379 = vrot.slane %v377, 5
      %v380 = vsel %vm366, %v375, %v379
      %v381 = vshrl.u32 %v317, 16
      %v383 = vrot.slane %v381, 4
      %v384 = vor.u32 %v383, %v379
      %v385 = vrot.slane %v384, 4
      %v387 = vshll.u32 %v318, 16
      %v389 = vrot.slane %v387, 5
      %v390 = vsel %vm366, %v385, %v389
      %v392 = vshrl.u32 %v319, 16
      %v394 = vrot.slane %v392, 4
      %v395 = vshll.u32 %v319, 16
      %v397 = vrot.slane %v395, 5
      %v398 = vor.u32 %v394, %v397
      %v399 = vrot.slane %v398, 4
      %v401 = vshll.u32 %v320, 16
      %v403 = vrot.slane %v401, 5
      %v404 = vsel %vm366, %v399, %v403
      %v405 = vshrl.u32 %v320, 16
      %v407 = vrot.slane %v405, 4
      %v408 = vor.u32 %v407, %v403
      %v409 = vrot.slane %v408, 4
      %v411 = vshll.u32 %v321, 16
      %v413 = vrot.slane %v411, 5
      %v414 = vsel %vm366, %v409, %v413
      %v416 = vshrl.u32 %v322, 16
      %v418 = vrot.slane %v416, 4
      %v419 = vshll.u32 %v322, 16
      %v421 = vrot.slane %v419, 5
      %v422 = vor.u32 %v418, %v421
      %v423 = vrot.slane %v422, 4
      %v425 = vshll.u32 %v323, 16
      %v427 = vrot.slane %v425, 5
      %v428 = vsel %vm366, %v423, %v427
      %v429 = vshrl.u32 %v323, 16
      %v431 = vrot.slane %v429, 4
      %v432 = vor.u32 %v431, %v427
      %v433 = vrot.slane %v432, 4
      %v435 = vshll.u32 %v324, 16
      %v437 = vrot.slane %v435, 5
      %v438 = vsel %vm366, %v433, %v437
      %v440 = vshrl.u32 %v325, 16
      %v442 = vrot.slane %v440, 4
      %v443 = vshll.u32 %v325, 16
      %v445 = vrot.slane %v443, 5
      %v446 = vor.u32 %v442, %v445
      %v447 = vrot.slane %v446, 4
      %v449 = vshll.u32 %v326, 16
      %v451 = vrot.slane %v449, 5
      %v452 = vsel %vm366, %v447, %v451
      %v453 = vshrl.u32 %v326, 16
      %v455 = vrot.slane %v453, 4
      %v456 = vor.u32 %v455, %v451
      %v457 = vrot.slane %v456, 4
      %v459 = vshll.u32 %v327, 16
      %v461 = vrot.slane %v459, 5
      %v462 = vsel %vm366, %v457, %v461
      %v464 = vshrl.u32 %v328, 16
      %v466 = vrot.slane %v464, 4
      %v467 = vshll.u32 %v328, 16
      %v469 = vrot.slane %v467, 5
      %v470 = vor.u32 %v466, %v469
      %v471 = vrot.slane %v470, 4
      %v473 = vshll.u32 %v329, 16
      %v475 = vrot.slane %v473, 5
      %v476 = vsel %vm366, %v471, %v475
      %v477 = vshrl.u32 %v329, 16
      %v479 = vrot.slane %v477, 4
      %v480 = vor.u32 %v479, %v475
      %v481 = vrot.slane %v480, 4
      %v483 = vshll.u32 %v330, 16
      %v485 = vrot.slane %v483, 5
      %v486 = vsel %vm366, %v481, %v485
      %v488 = vshrl.u32 %v331, 16
      %v490 = vrot.slane %v488, 4
      %v491 = vshll.u32 %v331, 16
      %v493 = vrot.slane %v491, 5
      %v494 = vor.u32 %v490, %v493
      %v495 = vrot.slane %v494, 4
      %v497 = vshll.u32 %v332, 16
      %v499 = vrot.slane %v497, 5
      %v500 = vsel %vm366, %v495, %v499
      %v501 = vshrl.u32 %v332, 16
      %v503 = vrot.slane %v501, 4
      %v504 = vor.u32 %v503, %v499
      %v505 = vrot.slane %v504, 4
      %v507 = vshll.u32 %v333, 16
      %v509 = vrot.slane %v507, 5
      %v510 = vsel %vm366, %v505, %v509
      %v512 = vshrl.u32 %v334, 16
      %v514 = vrot.slane %v512, 4
      %v515 = vshll.u32 %v334, 16
      %v517 = vrot.slane %v515, 5
      %v518 = vor.u32 %v514, %v517
      %v519 = vrot.slane %v518, 4
      %v521 = vshll.u32 %v335, 16
      %v523 = vrot.slane %v521, 5
      %v524 = vsel %vm366, %v519, %v523
      %v525 = vshrl.u32 %v335, 16
      %v527 = vrot.slane %v525, 4
      %v528 = vor.u32 %v527, %v523
      %v529 = vrot.slane %v528, 4
      %v531 = vshll.u32 %v336, 16
      %v533 = vrot.slane %v531, 5
      %v534 = vsel %vm366, %v529, %v533
      %v536 = vshrl.u32 %v337, 16
      %v538 = vrot.slane %v536, 4
      %v539 = vshll.u32 %v337, 16
      %v541 = vrot.slane %v539, 5
      %v542 = vor.u32 %v538, %v541
      %v543 = vrot.slane %v542, 4
      %v545 = vshll.u32 %v338, 16
      %v547 = vrot.slane %v545, 5
      %v548 = vsel %vm366, %v543, %v547
      %v549 = vshrl.u32 %v338, 16
      %v551 = vrot.slane %v549, 4
      %v552 = vor.u32 %v551, %v547
      %v553 = vrot.slane %v552, 4
      %v555 = vshll.u32 %v339, 16
      %v557 = vrot.slane %v555, 5
      %v558 = vsel %vm366, %v553, %v557
      %v560 = vshrl.u32 %v340, 16
      %v562 = vrot.slane %v560, 4
      %v563 = vshll.u32 %v340, 16
      %v565 = vrot.slane %v563, 5
      %v566 = vor.u32 %v562, %v565
      %v567 = vrot.slane %v566, 4
      %v569 = vshll.u32 %v341, 16
      %v571 = vrot.slane %v569, 5
      %v572 = vsel %vm366, %v567, %v571
      %v573 = vshrl.u32 %v341, 16
      %v575 = vrot.slane %v573, 4
      %v576 = vor.u32 %v575, %v571
      %v577 = vrot.slane %v576, 4
      %v579 = vshll.u32 %v342, 16
      %v581 = vrot.slane %v579, 5
      %v582 = vsel %vm366, %v577, %v581
      %v584 = vshrl.u32 %v343, 16
      %v586 = vrot.slane %v584, 4
      %v587 = vshll.u32 %v343, 16
      %v589 = vrot.slane %v587, 5
      %v590 = vor.u32 %v586, %v589
      %v591 = vrot.slane %v590, 4
      %v593 = vshll.u32 %v344, 16
      %v595 = vrot.slane %v593, 5
      %v596 = vsel %vm366, %v591, %v595
      %v597 = vshrl.u32 %v344, 16
      %v599 = vrot.slane %v597, 4
      %v600 = vor.u32 %v599, %v595
      %v601 = vrot.slane %v600, 4
      %v603 = vshll.u32 %v345, 16
      %v605 = vrot.slane %v603, 5
      %v606 = vsel %vm366, %v601, %v605
      %v608 = vshrl.u32 %v346, 16
      %v610 = vrot.slane %v608, 4
      %v611 = vshll.u32 %v346, 16
      %v613 = vrot.slane %v611, 5
      %v614 = vor.u32 %v610, %v613
      %v615 = vrot.slane %v614, 4
      %v617 = vshll.u32 %v347, 16
      %v619 = vrot.slane %v617, 5
      %v620 = vsel %vm366, %v615, %v619
      %v621 = vshrl.u32 %v347, 16
      %v623 = vrot.slane %v621, 4
      %v624 = vor.u32 %v623, %v619
      %v625 = vrot.slane %v624, 4
      %v627 = vshll.u32 %v348, 16
      %v629 = vrot.slane %v627, 5
      %v630 = vsel %vm366, %v625, %v629
      %v632 = vshrl.u32 %v349, 16
      %v634 = vrot.slane %v632, 4
      %v635 = vshll.u32 %v349, 16
      %v637 = vrot.slane %v635, 5
      %v638 = vor.u32 %v634, %v637
      %v639 = vrot.slane %v638, 4
      %v641 = vshll.u32 %v350, 16
      %v643 = vrot.slane %v641, 5
      %v644 = vsel %vm366, %v639, %v643
      %v645 = vshrl.u32 %v350, 16
      %v647 = vrot.slane %v645, 4
      %v648 = vor.u32 %v647, %v643
      %v649 = vrot.slane %v648, 4
      %v651 = vshll.u32 %v351, 16
      %v653 = vrot.slane %v651, 5
      %v654 = vsel %vm366, %v649, %v653
      %v656 = vshrl.u32 %v352, 16
      %v658 = vrot.slane %v656, 4
      %v659 = vshll.u32 %v352, 16
      %v661 = vrot.slane %v659, 5
      %v662 = vor.u32 %v658, %v661
      %v663 = vrot.slane %v662, 4
      %v665 = vshll.u32 %v353, 16
      %v667 = vrot.slane %v665, 5
      %v668 = vsel %vm366, %v663, %v667
      %v669 = vshrl.u32 %v353, 16
      %v671 = vrot.slane %v669, 4
      %v672 = vor.u32 %v671, %v667
      %v673 = vrot.slane %v672, 4
      %v675 = vshll.u32 %v354, 16
      %v677 = vrot.slane %v675, 5
      %v678 = vsel %vm366, %v673, %v677
      %v680 = vshrl.u32 %v355, 16
      %v682 = vrot.slane %v680, 4
      %v683 = vshll.u32 %v355, 16
      %v685 = vrot.slane %v683, 5
      %v686 = vor.u32 %v682, %v685
      %v687 = vrot.slane %v686, 4
      %v689 = vshll.u32 %v356, 16
      %v691 = vrot.slane %v689, 5
      %v692 = vsel %vm366, %v687, %v691
      %v693 = vshrl.u32 %v356, 16
      %v695 = vrot.slane %v693, 4
      %v696 = vor.u32 %v695, %v691
      %v697 = vrot.slane %v696, 4
      %v699 = vshll.u32 %v357, 16
      %v701 = vrot.slane %v699, 5
      %v702 = vsel %vm366, %v697, %v701
      %v704 = vshrl.u32 %v358, 16
      %v706 = vrot.slane %v704, 4
      %v707 = vshll.u32 %v358, 16
      %v709 = vrot.slane %v707, 5
      %v710 = vor.u32 %v706, %v709
      %v711 = vrot.slane %v710, 4
      %v713 = vshll.u32 %v359, 16
      %v715 = vrot.slane %v713, 5
      %v716 = vsel %vm366, %v711, %v715
      %v717 = vshrl.u32 %v359, 16
      %v719 = vrot.slane %v717, 4
      %v720 = vor.u32 %v719, %v715
      %v721 = vrot.slane %v720, 4
      %v723 = vshll.u32 %v360, 16
      %v725 = vrot.slane %v723, 5
      %v726 = vsel %vm366, %v721, %v725
      %v728 = vshrl.u32 %v361, 16
      %v730 = vrot.slane %v728, 4
      %v731 = vshll.u32 %v361, 16
      %v733 = vrot.slane %v731, 5
      %v734 = vor.u32 %v730, %v733
      %v735 = vrot.slane %v734, 4
      %v737 = vshll.u32 %v362, 16
      %v739 = vrot.slane %v737, 5
      %v740 = vsel %vm366, %v735, %v739
      %v741 = vshrl.u32 %v362, 16
      %v743 = vrot.slane %v741, 4
      %v744 = vor.u32 %v743, %v739
      %v745 = vrot.slane %v744, 4
      %v747 = vshll.u32 %v363, 16
      %v749 = vrot.slane %v747, 5
      %v750 = vsel %vm366, %v745, %v749
      %751 = vrot.lane.b32.xlu0 %v380, 32
      %v752 = vpop.permute.xlu0 %751
      %753 = vrot.lane.b32.xlu0 %v390, 32
      %v754 = vpop.permute.xlu0 %753
      %755 = vrot.lane.b32.xlu0 %v404, 32
      %v756 = vpop.permute.xlu0 %755
      %757 = vrot.lane.b32.xlu0 %v414, 32
      %v758 = vpop.permute.xlu0 %757
      %759 = vrot.lane.b32.xlu0 %v428, 32
      %v760 = vpop.permute.xlu0 %759
      %761 = vrot.lane.b32.xlu0 %v438, 32
      %v762 = vpop.permute.xlu0 %761
      %763 = vrot.lane.b32.xlu0 %v452, 32
      %v764 = vpop.permute.xlu0 %763
      %765 = vrot.lane.b32.xlu0 %v462, 32
      %v766 = vpop.permute.xlu0 %765
      %767 = vrot.lane.b32.xlu0 %v476, 32
      %v768 = vpop.permute.xlu0 %767
      %769 = vrot.lane.b32.xlu0 %v486, 32
      %v770 = vpop.permute.xlu0 %769
      %771 = vrot.lane.b32.xlu0 %v500, 32
      %v772 = vpop.permute.xlu0 %771
      %773 = vrot.lane.b32.xlu0 %v510, 32
      %v774 = vpop.permute.xlu0 %773
      %775 = vrot.lane.b32.xlu0 %v524, 32
      %v776 = vpop.permute.xlu0 %775
      %777 = vrot.lane.b32.xlu0 %v534, 32
      %v778 = vpop.permute.xlu0 %777
      %779 = vrot.lane.b32.xlu0 %v548, 32
      %v780 = vpop.permute.xlu0 %779
      %781 = vrot.lane.b32.xlu0 %v558, 32
      %v782 = vpop.permute.xlu0 %781
      %783 = vrot.lane.b32.xlu0 %v572, 32
      %v784 = vpop.permute.xlu0 %783
      %785 = vrot.lane.b32.xlu0 %v582, 32
      %v786 = vpop.permute.xlu0 %785
      %787 = vrot.lane.b32.xlu0 %v596, 32
      %v788 = vpop.permute.xlu0 %787
      %789 = vrot.lane.b32.xlu0 %v606, 32
      %v790 = vpop.permute.xlu0 %789
      %791 = vrot.lane.b32.xlu0 %v620, 32
      %v792 = vpop.permute.xlu0 %791
      %793 = vrot.lane.b32.xlu0 %v630, 32
      %v794 = vpop.permute.xlu0 %793
      %795 = vrot.lane.b32.xlu0 %v644, 32
      %v796 = vpop.permute.xlu0 %795
      %797 = vrot.lane.b32.xlu0 %v654, 32
      %v798 = vpop.permute.xlu0 %797
      %799 = vrot.lane.b32.xlu0 %v668, 32
      %v800 = vpop.permute.xlu0 %799
      %801 = vrot.lane.b32.xlu0 %v678, 32
      %v802 = vpop.permute.xlu0 %801
      %803 = vrot.lane.b32.xlu0 %v692, 32
      %v804 = vpop.permute.xlu0 %803
      %805 = vrot.lane.b32.xlu0 %v702, 32
      %v806 = vpop.permute.xlu0 %805
      %807 = vrot.lane.b32.xlu0 %v716, 32
      %v808 = vpop.permute.xlu0 %807
      %809 = vrot.lane.b32.xlu0 %v726, 32
      %v810 = vpop.permute.xlu0 %809
      %811 = vrot.lane.b32.xlu0 %v740, 32
      %v812 = vpop.permute.xlu0 %811
      %813 = vrot.lane.b32.xlu0 %v750, 32
      %v814 = vpop.permute.xlu0 %813
      %vm847 = vcmask 519424
      %848 = vst.msk [vmem:[#allocation2] sm:$0xf] %vm847, %v752
      %849 = vst.msk [vmem:[#allocation2 + $0x4] sm:$0xf] %vm847, %v754
      %850 = vst.msk [vmem:[#allocation2 + $0x8] sm:$0xf] %vm847, %v756
      %851 = vst.msk [vmem:[#allocation2 + $0xc] sm:$0xf] %vm847, %v758
      %852 = vst.msk [vmem:[#allocation2 + $0x10] sm:$0xf] %vm847, %v760
      %853 = vst.msk [vmem:[#allocation2 + $0x14] sm:$0xf] %vm847, %v762
      %854 = vst.msk [vmem:[#allocation2 + $0x18] sm:$0xf] %vm847, %v764
      %855 = vst.msk [vmem:[#allocation2 + $0x1c] sm:$0xf] %vm847, %v766
      %856 = vst.msk [vmem:[#allocation2 + $0x20] sm:$0xf] %vm847, %v768
      %857 = vst.msk [vmem:[#allocation2 + $0x24] sm:$0xf] %vm847, %v770
      %858 = vst.msk [vmem:[#allocation2 + $0x28] sm:$0xf] %vm847, %v772
      %859 = vst.msk [vmem:[#allocation2 + $0x2c] sm:$0xf] %vm847, %v774
      %860 = vst.msk [vmem:[#allocation2 + $0x30] sm:$0xf] %vm847, %v776
      %861 = vst.msk [vmem:[#allocation2 + $0x34] sm:$0xf] %vm847, %v778
      %862 = vst.msk [vmem:[#allocation2 + $0x38] sm:$0xf] %vm847, %v780
      %863 = vst.msk [vmem:[#allocation2 + $0x3c] sm:$0xf] %vm847, %v782
      %864 = vst.msk [vmem:[#allocation2 + $0x40] sm:$0xf] %vm847, %v784
      %865 = vst.msk [vmem:[#allocation2 + $0x44] sm:$0xf] %vm847, %v786
      %866 = vst.msk [vmem:[#allocation2 + $0x48] sm:$0xf] %vm847, %v788
      %867 = vst.msk [vmem:[#allocation2 + $0x4c] sm:$0xf] %vm847, %v790
      %868 = vst.msk [vmem:[#allocation2 + $0x50] sm:$0xf] %vm847, %v792
      %869 = vst.msk [vmem:[#allocation2 + $0x54] sm:$0xf] %vm847, %v794
      %870 = vst.msk [vmem:[#allocation2 + $0x58] sm:$0xf] %vm847, %v796
      %871 = vst.msk [vmem:[#allocation2 + $0x5c] sm:$0xf] %vm847, %v798
      %872 = vst.msk [vmem:[#allocation2 + $0x60] sm:$0xf] %vm847, %v800
      %873 = vst.msk [vmem:[#allocation2 + $0x64] sm:$0xf] %vm847, %v802
      %874 = vst.msk [vmem:[#allocation2 + $0x68] sm:$0xf] %vm847, %v804
      %875 = vst.msk [vmem:[#allocation2 + $0x6c] sm:$0xf] %vm847, %v806
      %876 = vst.msk [vmem:[#allocation2 + $0x70] sm:$0xf] %vm847, %v808
      %877 = vst.msk [vmem:[#allocation2 + $0x74] sm:$0xf] %vm847, %v810
      %878 = vst.msk [vmem:[#allocation2 + $0x78] sm:$0xf] %vm847, %v812
      %879 = vst.msk [vmem:[#allocation2 + $0x7c] sm:$0xf] %vm847, %v814
      %s880 = sadd.s32 %s247, 1
      %s881 = smul.u32 %s880, 3
      %s882 = smul.addr %s881, 4
      %s883 = scalar_lea.vmem %s225, %s882
      %v884 = vld [vmem:[%s883] sm:$0xf]
      %v885 = vld [vmem:[%s883 + $0x4] sm:$0xf]
      %v886 = vld [vmem:[%s883 + $0xc] sm:$0xf]
      %v887 = vld [vmem:[%s883 + $0x10] sm:$0xf]
      %v888 = vld [vmem:[%s883 + $0x18] sm:$0xf]
      %v889 = vld [vmem:[%s883 + $0x1c] sm:$0xf]
      %v890 = vld [vmem:[%s883 + $0x24] sm:$0xf]
      %v891 = vld [vmem:[%s883 + $0x28] sm:$0xf]
      %v892 = vld [vmem:[%s883 + $0x30] sm:$0xf]
      %v893 = vld [vmem:[%s883 + $0x34] sm:$0xf]
      %v894 = vld [vmem:[%s883 + $0x3c] sm:$0xf]
      %v895 = vld [vmem:[%s883 + $0x40] sm:$0xf]
      %v896 = vld [vmem:[%s883 + $0x48] sm:$0xf]
      %v897 = vld [vmem:[%s883 + $0x4c] sm:$0xf]
      %v898 = vld [vmem:[%s883 + $0x54] sm:$0xf]
      %v899 = vld [vmem:[%s883 + $0x58] sm:$0xf]
      %v900 = vld [vmem:[%s883 + $0x60] sm:$0xf]
      %v901 = vld [vmem:[%s883 + $0x64] sm:$0xf]
      %v902 = vld [vmem:[%s883 + $0x6c] sm:$0xf]
      %v903 = vld [vmem:[%s883 + $0x70] sm:$0xf]
      %v904 = vld [vmem:[%s883 + $0x78] sm:$0xf]
      %v905 = vld [vmem:[%s883 + $0x7c] sm:$0xf]
      %v906 = vld [vmem:[%s883 + $0x84] sm:$0xf]
      %v907 = vld [vmem:[%s883 + $0x88] sm:$0xf]
      %v908 = vld [vmem:[%s883 + $0x90] sm:$0xf]
      %v909 = vld [vmem:[%s883 + $0x94] sm:$0xf]
      %v910 = vld [vmem:[%s883 + $0x9c] sm:$0xf]
      %v911 = vld [vmem:[%s883 + $0xa0] sm:$0xf]
      %v912 = vld [vmem:[%s883 + $0xa8] sm:$0xf]
      %v913 = vld [vmem:[%s883 + $0xac] sm:$0xf]
      %v914 = vld [vmem:[%s883 + $0xb4] sm:$0xf]
      %v915 = vld [vmem:[%s883 + $0xb8] sm:$0xf]
      %948 = vrot.lane.b32.xlu0 %v884, 64
      %v949 = vpop.permute.xlu0 %948
      %950 = vrot.lane.b32.xlu0 %v885, 64
      %v951 = vpop.permute.xlu0 %950
      %952 = vrot.lane.b32.xlu0 %v886, 64
      %v953 = vpop.permute.xlu0 %952
      %954 = vrot.lane.b32.xlu0 %v887, 64
      %v955 = vpop.permute.xlu0 %954
      %956 = vrot.lane.b32.xlu0 %v888, 64
      %v957 = vpop.permute.xlu0 %956
      %958 = vrot.lane.b32.xlu0 %v889, 64
      %v959 = vpop.permute.xlu0 %958
      %960 = vrot.lane.b32.xlu0 %v890, 64
      %v961 = vpop.permute.xlu0 %960
      %962 = vrot.lane.b32.xlu0 %v891, 64
      %v963 = vpop.permute.xlu0 %962
      %964 = vrot.lane.b32.xlu0 %v892, 64
      %v965 = vpop.permute.xlu0 %964
      %966 = vrot.lane.b32.xlu0 %v893, 64
      %v967 = vpop.permute.xlu0 %966
      %968 = vrot.lane.b32.xlu0 %v894, 64
      %v969 = vpop.permute.xlu0 %968
      %970 = vrot.lane.b32.xlu0 %v895, 64
      %v971 = vpop.permute.xlu0 %970
      %972 = vrot.lane.b32.xlu0 %v896, 64
      %v973 = vpop.permute.xlu0 %972
      %974 = vrot.lane.b32.xlu0 %v897, 64
      %v975 = vpop.permute.xlu0 %974
      %976 = vrot.lane.b32.xlu0 %v898, 64
      %v977 = vpop.permute.xlu0 %976
      %978 = vrot.lane.b32.xlu0 %v899, 64
      %v979 = vpop.permute.xlu0 %978
      %980 = vrot.lane.b32.xlu0 %v900, 64
      %v981 = vpop.permute.xlu0 %980
      %982 = vrot.lane.b32.xlu0 %v901, 64
      %v983 = vpop.permute.xlu0 %982
      %984 = vrot.lane.b32.xlu0 %v902, 64
      %v985 = vpop.permute.xlu0 %984
      %986 = vrot.lane.b32.xlu0 %v903, 64
      %v987 = vpop.permute.xlu0 %986
      %988 = vrot.lane.b32.xlu0 %v904, 64
      %v989 = vpop.permute.xlu0 %988
      %990 = vrot.lane.b32.xlu0 %v905, 64
      %v991 = vpop.permute.xlu0 %990
      %992 = vrot.lane.b32.xlu0 %v906, 64
      %v993 = vpop.permute.xlu0 %992
      %994 = vrot.lane.b32.xlu0 %v907, 64
      %v995 = vpop.permute.xlu0 %994
      %996 = vrot.lane.b32.xlu0 %v908, 64
      %v997 = vpop.permute.xlu0 %996
      %998 = vrot.lane.b32.xlu0 %v909, 64
      %v999 = vpop.permute.xlu0 %998
      %1000 = vrot.lane.b32.xlu0 %v910, 64
      %v1001 = vpop.permute.xlu0 %1000
      %1002 = vrot.lane.b32.xlu0 %v911, 64
      %v1003 = vpop.permute.xlu0 %1002
      %1004 = vrot.lane.b32.xlu0 %v912, 64
      %v1005 = vpop.permute.xlu0 %1004
      %1006 = vrot.lane.b32.xlu0 %v913, 64
      %v1007 = vpop.permute.xlu0 %1006
      %1008 = vrot.lane.b32.xlu0 %v914, 64
      %v1009 = vpop.permute.xlu0 %1008
      %1010 = vrot.lane.b32.xlu0 %v915, 64
      %v1011 = vpop.permute.xlu0 %1010
      %vm1044 = vcmask 781824
      %1045 = vst.msk [vmem:[#allocation2] sm:$0xf] %vm1044, %v949
      %1046 = vst.msk [vmem:[#allocation2 + $0x4] sm:$0xf] %vm1044, %v951
      %1047 = vst.msk [vmem:[#allocation2 + $0x8] sm:$0xf] %vm1044, %v953
      %1048 = vst.msk [vmem:[#allocation2 + $0xc] sm:$0xf] %vm1044, %v955
      %1049 = vst.msk [vmem:[#allocation2 + $0x10] sm:$0xf] %vm1044, %v957
      %1050 = vst.msk [vmem:[#allocation2 + $0x14] sm:$0xf] %vm1044, %v959
      %1051 = vst.msk [vmem:[#allocation2 + $0x18] sm:$0xf] %vm1044, %v961
      %1052 = vst.msk [vmem:[#allocation2 + $0x1c] sm:$0xf] %vm1044, %v963
      %1053 = vst.msk [vmem:[#allocation2 + $0x20] sm:$0xf] %vm1044, %v965
      %1054 = vst.msk [vmem:[#allocation2 + $0x24] sm:$0xf] %vm1044, %v967
      %1055 = vst.msk [vmem:[#allocation2 + $0x28] sm:$0xf] %vm1044, %v969
      %1056 = vst.msk [vmem:[#allocation2 + $0x2c] sm:$0xf] %vm1044, %v971
      %1057 = vst.msk [vmem:[#allocation2 + $0x30] sm:$0xf] %vm1044, %v973
      %1058 = vst.msk [vmem:[#allocation2 + $0x34] sm:$0xf] %vm1044, %v975
      %1059 = vst.msk [vmem:[#allocation2 + $0x38] sm:$0xf] %vm1044, %v977
      %1060 = vst.msk [vmem:[#allocation2 + $0x3c] sm:$0xf] %vm1044, %v979
      %1061 = vst.msk [vmem:[#allocation2 + $0x40] sm:$0xf] %vm1044, %v981
      %1062 = vst.msk [vmem:[#allocation2 + $0x44] sm:$0xf] %vm1044, %v983
      %1063 = vst.msk [vmem:[#allocation2 + $0x48] sm:$0xf] %vm1044, %v985
      %1064 = vst.msk [vmem:[#allocation2 + $0x4c] sm:$0xf] %vm1044, %v987
      %1065 = vst.msk [vmem:[#allocation2 + $0x50] sm:$0xf] %vm1044, %v989
      %1066 = vst.msk [vmem:[#allocation2 + $0x54] sm:$0xf] %vm1044, %v991
      %1067 = vst.msk [vmem:[#allocation2 + $0x58] sm:$0xf] %vm1044, %v993
      %1068 = vst.msk [vmem:[#allocation2 + $0x5c] sm:$0xf] %vm1044, %v995
      %1069 = vst.msk [vmem:[#allocation2 + $0x60] sm:$0xf] %vm1044, %v997
      %1070 = vst.msk [vmem:[#allocation2 + $0x64] sm:$0xf] %vm1044, %v999
      %1071 = vst.msk [vmem:[#allocation2 + $0x68] sm:$0xf] %vm1044, %v1001
      %1072 = vst.msk [vmem:[#allocation2 + $0x6c] sm:$0xf] %vm1044, %v1003
      %1073 = vst.msk [vmem:[#allocation2 + $0x70] sm:$0xf] %vm1044, %v1005
      %1074 = vst.msk [vmem:[#allocation2 + $0x74] sm:$0xf] %vm1044, %v1007
      %1075 = vst.msk [vmem:[#allocation2 + $0x78] sm:$0xf] %vm1044, %v1009
      %1076 = vst.msk [vmem:[#allocation2 + $0x7c] sm:$0xf] %vm1044, %v1011
      %v1077 = vld [vmem:[%s883] sm:$0xf]
      %v1078 = vld [vmem:[%s883 + $0x4] sm:$0xf]
      %v1079 = vld [vmem:[%s883 + $0x8] sm:$0x1]
      %v1080 = vld [vmem:[%s883 + $0xc] sm:$0xf]
      %v1081 = vld [vmem:[%s883 + $0x10] sm:$0xf]
      %v1082 = vld [vmem:[%s883 + $0x14] sm:$0x1]
      %v1083 = vld [vmem:[%s883 + $0x18] sm:$0xf]
      %v1084 = vld [vmem:[%s883 + $0x1c] sm:$0xf]
      %v1085 = vld [vmem:[%s883 + $0x20] sm:$0x1]
      %v1086 = vld [vmem:[%s883 + $0x24] sm:$0xf]
      %v1087 = vld [vmem:[%s883 + $0x28] sm:$0xf]
      %v1088 = vld [vmem:[%s883 + $0x2c] sm:$0x1]
      %v1089 = vld [vmem:[%s883 + $0x30] sm:$0xf]
      %v1090 = vld [vmem:[%s883 + $0x34] sm:$0xf]
      %v1091 = vld [vmem:[%s883 + $0x38] sm:$0x1]
      %v1092 = vld [vmem:[%s883 + $0x3c] sm:$0xf]
      %v1093 = vld [vmem:[%s883 + $0x40] sm:$0xf]
      %v1094 = vld [vmem:[%s883 + $0x44] sm:$0x1]
      %v1095 = vld [vmem:[%s883 + $0x48] sm:$0xf]
      %v1096 = vld [vmem:[%s883 + $0x4c] sm:$0xf]
      %v1097 = vld [vmem:[%s883 + $0x50] sm:$0x1]
      %v1098 = vld [vmem:[%s883 + $0x54] sm:$0xf]
      %v1099 = vld [vmem:[%s883 + $0x58] sm:$0xf]
      %v1100 = vld [vmem:[%s883 + $0x5c] sm:$0x1]
      %v1101 = vld [vmem:[%s883 + $0x60] sm:$0xf]
      %v1102 = vld [vmem:[%s883 + $0x64] sm:$0xf]
      %v1103 = vld [vmem:[%s883 + $0x68] sm:$0x1]
      %v1104 = vld [vmem:[%s883 + $0x6c] sm:$0xf]
      %v1105 = vld [vmem:[%s883 + $0x70] sm:$0xf]
      %v1106 = vld [vmem:[%s883 + $0x74] sm:$0x1]
      %v1107 = vld [vmem:[%s883 + $0x78] sm:$0xf]
      %v1108 = vld [vmem:[%s883 + $0x7c] sm:$0xf]
      %v1109 = vld [vmem:[%s883 + $0x80] sm:$0x1]
      %v1110 = vld [vmem:[%s883 + $0x84] sm:$0xf]
      %v1111 = vld [vmem:[%s883 + $0x88] sm:$0xf]
      %v1112 = vld [vmem:[%s883 + $0x8c] sm:$0x1]
      %v1113 = vld [vmem:[%s883 + $0x90] sm:$0xf]
      %v1114 = vld [vmem:[%s883 + $0x94] sm:$0xf]
      %v1115 = vld [vmem:[%s883 + $0x98] sm:$0x1]
      %v1116 = vld [vmem:[%s883 + $0x9c] sm:$0xf]
      %v1117 = vld [vmem:[%s883 + $0xa0] sm:$0xf]
      %v1118 = vld [vmem:[%s883 + $0xa4] sm:$0x1]
      %v1119 = vld [vmem:[%s883 + $0xa8] sm:$0xf]
      %v1120 = vld [vmem:[%s883 + $0xac] sm:$0xf]
      %v1121 = vld [vmem:[%s883 + $0xb0] sm:$0x1]
      %v1122 = vld [vmem:[%s883 + $0xb4] sm:$0xf]
      %v1123 = vld [vmem:[%s883 + $0xb8] sm:$0xf]
      %v1124 = vld [vmem:[%s883 + $0xbc] sm:$0x1]
      %v1126 = vshrl.u32 %v1077, 16
      %v1128 = vrot.slane %v1126, 4
      %v1129 = vshll.u32 %v1077, 16
      %v1131 = vrot.slane %v1129, 5
      %v1132 = vor.u32 %v1128, %v1131
      %v1133 = vrot.slane %v1132, 4
      %v1135 = vshll.u32 %v1078, 16
      %v1137 = vrot.slane %v1135, 5
      %v1138 = vsel %vm366, %v1133, %v1137
      %v1139 = vshrl.u32 %v1078, 16
      %v1141 = vrot.slane %v1139, 4
      %v1142 = vor.u32 %v1141, %v1137
      %v1143 = vrot.slane %v1142, 4
      %v1145 = vshll.u32 %v1079, 16
      %v1147 = vrot.slane %v1145, 5
      %v1148 = vsel %vm366, %v1143, %v1147
      %v1150 = vshrl.u32 %v1080, 16
      %v1152 = vrot.slane %v1150, 4
      %v1153 = vshll.u32 %v1080, 16
      %v1155 = vrot.slane %v1153, 5
      %v1156 = vor.u32 %v1152, %v1155
      %v1157 = vrot.slane %v1156, 4
      %v1159 = vshll.u32 %v1081, 16
      %v1161 = vrot.slane %v1159, 5
      %v1162 = vsel %vm366, %v1157, %v1161
      %v1163 = vshrl.u32 %v1081, 16
      %v1165 = vrot.slane %v1163, 4
      %v1166 = vor.u32 %v1165, %v1161
      %v1167 = vrot.slane %v1166, 4
      %v1169 = vshll.u32 %v1082, 16
      %v1171 = vrot.slane %v1169, 5
      %v1172 = vsel %vm366, %v1167, %v1171
      %v1174 = vshrl.u32 %v1083, 16
      %v1176 = vrot.slane %v1174, 4
      %v1177 = vshll.u32 %v1083, 16
      %v1179 = vrot.slane %v1177, 5
      %v1180 = vor.u32 %v1176, %v1179
      %v1181 = vrot.slane %v1180, 4
      %v1183 = vshll.u32 %v1084, 16
      %v1185 = vrot.slane %v1183, 5
      %v1186 = vsel %vm366, %v1181, %v1185
      %v1187 = vshrl.u32 %v1084, 16
      %v1189 = vrot.slane %v1187, 4
      %v1190 = vor.u32 %v1189, %v1185
      %v1191 = vrot.slane %v1190, 4
      %v1193 = vshll.u32 %v1085, 16
      %v1195 = vrot.slane %v1193, 5
      %v1196 = vsel %vm366, %v1191, %v1195
      %v1198 = vshrl.u32 %v1086, 16
      %v1200 = vrot.slane %v1198, 4
      %v1201 = vshll.u32 %v1086, 16
      %v1203 = vrot.slane %v1201, 5
      %v1204 = vor.u32 %v1200, %v1203
      %v1205 = vrot.slane %v1204, 4
      %v1207 = vshll.u32 %v1087, 16
      %v1209 = vrot.slane %v1207, 5
      %v1210 = vsel %vm366, %v1205, %v1209
      %v1211 = vshrl.u32 %v1087, 16
      %v1213 = vrot.slane %v1211, 4
      %v1214 = vor.u32 %v1213, %v1209
      %v1215 = vrot.slane %v1214, 4
      %v1217 = vshll.u32 %v1088, 16
      %v1219 = vrot.slane %v1217, 5
      %v1220 = vsel %vm366, %v1215, %v1219
      %v1222 = vshrl.u32 %v1089, 16
      %v1224 = vrot.slane %v1222, 4
      %v1225 = vshll.u32 %v1089, 16
      %v1227 = vrot.slane %v1225, 5
      %v1228 = vor.u32 %v1224, %v1227
      %v1229 = vrot.slane %v1228, 4
      %v1231 = vshll.u32 %v1090, 16
      %v1233 = vrot.slane %v1231, 5
      %v1234 = vsel %vm366, %v1229, %v1233
      %v1235 = vshrl.u32 %v1090, 16
      %v1237 = vrot.slane %v1235, 4
      %v1238 = vor.u32 %v1237, %v1233
      %v1239 = vrot.slane %v1238, 4
      %v1241 = vshll.u32 %v1091, 16
      %v1243 = vrot.slane %v1241, 5
      %v1244 = vsel %vm366, %v1239, %v1243
      %v1246 = vshrl.u32 %v1092, 16
      %v1248 = vrot.slane %v1246, 4
      %v1249 = vshll.u32 %v1092, 16
      %v1251 = vrot.slane %v1249, 5
      %v1252 = vor.u32 %v1248, %v1251
      %v1253 = vrot.slane %v1252, 4
      %v1255 = vshll.u32 %v1093, 16
      %v1257 = vrot.slane %v1255, 5
      %v1258 = vsel %vm366, %v1253, %v1257
      %v1259 = vshrl.u32 %v1093, 16
      %v1261 = vrot.slane %v1259, 4
      %v1262 = vor.u32 %v1261, %v1257
      %v1263 = vrot.slane %v1262, 4
      %v1265 = vshll.u32 %v1094, 16
      %v1267 = vrot.slane %v1265, 5
      %v1268 = vsel %vm366, %v1263, %v1267
      %v1270 = vshrl.u32 %v1095, 16
      %v1272 = vrot.slane %v1270, 4
      %v1273 = vshll.u32 %v1095, 16
      %v1275 = vrot.slane %v1273, 5
      %v1276 = vor.u32 %v1272, %v1275
      %v1277 = vrot.slane %v1276, 4
      %v1279 = vshll.u32 %v1096, 16
      %v1281 = vrot.slane %v1279, 5
      %v1282 = vsel %vm366, %v1277, %v1281
      %v1283 = vshrl.u32 %v1096, 16
      %v1285 = vrot.slane %v1283, 4
      %v1286 = vor.u32 %v1285, %v1281
      %v1287 = vrot.slane %v1286, 4
      %v1289 = vshll.u32 %v1097, 16
      %v1291 = vrot.slane %v1289, 5
      %v1292 = vsel %vm366, %v1287, %v1291
      %v1294 = vshrl.u32 %v1098, 16
      %v1296 = vrot.slane %v1294, 4
      %v1297 = vshll.u32 %v1098, 16
      %v1299 = vrot.slane %v1297, 5
      %v1300 = vor.u32 %v1296, %v1299
      %v1301 = vrot.slane %v1300, 4
      %v1303 = vshll.u32 %v1099, 16
      %v1305 = vrot.slane %v1303, 5
      %v1306 = vsel %vm366, %v1301, %v1305
      %v1307 = vshrl.u32 %v1099, 16
      %v1309 = vrot.slane %v1307, 4
      %v1310 = vor.u32 %v1309, %v1305
      %v1311 = vrot.slane %v1310, 4
      %v1313 = vshll.u32 %v1100, 16
      %v1315 = vrot.slane %v1313, 5
      %v1316 = vsel %vm366, %v1311, %v1315
      %v1318 = vshrl.u32 %v1101, 16
      %v1320 = vrot.slane %v1318, 4
      %v1321 = vshll.u32 %v1101, 16
      %v1323 = vrot.slane %v1321, 5
      %v1324 = vor.u32 %v1320, %v1323
      %v1325 = vrot.slane %v1324, 4
      %v1327 = vshll.u32 %v1102, 16
      %v1329 = vrot.slane %v1327, 5
      %v1330 = vsel %vm366, %v1325, %v1329
      %v1331 = vshrl.u32 %v1102, 16
      %v1333 = vrot.slane %v1331, 4
      %v1334 = vor.u32 %v1333, %v1329
      %v1335 = vrot.slane %v1334, 4
      %v1337 = vshll.u32 %v1103, 16
      %v1339 = vrot.slane %v1337, 5
      %v1340 = vsel %vm366, %v1335, %v1339
      %v1342 = vshrl.u32 %v1104, 16
      %v1344 = vrot.slane %v1342, 4
      %v1345 = vshll.u32 %v1104, 16
      %v1347 = vrot.slane %v1345, 5
      %v1348 = vor.u32 %v1344, %v1347
      %v1349 = vrot.slane %v1348, 4
      %v1351 = vshll.u32 %v1105, 16
      %v1353 = vrot.slane %v1351, 5
      %v1354 = vsel %vm366, %v1349, %v1353
      %v1355 = vshrl.u32 %v1105, 16
      %v1357 = vrot.slane %v1355, 4
      %v1358 = vor.u32 %v1357, %v1353
      %v1359 = vrot.slane %v1358, 4
      %v1361 = vshll.u32 %v1106, 16
      %v1363 = vrot.slane %v1361, 5
      %v1364 = vsel %vm366, %v1359, %v1363
      %v1366 = vshrl.u32 %v1107, 16
      %v1368 = vrot.slane %v1366, 4
      %v1369 = vshll.u32 %v1107, 16
      %v1371 = vrot.slane %v1369, 5
      %v1372 = vor.u32 %v1368, %v1371
      %v1373 = vrot.slane %v1372, 4
      %v1375 = vshll.u32 %v1108, 16
      %v1377 = vrot.slane %v1375, 5
      %v1378 = vsel %vm366, %v1373, %v1377
      %v1379 = vshrl.u32 %v1108, 16
      %v1381 = vrot.slane %v1379, 4
      %v1382 = vor.u32 %v1381, %v1377
      %v1383 = vrot.slane %v1382, 4
      %v1385 = vshll.u32 %v1109, 16
      %v1387 = vrot.slane %v1385, 5
      %v1388 = vsel %vm366, %v1383, %v1387
      %v1390 = vshrl.u32 %v1110, 16
      %v1392 = vrot.slane %v1390, 4
      %v1393 = vshll.u32 %v1110, 16
      %v1395 = vrot.slane %v1393, 5
      %v1396 = vor.u32 %v1392, %v1395
      %v1397 = vrot.slane %v1396, 4
      %v1399 = vshll.u32 %v1111, 16
      %v1401 = vrot.slane %v1399, 5
      %v1402 = vsel %vm366, %v1397, %v1401
      %v1403 = vshrl.u32 %v1111, 16
      %v1405 = vrot.slane %v1403, 4
      %v1406 = vor.u32 %v1405, %v1401
      %v1407 = vrot.slane %v1406, 4
      %v1409 = vshll.u32 %v1112, 16
      %v1411 = vrot.slane %v1409, 5
      %v1412 = vsel %vm366, %v1407, %v1411
      %v1414 = vshrl.u32 %v1113, 16
      %v1416 = vrot.slane %v1414, 4
      %v1417 = vshll.u32 %v1113, 16
      %v1419 = vrot.slane %v1417, 5
      %v1420 = vor.u32 %v1416, %v1419
      %v1421 = vrot.slane %v1420, 4
      %v1423 = vshll.u32 %v1114, 16
      %v1425 = vrot.slane %v1423, 5
      %v1426 = vsel %vm366, %v1421, %v1425
      %v1427 = vshrl.u32 %v1114, 16
      %v1429 = vrot.slane %v1427, 4
      %v1430 = vor.u32 %v1429, %v1425
      %v1431 = vrot.slane %v1430, 4
      %v1433 = vshll.u32 %v1115, 16
      %v1435 = vrot.slane %v1433, 5
      %v1436 = vsel %vm366, %v1431, %v1435
      %v1438 = vshrl.u32 %v1116, 16
      %v1440 = vrot.slane %v1438, 4
      %v1441 = vshll.u32 %v1116, 16
      %v1443 = vrot.slane %v1441, 5
      %v1444 = vor.u32 %v1440, %v1443
      %v1445 = vrot.slane %v1444, 4
      %v1447 = vshll.u32 %v1117, 16
      %v1449 = vrot.slane %v1447, 5
      %v1450 = vsel %vm366, %v1445, %v1449
      %v1451 = vshrl.u32 %v1117, 16
      %v1453 = vrot.slane %v1451, 4
      %v1454 = vor.u32 %v1453, %v1449
      %v1455 = vrot.slane %v1454, 4
      %v1457 = vshll.u32 %v1118, 16
      %v1459 = vrot.slane %v1457, 5
      %v1460 = vsel %vm366, %v1455, %v1459
      %v1462 = vshrl.u32 %v1119, 16
      %v1464 = vrot.slane %v1462, 4
      %v1465 = vshll.u32 %v1119, 16
      %v1467 = vrot.slane %v1465, 5
      %v1468 = vor.u32 %v1464, %v1467
      %v1469 = vrot.slane %v1468, 4
      %v1471 = vshll.u32 %v1120, 16
      %v1473 = vrot.slane %v1471, 5
      %v1474 = vsel %vm366, %v1469, %v1473
      %v1475 = vshrl.u32 %v1120, 16
      %v1477 = vrot.slane %v1475, 4
      %v1478 = vor.u32 %v1477, %v1473
      %v1479 = vrot.slane %v1478, 4
      %v1481 = vshll.u32 %v1121, 16
      %v1483 = vrot.slane %v1481, 5
      %v1484 = vsel %vm366, %v1479, %v1483
      %v1486 = vshrl.u32 %v1122, 16
      %v1488 = vrot.slane %v1486, 4
      %v1489 = vshll.u32 %v1122, 16
      %v1491 = vrot.slane %v1489, 5
      %v1492 = vor.u32 %v1488, %v1491
      %v1493 = vrot.slane %v1492, 4
      %v1495 = vshll.u32 %v1123, 16
      %v1497 = vrot.slane %v1495, 5
      %v1498 = vsel %vm366, %v1493, %v1497
      %v1499 = vshrl.u32 %v1123, 16
      %v1501 = vrot.slane %v1499, 4
      %v1502 = vor.u32 %v1501, %v1497
      %v1503 = vrot.slane %v1502, 4
      %v1505 = vshll.u32 %v1124, 16
      %v1507 = vrot.slane %v1505, 5
      %v1508 = vsel %vm366, %v1503, %v1507
      %1509 = vrot.lane.b32.xlu0 %v1138, 96
      %v1510 = vpop.permute.xlu0 %1509
      %1511 = vrot.lane.b32.xlu0 %v1148, 96
      %v1512 = vpop.permute.xlu0 %1511
      %1513 = vrot.lane.b32.xlu0 %v1162, 96
      %v1514 = vpop.permute.xlu0 %1513
      %1515 = vrot.lane.b32.xlu0 %v1172, 96
      %v1516 = vpop.permute.xlu0 %1515
      %1517 = vrot.lane.b32.xlu0 %v1186, 96
      %v1518 = vpop.permute.xlu0 %1517
      %1519 = vrot.lane.b32.xlu0 %v1196, 96
      %v1520 = vpop.permute.xlu0 %1519
      %1521 = vrot.lane.b32.xlu0 %v1210, 96
      %v1522 = vpop.permute.xlu0 %1521
      %1523 = vrot.lane.b32.xlu0 %v1220, 96
      %v1524 = vpop.permute.xlu0 %1523
      %1525 = vrot.lane.b32.xlu0 %v1234, 96
      %v1526 = vpop.permute.xlu0 %1525
      %1527 = vrot.lane.b32.xlu0 %v1244, 96
      %v1528 = vpop.permute.xlu0 %1527
      %1529 = vrot.lane.b32.xlu0 %v1258, 96
      %v1530 = vpop.permute.xlu0 %1529
      %1531 = vrot.lane.b32.xlu0 %v1268, 96
      %v1532 = vpop.permute.xlu0 %1531
      %1533 = vrot.lane.b32.xlu0 %v1282, 96
      %v1534 = vpop.permute.xlu0 %1533
      %1535 = vrot.lane.b32.xlu0 %v1292, 96
      %v1536 = vpop.permute.xlu0 %1535
      %1537 = vrot.lane.b32.xlu0 %v1306, 96
      %v1538 = vpop.permute.xlu0 %1537
      %1539 = vrot.lane.b32.xlu0 %v1316, 96
      %v1540 = vpop.permute.xlu0 %1539
      %1541 = vrot.lane.b32.xlu0 %v1330, 96
      %v1542 = vpop.permute.xlu0 %1541
      %1543 = vrot.lane.b32.xlu0 %v1340, 96
      %v1544 = vpop.permute.xlu0 %1543
      %1545 = vrot.lane.b32.xlu0 %v1354, 96
      %v1546 = vpop.permute.xlu0 %1545
      %1547 = vrot.lane.b32.xlu0 %v1364, 96
      %v1548 = vpop.permute.xlu0 %1547
      %1549 = vrot.lane.b32.xlu0 %v1378, 96
      %v1550 = vpop.permute.xlu0 %1549
      %1551 = vrot.lane.b32.xlu0 %v1388, 96
      %v1552 = vpop.permute.xlu0 %1551
      %1553 = vrot.lane.b32.xlu0 %v1402, 96
      %v1554 = vpop.permute.xlu0 %1553
      %1555 = vrot.lane.b32.xlu0 %v1412, 96
      %v1556 = vpop.permute.xlu0 %1555
      %1557 = vrot.lane.b32.xlu0 %v1426, 96
      %v1558 = vpop.permute.xlu0 %1557
      %1559 = vrot.lane.b32.xlu0 %v1436, 96
      %v1560 = vpop.permute.xlu0 %1559
      %1561 = vrot.lane.b32.xlu0 %v1450, 96
      %v1562 = vpop.permute.xlu0 %1561
      %1563 = vrot.lane.b32.xlu0 %v1460, 96
      %v1564 = vpop.permute.xlu0 %1563
      %1565 = vrot.lane.b32.xlu0 %v1474, 96
      %v1566 = vpop.permute.xlu0 %1565
      %1567 = vrot.lane.b32.xlu0 %v1484, 96
      %v1568 = vpop.permute.xlu0 %1567
      %1569 = vrot.lane.b32.xlu0 %v1498, 96
      %v1570 = vpop.permute.xlu0 %1569
      %1571 = vrot.lane.b32.xlu0 %v1508, 96
      %v1572 = vpop.permute.xlu0 %1571
      %vm1605 = vcmask 1044224
      %1606 = vst.msk [vmem:[#allocation2] sm:$0xf] %vm1605, %v1510
      %1607 = vst.msk [vmem:[#allocation2 + $0x4] sm:$0xf] %vm1605, %v1512
      %1608 = vst.msk [vmem:[#allocation2 + $0x8] sm:$0xf] %vm1605, %v1514
      %1609 = vst.msk [vmem:[#allocation2 + $0xc] sm:$0xf] %vm1605, %v1516
      %1610 = vst.msk [vmem:[#allocation2 + $0x10] sm:$0xf] %vm1605, %v1518
      %1611 = vst.msk [vmem:[#allocation2 + $0x14] sm:$0xf] %vm1605, %v1520
      %1612 = vst.msk [vmem:[#allocation2 + $0x18] sm:$0xf] %vm1605, %v1522
      %1613 = vst.msk [vmem:[#allocation2 + $0x1c] sm:$0xf] %vm1605, %v1524
      %1614 = vst.msk [vmem:[#allocation2 + $0x20] sm:$0xf] %vm1605, %v1526
      %1615 = vst.msk [vmem:[#allocation2 + $0x24] sm:$0xf] %vm1605, %v1528
      %1616 = vst.msk [vmem:[#allocation2 + $0x28] sm:$0xf] %vm1605, %v1530
      %1617 = vst.msk [vmem:[#allocation2 + $0x2c] sm:$0xf] %vm1605, %v1532
      %1618 = vst.msk [vmem:[#allocation2 + $0x30] sm:$0xf] %vm1605, %v1534
      %1619 = vst.msk [vmem:[#allocation2 + $0x34] sm:$0xf] %vm1605, %v1536
      %1620 = vst.msk [vmem:[#allocation2 + $0x38] sm:$0xf] %vm1605, %v1538
      %1621 = vst.msk [vmem:[#allocation2 + $0x3c] sm:$0xf] %vm1605, %v1540
      %1622 = vst.msk [vmem:[#allocation2 + $0x40] sm:$0xf] %vm1605, %v1542
      %1623 = vst.msk [vmem:[#allocation2 + $0x44] sm:$0xf] %vm1605, %v1544
      %1624 = vst.msk [vmem:[#allocation2 + $0x48] sm:$0xf] %vm1605, %v1546
      %1625 = vst.msk [vmem:[#allocation2 + $0x4c] sm:$0xf] %vm1605, %v1548
      %1626 = vst.msk [vmem:[#allocation2 + $0x50] sm:$0xf] %vm1605, %v1550
      %1627 = vst.msk [vmem:[#allocation2 + $0x54] sm:$0xf] %vm1605, %v1552
      %1628 = vst.msk [vmem:[#allocation2 + $0x58] sm:$0xf] %vm1605, %v1554
      %1629 = vst.msk [vmem:[#allocation2 + $0x5c] sm:$0xf] %vm1605, %v1556
      %1630 = vst.msk [vmem:[#allocation2 + $0x60] sm:$0xf] %vm1605, %v1558
      %1631 = vst.msk [vmem:[#allocation2 + $0x64] sm:$0xf] %vm1605, %v1560
      %1632 = vst.msk [vmem:[#allocation2 + $0x68] sm:$0xf] %vm1605, %v1562
      %1633 = vst.msk [vmem:[#allocation2 + $0x6c] sm:$0xf] %vm1605, %v1564
      %1634 = vst.msk [vmem:[#allocation2 + $0x70] sm:$0xf] %vm1605, %v1566
      %1635 = vst.msk [vmem:[#allocation2 + $0x74] sm:$0xf] %vm1605, %v1568
      %1636 = vst.msk [vmem:[#allocation2 + $0x78] sm:$0xf] %vm1605, %v1570
      %1637 = vst.msk [vmem:[#allocation2 + $0x7c] sm:$0xf] %vm1605, %v1572
      %v1638 = vld [vmem:[#allocation2] sm:$0xf]
      %v1639 = vld [vmem:[#allocation2 + $0x4] sm:$0xf]
      %v1640 = vld [vmem:[#allocation2 + $0x8] sm:$0xf]
      %v1641 = vld [vmem:[#allocation2 + $0xc] sm:$0xf]
      %v1642 = vld [vmem:[#allocation2 + $0x10] sm:$0xf]
      %v1643 = vld [vmem:[#allocation2 + $0x14] sm:$0xf]
      %v1644 = vld [vmem:[#allocation2 + $0x18] sm:$0xf]
      %v1645 = vld [vmem:[#allocation2 + $0x1c] sm:$0xf]
      %v1646 = vld [vmem:[#allocation2 + $0x20] sm:$0xf]
      %v1647 = vld [vmem:[#allocation2 + $0x24] sm:$0xf]
      %v1648 = vld [vmem:[#allocation2 + $0x28] sm:$0xf]
      %v1649 = vld [vmem:[#allocation2 + $0x2c] sm:$0xf]
      %v1650 = vld [vmem:[#allocation2 + $0x30] sm:$0xf]
      %v1651 = vld [vmem:[#allocation2 + $0x34] sm:$0xf]
      %v1652 = vld [vmem:[#allocation2 + $0x38] sm:$0xf]
      %v1653 = vld [vmem:[#allocation2 + $0x3c] sm:$0xf]
      %v1654 = vld [vmem:[#allocation2 + $0x40] sm:$0xf]
      %v1655 = vld [vmem:[#allocation2 + $0x44] sm:$0xf]
      %v1656 = vld [vmem:[#allocation2 + $0x48] sm:$0xf]
      %v1657 = vld [vmem:[#allocation2 + $0x4c] sm:$0xf]
      %v1658 = vld [vmem:[#allocation2 + $0x50] sm:$0xf]
      %v1659 = vld [vmem:[#allocation2 + $0x54] sm:$0xf]
      %v1660 = vld [vmem:[#allocation2 + $0x58] sm:$0xf]
      %v1661 = vld [vmem:[#allocation2 + $0x5c] sm:$0xf]
      %v1662 = vld [vmem:[#allocation2 + $0x60] sm:$0xf]
      %v1663 = vld [vmem:[#allocation2 + $0x64] sm:$0xf]
      %v1664 = vld [vmem:[#allocation2 + $0x68] sm:$0xf]
      %v1665 = vld [vmem:[#allocation2 + $0x6c] sm:$0xf]
      %v1666 = vld [vmem:[#allocation2 + $0x70] sm:$0xf]
      %v1667 = vld [vmem:[#allocation2 + $0x74] sm:$0xf]
      %v1668 = vld [vmem:[#allocation2 + $0x78] sm:$0xf]
      %v1669 = vld [vmem:[#allocation2 + $0x7c] sm:$0xf]
      %v1670 = vld [vmem:[%s2] sm:$0x3]
      %v1671 = vld [vmem:[%s1] sm:$0xff]
      %v1672 = vld [vmem:[%s1 + $0x8] sm:$0xff]
      %v1673 = vld [vmem:[%s1 + $0x10] sm:$0xff]
      %v1674 = vld [vmem:[%s1 + $0x18] sm:$0xff]
      %v1675 = vld [vmem:[%s1 + $0x20] sm:$0xff]
      %v1676 = vld [vmem:[%s1 + $0x28] sm:$0xff]
      %v1677 = vld [vmem:[%s1 + $0x30] sm:$0xff]
      %v1678 = vld [vmem:[%s1 + $0x38] sm:$0xff]
      %v1679 = vld [vmem:[%s1 + $0x40] sm:$0xff]
      %v1680 = vld [vmem:[%s1 + $0x48] sm:$0xff]
      %v1681 = vld [vmem:[%s1 + $0x50] sm:$0xff]
      %v1682 = vld [vmem:[%s1 + $0x58] sm:$0xff]
      %v1683 = vld [vmem:[%s1 + $0x60] sm:$0xff]
      %v1684 = vld [vmem:[%s1 + $0x68] sm:$0xff]
      %v1685 = vld [vmem:[%s1 + $0x70] sm:$0xff]
      %v1686 = vld [vmem:[%s1 + $0x78] sm:$0xff]
      %v1688 = vlaneseq
      %v1689 = vshrl.u32 %v1688, 7
      %v1690 = vsub.s32 0, %v1689
      %v1691 = vrot.slane %v1670, %v1690
      %v1692 = vlaneseq
      %v1693 = vshrl.u32 %v1692, 7
      %v1694 = vsub.s32 1, %v1693
      %v1695 = vrot.slane %v1670, %v1694
      %v1730 = vunpack.c.l.b16 %v1638
      %v1731 = vunpack.c.l.b16 %v1639
      %v1732 = vunpack.c.l.b16 %v1640
      %v1733 = vunpack.c.l.b16 %v1641
      %v1734 = vunpack.c.l.b16 %v1642
      %v1735 = vunpack.c.l.b16 %v1643
      %v1736 = vunpack.c.l.b16 %v1644
      %v1737 = vunpack.c.l.b16 %v1645
      %v1738 = vunpack.c.l.b16 %v1646
      %v1739 = vunpack.c.l.b16 %v1647
      %v1740 = vunpack.c.l.b16 %v1648
      %v1741 = vunpack.c.l.b16 %v1649
      %v1742 = vunpack.c.l.b16 %v1650
      %v1743 = vunpack.c.l.b16 %v1651
      %v1744 = vunpack.c.l.b16 %v1652
      %v1745 = vunpack.c.l.b16 %v1653
      %v1746 = vunpack.c.l.b16 %v1654
      %v1747 = vunpack.c.l.b16 %v1655
      %v1748 = vunpack.c.l.b16 %v1656
      %v1749 = vunpack.c.l.b16 %v1657
      %v1750 = vunpack.c.l.b16 %v1658
      %v1751 = vunpack.c.l.b16 %v1659
      %v1752 = vunpack.c.l.b16 %v1660
      %v1753 = vunpack.c.l.b16 %v1661
      %v1754 = vunpack.c.l.b16 %v1662
      %v1755 = vunpack.c.l.b16 %v1663
      %v1756 = vunpack.c.l.b16 %v1664
      %v1757 = vunpack.c.l.b16 %v1665
      %v1758 = vunpack.c.l.b16 %v1666
      %v1759 = vunpack.c.l.b16 %v1667
      %v1760 = vunpack.c.l.b16 %v1668
      %v1761 = vunpack.c.l.b16 %v1669
      %v1762 = vpack.c.b16 %v1731, %v1730
      %v1763 = vpack.c.b16 %v1733, %v1732
      %v1764 = vpack.c.b16 %v1735, %v1734
      %v1765 = vpack.c.b16 %v1737, %v1736
      %v1766 = vpack.c.b16 %v1739, %v1738
      %v1767 = vpack.c.b16 %v1741, %v1740
      %v1768 = vpack.c.b16 %v1743, %v1742
      %v1769 = vpack.c.b16 %v1745, %v1744
      %v1770 = vpack.c.b16 %v1747, %v1746
      %v1771 = vpack.c.b16 %v1749, %v1748
      %v1772 = vpack.c.b16 %v1751, %v1750
      %v1773 = vpack.c.b16 %v1753, %v1752
      %v1774 = vpack.c.b16 %v1755, %v1754
      %v1775 = vpack.c.b16 %v1757, %v1756
      %v1776 = vpack.c.b16 %v1759, %v1758
      %v1777 = vpack.c.b16 %v1761, %v1760
      %v1810 = vunpack.c.l.b16 %v1671
      %v1811 = vunpack.c.h.b16 %v1671
      %v1812 = vunpack.c.l.b16 %v1672
      %v1813 = vunpack.c.h.b16 %v1672
      %v1814 = vunpack.c.l.b16 %v1673
      %v1815 = vunpack.c.h.b16 %v1673
      %v1816 = vunpack.c.l.b16 %v1674
      %v1817 = vunpack.c.h.b16 %v1674
      %v1818 = vunpack.c.l.b16 %v1675
      %v1819 = vunpack.c.h.b16 %v1675
      %v1820 = vunpack.c.l.b16 %v1676
      %v1821 = vunpack.c.h.b16 %v1676
      %v1822 = vunpack.c.l.b16 %v1677
      %v1823 = vunpack.c.h.b16 %v1677
      %v1824 = vunpack.c.l.b16 %v1678
      %v1825 = vunpack.c.h.b16 %v1678
      %v1826 = vunpack.c.l.b16 %v1679
      %v1827 = vunpack.c.h.b16 %v1679
      %v1828 = vunpack.c.l.b16 %v1680
      %v1829 = vunpack.c.h.b16 %v1680
      %v1830 = vunpack.c.l.b16 %v1681
      %v1831 = vunpack.c.h.b16 %v1681
      %v1832 = vunpack.c.l.b16 %v1682
      %v1833 = vunpack.c.h.b16 %v1682
      %v1834 = vunpack.c.l.b16 %v1683
      %v1835 = vunpack.c.h.b16 %v1683
      %v1836 = vunpack.c.l.b16 %v1684
      %v1837 = vunpack.c.h.b16 %v1684
      %v1838 = vunpack.c.l.b16 %v1685
      %v1839 = vunpack.c.h.b16 %v1685
      %v1840 = vunpack.c.l.b16 %v1686
      %v1841 = vunpack.c.h.b16 %v1686
      %v1842 = vpack.c.b16 %v1812, %v1810
      %v1843 = vpack.c.b16 %v1813, %v1811
      %v1844 = vpack.c.b16 %v1816, %v1814
      %v1845 = vpack.c.b16 %v1817, %v1815
      %v1846 = vpack.c.b16 %v1820, %v1818
      %v1847 = vpack.c.b16 %v1821, %v1819
      %v1848 = vpack.c.b16 %v1824, %v1822
      %v1849 = vpack.c.b16 %v1825, %v1823
      %v1850 = vpack.c.b16 %v1828, %v1826
      %v1851 = vpack.c.b16 %v1829, %v1827
      %v1852 = vpack.c.b16 %v1832, %v1830
      %v1853 = vpack.c.b16 %v1833, %v1831
      %v1854 = vpack.c.b16 %v1836, %v1834
      %v1855 = vpack.c.b16 %v1837, %v1835
      %v1856 = vpack.c.b16 %v1840, %v1838
      %v1857 = vpack.c.b16 %v1841, %v1839
      %1874 = vmatprep.subr.bf16.mxu0 %v1857
      %1875 = vmatpush1.bf16.msra.mxu0 %v1856
      %1876 = vmatprep.subr.bf16.mxu0 %v1855
      %1877 = vmatpush1.bf16.msra.mxu0 %v1854
      %1878 = vmatprep.subr.bf16.mxu0 %v1853
      %1879 = vmatpush1.bf16.msra.mxu0 %v1852
      %1880 = vmatprep.subr.bf16.mxu0 %v1851
      %1881 = vmatpush1.bf16.msra.mxu0 %v1850
      %1882 = vmatprep.subr.bf16.mxu0 %v1849
      %1883 = vmatpush1.bf16.msra.mxu0 %v1848
      %1884 = vmatprep.subr.bf16.mxu0 %v1847
      %1885 = vmatpush1.bf16.msra.mxu0 %v1846
      %1886 = vmatprep.subr.bf16.mxu0 %v1845
      %1887 = vmatpush1.bf16.msra.mxu0 %v1844
      %1888 = vmatprep.subr.bf16.mxu0 %v1843
      %1889 = vmatpush1.bf16.msra.mxu0 %v1842
      %1890 = vmatprep.subr.bf16.mxu0 0
      %1891 = vmatpush2.bf16.msra.mxu0 0
      %1892 = vmatprep.subr.bf16.mxu0 0
      %1893 = vmatpush2.bf16.msra.mxu0 0
      %1894 = vmatprep.subr.bf16.mxu0 0
      %1895 = vmatpush2.bf16.msra.mxu0 0
      %1896 = vmatprep.subr.bf16.mxu0 0
      %1897 = vmatpush2.bf16.msra.mxu0 0
      %1898 = vmatprep.subr.bf16.mxu0 0
      %1899 = vmatpush2.bf16.msra.mxu0 0
      %1900 = vmatprep.subr.bf16.mxu0 0
      %1901 = vmatpush2.bf16.msra.mxu0 0
      %1902 = vmatprep.subr.bf16.mxu0 0
      %1903 = vmatpush2.bf16.msra.mxu0 0
      %1904 = vmatprep.subr.bf16.mxu0 0
      %1905 = vmatpush2.bf16.msra.mxu0 0
      %1906 = vmatprep.mubr.bf16.mxu0 0
      %1907 = vmatmul.mubr.bf16.gmra.mxu0 %v1762
      %v1908 = vpop.f32.mrf.mxu0
      %v1909 = vadd.f32 %v1691, %v1908
      %v1910 = vpop.f32.mrf.mxu0
      %v1911 = vadd.f32 %v1695, %v1910
      %v1912 = vpop.f32.mrf.mxu0
      %v1913 = vadd.f32 %v1691, %v1912
      %v1914 = vpop.f32.mrf.mxu0
      %v1915 = vadd.f32 %v1695, %v1914
      %1916 = vmatprep.mubr.bf16.mxu0 0
      %1917 = vmatmul.mubr.bf16.gmra.mxu0 %v1763
      %v1918 = vpop.f32.mrf.mxu0
      %v1919 = vadd.f32 %v1691, %v1918
      %v1920 = vpop.f32.mrf.mxu0
      %v1921 = vadd.f32 %v1695, %v1920
      %v1922 = vpop.f32.mrf.mxu0
      %v1923 = vadd.f32 %v1691, %v1922
      %v1924 = vpop.f32.mrf.mxu0
      %v1925 = vadd.f32 %v1695, %v1924
      %1926 = vmatprep.mubr.bf16.mxu0 0
      %1927 = vmatmul.mubr.bf16.gmra.mxu0 %v1764
      %v1928 = vpop.f32.mrf.mxu0
      %v1929 = vadd.f32 %v1691, %v1928
      %v1930 = vpop.f32.mrf.mxu0
      %v1931 = vadd.f32 %v1695, %v1930
      %v1932 = vpop.f32.mrf.mxu0
      %v1933 = vadd.f32 %v1691, %v1932
      %v1934 = vpop.f32.mrf.mxu0
      %v1935 = vadd.f32 %v1695, %v1934
      %1936 = vmatprep.mubr.bf16.mxu0 0
      %1937 = vmatmul.mubr.bf16.gmra.mxu0 %v1765
      %v1938 = vpop.f32.mrf.mxu0
      %v1939 = vadd.f32 %v1691, %v1938
      %v1940 = vpop.f32.mrf.mxu0
      %v1941 = vadd.f32 %v1695, %v1940
      %v1942 = vpop.f32.mrf.mxu0
      %v1943 = vadd.f32 %v1691, %v1942
      %v1944 = vpop.f32.mrf.mxu0
      %v1945 = vadd.f32 %v1695, %v1944
      %1946 = vmatprep.mubr.bf16.mxu0 0
      %1947 = vmatmul.mubr.bf16.gmra.mxu0 %v1766
      %v1948 = vpop.f32.mrf.mxu0
      %v1949 = vadd.f32 %v1691, %v1948
      %v1950 = vpop.f32.mrf.mxu0
      %v1951 = vadd.f32 %v1695, %v1950
      %v1952 = vpop.f32.mrf.mxu0
      %v1953 = vadd.f32 %v1691, %v1952
      %v1954 = vpop.f32.mrf.mxu0
      %v1955 = vadd.f32 %v1695, %v1954
      %1956 = vmatprep.mubr.bf16.mxu0 0
      %1957 = vmatmul.mubr.bf16.gmra.mxu0 %v1767
      %v1958 = vpop.f32.mrf.mxu0
      %v1959 = vadd.f32 %v1691, %v1958
      %v1960 = vpop.f32.mrf.mxu0
      %v1961 = vadd.f32 %v1695, %v1960
      %v1962 = vpop.f32.mrf.mxu0
      %v1963 = vadd.f32 %v1691, %v1962
      %v1964 = vpop.f32.mrf.mxu0
      %v1965 = vadd.f32 %v1695, %v1964
      %1966 = vmatprep.mubr.bf16.mxu0 0
      %1967 = vmatmul.mubr.bf16.gmra.mxu0 %v1768
      %v1968 = vpop.f32.mrf.mxu0
      %v1969 = vadd.f32 %v1691, %v1968
      %v1970 = vpop.f32.mrf.mxu0
      %v1971 = vadd.f32 %v1695, %v1970
      %v1972 = vpop.f32.mrf.mxu0
      %v1973 = vadd.f32 %v1691, %v1972
      %v1974 = vpop.f32.mrf.mxu0
      %v1975 = vadd.f32 %v1695, %v1974
      %1976 = vmatprep.mubr.bf16.mxu0 0
      %1977 = vmatmul.mubr.bf16.gmra.mxu0 %v1769
      %v1978 = vpop.f32.mrf.mxu0
      %v1979 = vadd.f32 %v1691, %v1978
      %v1980 = vpop.f32.mrf.mxu0
      %v1981 = vadd.f32 %v1695, %v1980
      %v1982 = vpop.f32.mrf.mxu0
      %v1983 = vadd.f32 %v1691, %v1982
      %v1984 = vpop.f32.mrf.mxu0
      %v1985 = vadd.f32 %v1695, %v1984
      %1986 = vmatprep.mubr.bf16.mxu0 0
      %1987 = vmatmul.mubr.bf16.gmra.mxu0 %v1770
      %v1988 = vpop.f32.mrf.mxu0
      %v1989 = vadd.f32 %v1691, %v1988
      %v1990 = vpop.f32.mrf.mxu0
      %v1991 = vadd.f32 %v1695, %v1990
      %v1992 = vpop.f32.mrf.mxu0
      %v1993 = vadd.f32 %v1691, %v1992
      %v1994 = vpop.f32.mrf.mxu0
      %v1995 = vadd.f32 %v1695, %v1994
      %1996 = vmatprep.mubr.bf16.mxu0 0
      %1997 = vmatmul.mubr.bf16.gmra.mxu0 %v1771
      %v1998 = vpop.f32.mrf.mxu0
      %v1999 = vadd.f32 %v1691, %v1998
      %v2000 = vpop.f32.mrf.mxu0
      %v2001 = vadd.f32 %v1695, %v2000
      %v2002 = vpop.f32.mrf.mxu0
      %v2003 = vadd.f32 %v1691, %v2002
      %v2004 = vpop.f32.mrf.mxu0
      %v2005 = vadd.f32 %v1695, %v2004
      %2006 = vmatprep.mubr.bf16.mxu0 0
      %2007 = vmatmul.mubr.bf16.gmra.mxu0 %v1772
      %v2008 = vpop.f32.mrf.mxu0
      %v2009 = vadd.f32 %v1691, %v2008
      %v2010 = vpop.f32.mrf.mxu0
      %v2011 = vadd.f32 %v1695, %v2010
      %v2012 = vpop.f32.mrf.mxu0
      %v2013 = vadd.f32 %v1691, %v2012
      %v2014 = vpop.f32.mrf.mxu0
      %v2015 = vadd.f32 %v1695, %v2014
      %2016 = vmatprep.mubr.bf16.mxu0 0
      %2017 = vmatmul.mubr.bf16.gmra.mxu0 %v1773
      %v2018 = vpop.f32.mrf.mxu0
      %v2019 = vadd.f32 %v1691, %v2018
      %v2020 = vpop.f32.mrf.mxu0
      %v2021 = vadd.f32 %v1695, %v2020
      %v2022 = vpop.f32.mrf.mxu0
      %v2023 = vadd.f32 %v1691, %v2022
      %v2024 = vpop.f32.mrf.mxu0
      %v2025 = vadd.f32 %v1695, %v2024
      %2026 = vmatprep.mubr.bf16.mxu0 0
      %2027 = vmatmul.mubr.bf16.gmra.mxu0 %v1774
      %v2028 = vpop.f32.mrf.mxu0
      %v2029 = vadd.f32 %v1691, %v2028
      %v2030 = vpop.f32.mrf.mxu0
      %v2031 = vadd.f32 %v1695, %v2030
      %v2032 = vpop.f32.mrf.mxu0
      %v2033 = vadd.f32 %v1691, %v2032
      %v2034 = vpop.f32.mrf.mxu0
      %v2035 = vadd.f32 %v1695, %v2034
      %2036 = vmatprep.mubr.bf16.mxu0 0
      %2037 = vmatmul.mubr.bf16.gmra.mxu0 %v1775
      %v2038 = vpop.f32.mrf.mxu0
      %v2039 = vadd.f32 %v1691, %v2038
      %v2040 = vpop.f32.mrf.mxu0
      %v2041 = vadd.f32 %v1695, %v2040
      %v2042 = vpop.f32.mrf.mxu0
      %v2043 = vadd.f32 %v1691, %v2042
      %v2044 = vpop.f32.mrf.mxu0
      %v2045 = vadd.f32 %v1695, %v2044
      %2046 = vmatprep.mubr.bf16.mxu0 0
      %2047 = vmatmul.mubr.bf16.gmra.mxu0 %v1776
      %v2048 = vpop.f32.mrf.mxu0
      %v2049 = vadd.f32 %v1691, %v2048
      %v2050 = vpop.f32.mrf.mxu0
      %v2051 = vadd.f32 %v1695, %v2050
      %v2052 = vpop.f32.mrf.mxu0
      %v2053 = vadd.f32 %v1691, %v2052
      %v2054 = vpop.f32.mrf.mxu0
      %v2055 = vadd.f32 %v1695, %v2054
      %2056 = vmatprep.mubr.bf16.mxu0 0
      %2057 = vmatmul.mubr.bf16.gmra.mxu0 %v1777
      %v2058 = vpop.f32.mrf.mxu0
      %v2059 = vadd.f32 %v1691, %v2058
      %v2060 = vpop.f32.mrf.mxu0
      %v2061 = vadd.f32 %v1695, %v2060
      %v2062 = vpop.f32.mrf.mxu0
      %v2063 = vadd.f32 %v1691, %v2062
      %v2064 = vpop.f32.mrf.mxu0
      %v2065 = vadd.f32 %v1695, %v2064
      %2066 = vdwg.mxu0
      %vm2067 = vcmp.ge.f32.partialorder %v1909, 0.0
      %vm2068 = vcmp.ge.f32.partialorder %v1911, 0.0
      %vm2069 = vcmp.ge.f32.partialorder %v1913, 0.0
      %vm2070 = vcmp.ge.f32.partialorder %v1915, 0.0
      %vm2071 = vcmp.ge.f32.partialorder %v1919, 0.0
      %vm2072 = vcmp.ge.f32.partialorder %v1921, 0.0
      %vm2073 = vcmp.ge.f32.partialorder %v1923, 0.0
      %vm2074 = vcmp.ge.f32.partialorder %v1925, 0.0
      %vm2075 = vcmp.ge.f32.partialorder %v1929, 0.0
      %vm2076 = vcmp.ge.f32.partialorder %v1931, 0.0
      %vm2077 = vcmp.ge.f32.partialorder %v1933, 0.0
      %vm2078 = vcmp.ge.f32.partialorder %v1935, 0.0
      %vm2079 = vcmp.ge.f32.partialorder %v1939, 0.0
      %vm2080 = vcmp.ge.f32.partialorder %v1941, 0.0
      %vm2081 = vcmp.ge.f32.partialorder %v1943, 0.0
      %vm2082 = vcmp.ge.f32.partialorder %v1945, 0.0
      %vm2083 = vcmp.ge.f32.partialorder %v1949, 0.0
      %vm2084 = vcmp.ge.f32.partialorder %v1951, 0.0
      %vm2085 = vcmp.ge.f32.partialorder %v1953, 0.0
      %vm2086 = vcmp.ge.f32.partialorder %v1955, 0.0
      %vm2087 = vcmp.ge.f32.partialorder %v1959, 0.0
      %vm2088 = vcmp.ge.f32.partialorder %v1961, 0.0
      %vm2089 = vcmp.ge.f32.partialorder %v1963, 0.0
      %vm2090 = vcmp.ge.f32.partialorder %v1965, 0.0
      %vm2091 = vcmp.ge.f32.partialorder %v1969, 0.0
      %vm2092 = vcmp.ge.f32.partialorder %v1971, 0.0
      %vm2093 = vcmp.ge.f32.partialorder %v1973, 0.0
      %vm2094 = vcmp.ge.f32.partialorder %v1975, 0.0
      %vm2095 = vcmp.ge.f32.partialorder %v1979, 0.0
      %vm2096 = vcmp.ge.f32.partialorder %v1981, 0.0
      %vm2097 = vcmp.ge.f32.partialorder %v1983, 0.0
      %vm2098 = vcmp.ge.f32.partialorder %v1985, 0.0
      %vm2099 = vcmp.ge.f32.partialorder %v1989, 0.0
      %vm2100 = vcmp.ge.f32.partialorder %v1991, 0.0
      %vm2101 = vcmp.ge.f32.partialorder %v1993, 0.0
      %vm2102 = vcmp.ge.f32.partialorder %v1995, 0.0
      %vm2103 = vcmp.ge.f32.partialorder %v1999, 0.0
      %vm2104 = vcmp.ge.f32.partialorder %v2001, 0.0
      %vm2105 = vcmp.ge.f32.partialorder %v2003, 0.0
      %vm2106 = vcmp.ge.f32.partialorder %v2005, 0.0
      %vm2107 = vcmp.ge.f32.partialorder %v2009, 0.0
      %vm2108 = vcmp.ge.f32.partialorder %v2011, 0.0
      %vm2109 = vcmp.ge.f32.partialorder %v2013, 0.0
      %vm2110 = vcmp.ge.f32.partialorder %v2015, 0.0
      %vm2111 = vcmp.ge.f32.partialorder %v2019, 0.0
      %vm2112 = vcmp.ge.f32.partialorder %v2021, 0.0
      %vm2113 = vcmp.ge.f32.partialorder %v2023, 0.0
      %vm2114 = vcmp.ge.f32.partialorder %v2025, 0.0
      %vm2115 = vcmp.ge.f32.partialorder %v2029, 0.0
      %vm2116 = vcmp.ge.f32.partialorder %v2031, 0.0
      %vm2117 = vcmp.ge.f32.partialorder %v2033, 0.0
      %vm2118 = vcmp.ge.f32.partialorder %v2035, 0.0
      %vm2119 = vcmp.ge.f32.partialorder %v2039, 0.0
      %vm2120 = vcmp.ge.f32.partialorder %v2041, 0.0
      %vm2121 = vcmp.ge.f32.partialorder %v2043, 0.0
      %vm2122 = vcmp.ge.f32.partialorder %v2045, 0.0
      %vm2123 = vcmp.ge.f32.partialorder %v2049, 0.0
      %vm2124 = vcmp.ge.f32.partialorder %v2051, 0.0
      %vm2125 = vcmp.ge.f32.partialorder %v2053, 0.0
      %vm2126 = vcmp.ge.f32.partialorder %v2055, 0.0
      %vm2127 = vcmp.ge.f32.partialorder %v2059, 0.0
      %vm2128 = vcmp.ge.f32.partialorder %v2061, 0.0
      %vm2129 = vcmp.ge.f32.partialorder %v2063, 0.0
      %vm2130 = vcmp.ge.f32.partialorder %v2065, 0.0
      %v2131 = vmul.f32 %v1909, 0.2
      %v2132 = vmul.f32 %v1911, 0.2
      %v2133 = vmul.f32 %v1913, 0.2
      %v2134 = vmul.f32 %v1915, 0.2
      %v2135 = vmul.f32 %v1919, 0.2
      %v2136 = vmul.f32 %v1921, 0.2
      %v2137 = vmul.f32 %v1923, 0.2
      %v2138 = vmul.f32 %v1925, 0.2
      %v2139 = vmul.f32 %v1929, 0.2
      %v2140 = vmul.f32 %v1931, 0.2
      %v2141 = vmul.f32 %v1933, 0.2
      %v2142 = vmul.f32 %v1935, 0.2
      %v2143 = vmul.f32 %v1939, 0.2
      %v2144 = vmul.f32 %v1941, 0.2
      %v2145 = vmul.f32 %v1943, 0.2
      %v2146 = vmul.f32 %v1945, 0.2
      %v2147 = vmul.f32 %v1949, 0.2
      %v2148 = vmul.f32 %v1951, 0.2
      %v2149 = vmul.f32 %v1953, 0.2
      %v2150 = vmul.f32 %v1955, 0.2
      %v2151 = vmul.f32 %v1959, 0.2
      %v2152 = vmul.f32 %v1961, 0.2
      %v2153 = vmul.f32 %v1963, 0.2
      %v2154 = vmul.f32 %v1965, 0.2
      %v2155 = vmul.f32 %v1969, 0.2
      %v2156 = vmul.f32 %v1971, 0.2
      %v2157 = vmul.f32 %v1973, 0.2
      %v2158 = vmul.f32 %v1975, 0.2
      %v2159 = vmul.f32 %v1979, 0.2
      %v2160 = vmul.f32 %v1981, 0.2
      %v2161 = vmul.f32 %v1983, 0.2
      %v2162 = vmul.f32 %v1985, 0.2
      %v2163 = vmul.f32 %v1989, 0.2
      %v2164 = vmul.f32 %v1991, 0.2
      %v2165 = vmul.f32 %v1993, 0.2
      %v2166 = vmul.f32 %v1995, 0.2
      %v2167 = vmul.f32 %v1999, 0.2
      %v2168 = vmul.f32 %v2001, 0.2
      %v2169 = vmul.f32 %v2003, 0.2
      %v2170 = vmul.f32 %v2005, 0.2
      %v2171 = vmul.f32 %v2009, 0.2
      %v2172 = vmul.f32 %v2011, 0.2
      %v2173 = vmul.f32 %v2013, 0.2
      %v2174 = vmul.f32 %v2015, 0.2
      %v2175 = vmul.f32 %v2019, 0.2
      %v2176 = vmul.f32 %v2021, 0.2
      %v2177 = vmul.f32 %v2023, 0.2
      %v2178 = vmul.f32 %v2025, 0.2
      %v2179 = vmul.f32 %v2029, 0.2
      %v2180 = vmul.f32 %v2031, 0.2
      %v2181 = vmul.f32 %v2033, 0.2
      %v2182 = vmul.f32 %v2035, 0.2
      %v2183 = vmul.f32 %v2039, 0.2
      %v2184 = vmul.f32 %v2041, 0.2
      %v2185 = vmul.f32 %v2043, 0.2
      %v2186 = vmul.f32 %v2045, 0.2
      %v2187 = vmul.f32 %v2049, 0.2
      %v2188 = vmul.f32 %v2051, 0.2
      %v2189 = vmul.f32 %v2053, 0.2
      %v2190 = vmul.f32 %v2055, 0.2
      %v2191 = vmul.f32 %v2059, 0.2
      %v2192 = vmul.f32 %v2061, 0.2
      %v2193 = vmul.f32 %v2063, 0.2
      %v2194 = vmul.f32 %v2065, 0.2
      %v2195 = vsel %vm2067, %v1909, %v2131
      %v2196 = vsel %vm2068, %v1911, %v2132
      %v2197 = vsel %vm2069, %v1913, %v2133
      %v2198 = vsel %vm2070, %v1915, %v2134
      %v2199 = vsel %vm2071, %v1919, %v2135
      %v2200 = vsel %vm2072, %v1921, %v2136
      %v2201 = vsel %vm2073, %v1923, %v2137
      %v2202 = vsel %vm2074, %v1925, %v2138
      %v2203 = vsel %vm2075, %v1929, %v2139
      %v2204 = vsel %vm2076, %v1931, %v2140
      %v2205 = vsel %vm2077, %v1933, %v2141
      %v2206 = vsel %vm2078, %v1935, %v2142
      %v2207 = vsel %vm2079, %v1939, %v2143
      %v2208 = vsel %vm2080, %v1941, %v2144
      %v2209 = vsel %vm2081, %v1943, %v2145
      %v2210 = vsel %vm2082, %v1945, %v2146
      %v2211 = vsel %vm2083, %v1949, %v2147
      %v2212 = vsel %vm2084, %v1951, %v2148
      %v2213 = vsel %vm2085, %v1953, %v2149
      %v2214 = vsel %vm2086, %v1955, %v2150
      %v2215 = vsel %vm2087, %v1959, %v2151
      %v2216 = vsel %vm2088, %v1961, %v2152
      %v2217 = vsel %vm2089, %v1963, %v2153
      %v2218 = vsel %vm2090, %v1965, %v2154
      %v2219 = vsel %vm2091, %v1969, %v2155
      %v2220 = vsel %vm2092, %v1971, %v2156
      %v2221 = vsel %vm2093, %v1973, %v2157
      %v2222 = vsel %vm2094, %v1975, %v2158
      %v2223 = vsel %vm2095, %v1979, %v2159
      %v2224 = vsel %vm2096, %v1981, %v2160
      %v2225 = vsel %vm2097, %v1983, %v2161
      %v2226 = vsel %vm2098, %v1985, %v2162
      %v2227 = vsel %vm2099, %v1989, %v2163
      %v2228 = vsel %vm2100, %v1991, %v2164
      %v2229 = vsel %vm2101, %v1993, %v2165
      %v2230 = vsel %vm2102, %v1995, %v2166
      %v2231 = vsel %vm2103, %v1999, %v2167
      %v2232 = vsel %vm2104, %v2001, %v2168
      %v2233 = vsel %vm2105, %v2003, %v2169
      %v2234 = vsel %vm2106, %v2005, %v2170
      %v2235 = vsel %vm2107, %v2009, %v2171
      %v2236 = vsel %vm2108, %v2011, %v2172
      %v2237 = vsel %vm2109, %v2013, %v2173
      %v2238 = vsel %vm2110, %v2015, %v2174
      %v2239 = vsel %vm2111, %v2019, %v2175
      %v2240 = vsel %vm2112, %v2021, %v2176
      %v2241 = vsel %vm2113, %v2023, %v2177
      %v2242 = vsel %vm2114, %v2025, %v2178
      %v2243 = vsel %vm2115, %v2029, %v2179
      %v2244 = vsel %vm2116, %v2031, %v2180
      %v2245 = vsel %vm2117, %v2033, %v2181
      %v2246 = vsel %vm2118, %v2035, %v2182
      %v2247 = vsel %vm2119, %v2039, %v2183
      %v2248 = vsel %vm2120, %v2041, %v2184
      %v2249 = vsel %vm2121, %v2043, %v2185
      %v2250 = vsel %vm2122, %v2045, %v2186
      %v2251 = vsel %vm2123, %v2049, %v2187
      %v2252 = vsel %vm2124, %v2051, %v2188
      %v2253 = vsel %vm2125, %v2053, %v2189
      %v2254 = vsel %vm2126, %v2055, %v2190
      %v2255 = vsel %vm2127, %v2059, %v2191
      %v2256 = vsel %vm2128, %v2061, %v2192
      %v2257 = vsel %vm2129, %v2063, %v2193
      %v2258 = vsel %vm2130, %v2065, %v2194
      %v2259 = vadd.f32 %v2195, %v2197
      %v2260 = vadd.f32 %v2259, %v2199
      %v2261 = vadd.f32 %v2260, %v2201
      %v2262 = vadd.f32 %v2261, %v2203
      %v2263 = vadd.f32 %v2262, %v2205
      %v2264 = vadd.f32 %v2263, %v2207
      %v2265 = vadd.f32 %v2264, %v2209
      %v2266 = vadd.f32 %v2265, %v2211
      %v2267 = vadd.f32 %v2266, %v2213
      %v2268 = vadd.f32 %v2267, %v2215
      %v2269 = vadd.f32 %v2268, %v2217
      %v2270 = vadd.f32 %v2269, %v2219
      %v2271 = vadd.f32 %v2270, %v2221
      %v2272 = vadd.f32 %v2271, %v2223
      %v2273 = vadd.f32 %v2272, %v2225
      %v2274 = vadd.f32 %v2273, %v2227
      %v2275 = vadd.f32 %v2274, %v2229
      %v2276 = vadd.f32 %v2275, %v2231
      %v2277 = vadd.f32 %v2276, %v2233
      %v2278 = vadd.f32 %v2277, %v2235
      %v2279 = vadd.f32 %v2278, %v2237
      %v2280 = vadd.f32 %v2279, %v2239
      %v2281 = vadd.f32 %v2280, %v2241
      %v2282 = vadd.f32 %v2281, %v2243
      %v2283 = vadd.f32 %v2282, %v2245
      %v2284 = vadd.f32 %v2283, %v2247
      %v2285 = vadd.f32 %v2284, %v2249
      %v2286 = vadd.f32 %v2285, %v2251
      %v2287 = vadd.f32 %v2286, %v2253
      %v2288 = vadd.f32 %v2287, %v2255
      %v2289 = vadd.f32 %v2288, %v2257
      %v2290 = vrot.slane %v2289, 4
      %v2291 = vadd.f32 %v2289, %v2290
      %v2292 = vrot.slane %v2291, 2
      %v2293 = vadd.f32 %v2291, %v2292
      %v2294 = vrot.slane %v2293, 1
      %v2295 = vadd.f32 %v2293, %v2294
      %v2296 = vadd.f32 %v2196, %v2198
      %v2297 = vadd.f32 %v2296, %v2200
      %v2298 = vadd.f32 %v2297, %v2202
      %v2299 = vadd.f32 %v2298, %v2204
      %v2300 = vadd.f32 %v2299, %v2206
      %v2301 = vadd.f32 %v2300, %v2208
      %v2302 = vadd.f32 %v2301, %v2210
      %v2303 = vadd.f32 %v2302, %v2212
      %v2304 = vadd.f32 %v2303, %v2214
      %v2305 = vadd.f32 %v2304, %v2216
      %v2306 = vadd.f32 %v2305, %v2218
      %v2307 = vadd.f32 %v2306, %v2220
      %v2308 = vadd.f32 %v2307, %v2222
      %v2309 = vadd.f32 %v2308, %v2224
      %v2310 = vadd.f32 %v2309, %v2226
      %v2311 = vadd.f32 %v2310, %v2228
      %v2312 = vadd.f32 %v2311, %v2230
      %v2313 = vadd.f32 %v2312, %v2232
      %v2314 = vadd.f32 %v2313, %v2234
      %v2315 = vadd.f32 %v2314, %v2236
      %v2316 = vadd.f32 %v2315, %v2238
      %v2317 = vadd.f32 %v2316, %v2240
      %v2318 = vadd.f32 %v2317, %v2242
      %v2319 = vadd.f32 %v2318, %v2244
      %v2320 = vadd.f32 %v2319, %v2246
      %v2321 = vadd.f32 %v2320, %v2248
      %v2322 = vadd.f32 %v2321, %v2250
      %v2323 = vadd.f32 %v2322, %v2252
      %v2324 = vadd.f32 %v2323, %v2254
      %v2325 = vadd.f32 %v2324, %v2256
      %v2326 = vadd.f32 %v2325, %v2258
      %v2327 = vrot.slane %v2326, 4
      %v2328 = vadd.f32 %v2326, %v2327
      %v2329 = vrot.slane %v2328, 2
      %v2330 = vadd.f32 %v2328, %v2329
      %v2331 = vrot.slane %v2330, 1
      %v2332 = vadd.f32 %v2330, %v2331
      %v2333 = vadd.f32 %v2295, 0.0
      %v2334 = vadd.f32 %v2332, 0.0
      %v2335 = vmul.f32 %v2195, %v2195
      %v2336 = vmul.f32 %v2196, %v2196
      %v2337 = vmul.f32 %v2197, %v2197
      %v2338 = vmul.f32 %v2198, %v2198
      %v2339 = vmul.f32 %v2199, %v2199
      %v2340 = vmul.f32 %v2200, %v2200
      %v2341 = vmul.f32 %v2201, %v2201
      %v2342 = vmul.f32 %v2202, %v2202
      %v2343 = vmul.f32 %v2203, %v2203
      %v2344 = vmul.f32 %v2204, %v2204
      %v2345 = vmul.f32 %v2205, %v2205
      %v2346 = vmul.f32 %v2206, %v2206
      %v2347 = vmul.f32 %v2207, %v2207
      %v2348 = vmul.f32 %v2208, %v2208
      %v2349 = vmul.f32 %v2209, %v2209
      %v2350 = vmul.f32 %v2210, %v2210
      %v2351 = vmul.f32 %v2211, %v2211
      %v2352 = vmul.f32 %v2212, %v2212
      %v2353 = vmul.f32 %v2213, %v2213
      %v2354 = vmul.f32 %v2214, %v2214
      %v2355 = vmul.f32 %v2215, %v2215
      %v2356 = vmul.f32 %v2216, %v2216
      %v2357 = vmul.f32 %v2217, %v2217
      %v2358 = vmul.f32 %v2218, %v2218
      %v2359 = vmul.f32 %v2219, %v2219
      %v2360 = vmul.f32 %v2220, %v2220
      %v2361 = vmul.f32 %v2221, %v2221
      %v2362 = vmul.f32 %v2222, %v2222
      %v2363 = vmul.f32 %v2223, %v2223
      %v2364 = vmul.f32 %v2224, %v2224
      %v2365 = vmul.f32 %v2225, %v2225
      %v2366 = vmul.f32 %v2226, %v2226
      %v2367 = vmul.f32 %v2227, %v2227
      %v2368 = vmul.f32 %v2228, %v2228
      %v2369 = vmul.f32 %v2229, %v2229
      %v2370 = vmul.f32 %v2230, %v2230
      %v2371 = vmul.f32 %v2231, %v2231
      %v2372 = vmul.f32 %v2232, %v2232
      %v2373 = vmul.f32 %v2233, %v2233
      %v2374 = vmul.f32 %v2234, %v2234
      %v2375 = vmul.f32 %v2235, %v2235
      %v2376 = vmul.f32 %v2236, %v2236
      %v2377 = vmul.f32 %v2237, %v2237
      %v2378 = vmul.f32 %v2238, %v2238
      %v2379 = vmul.f32 %v2239, %v2239
      %v2380 = vmul.f32 %v2240, %v2240
      %v2381 = vmul.f32 %v2241, %v2241
      %v2382 = vmul.f32 %v2242, %v2242
      %v2383 = vmul.f32 %v2243, %v2243
      %v2384 = vmul.f32 %v2244, %v2244
      %v2385 = vmul.f32 %v2245, %v2245
      %v2386 = vmul.f32 %v2246, %v2246
      %v2387 = vmul.f32 %v2247, %v2247
      %v2388 = vmul.f32 %v2248, %v2248
      %v2389 = vmul.f32 %v2249, %v2249
      %v2390 = vmul.f32 %v2250, %v2250
      %v2391 = vmul.f32 %v2251, %v2251
      %v2392 = vmul.f32 %v2252, %v2252
      %v2393 = vmul.f32 %v2253, %v2253
      %v2394 = vmul.f32 %v2254, %v2254
      %v2395 = vmul.f32 %v2255, %v2255
      %v2396 = vmul.f32 %v2256, %v2256
      %v2397 = vmul.f32 %v2257, %v2257
      %v2398 = vmul.f32 %v2258, %v2258
      %v2399 = vadd.f32 %v2335, %v2337
      %v2400 = vadd.f32 %v2399, %v2339
      %v2401 = vadd.f32 %v2400, %v2341
      %v2402 = vadd.f32 %v2401, %v2343
      %v2403 = vadd.f32 %v2402, %v2345
      %v2404 = vadd.f32 %v2403, %v2347
      %v2405 = vadd.f32 %v2404, %v2349
      %v2406 = vadd.f32 %v2405, %v2351
      %v2407 = vadd.f32 %v2406, %v2353
      %v2408 = vadd.f32 %v2407, %v2355
      %v2409 = vadd.f32 %v2408, %v2357
      %v2410 = vadd.f32 %v2409, %v2359
      %v2411 = vadd.f32 %v2410, %v2361
      %v2412 = vadd.f32 %v2411, %v2363
      %v2413 = vadd.f32 %v2412, %v2365
      %v2414 = vadd.f32 %v2413, %v2367
      %v2415 = vadd.f32 %v2414, %v2369
      %v2416 = vadd.f32 %v2415, %v2371
      %v2417 = vadd.f32 %v2416, %v2373
      %v2418 = vadd.f32 %v2417, %v2375
      %v2419 = vadd.f32 %v2418, %v2377
      %v2420 = vadd.f32 %v2419, %v2379
      %v2421 = vadd.f32 %v2420, %v2381
      %v2422 = vadd.f32 %v2421, %v2383
      %v2423 = vadd.f32 %v2422, %v2385
      %v2424 = vadd.f32 %v2423, %v2387
      %v2425 = vadd.f32 %v2424, %v2389
      %v2426 = vadd.f32 %v2425, %v2391
      %v2427 = vadd.f32 %v2426, %v2393
      %v2428 = vadd.f32 %v2427, %v2395
      %v2429 = vadd.f32 %v2428, %v2397
      %v2430 = vrot.slane %v2429, 4
      %v2431 = vadd.f32 %v2429, %v2430
      %v2432 = vrot.slane %v2431, 2
      %v2433 = vadd.f32 %v2431, %v2432
      %v2434 = vrot.slane %v2433, 1
      %v2435 = vadd.f32 %v2433, %v2434
      %v2436 = vadd.f32 %v2336, %v2338
      %v2437 = vadd.f32 %v2436, %v2340
      %v2438 = vadd.f32 %v2437, %v2342
      %v2439 = vadd.f32 %v2438, %v2344
      %v2440 = vadd.f32 %v2439, %v2346
      %v2441 = vadd.f32 %v2440, %v2348
      %v2442 = vadd.f32 %v2441, %v2350
      %v2443 = vadd.f32 %v2442, %v2352
      %v2444 = vadd.f32 %v2443, %v2354
      %v2445 = vadd.f32 %v2444, %v2356
      %v2446 = vadd.f32 %v2445, %v2358
      %v2447 = vadd.f32 %v2446, %v2360
      %v2448 = vadd.f32 %v2447, %v2362
      %v2449 = vadd.f32 %v2448, %v2364
      %v2450 = vadd.f32 %v2449, %v2366
      %v2451 = vadd.f32 %v2450, %v2368
      %v2452 = vadd.f32 %v2451, %v2370
      %v2453 = vadd.f32 %v2452, %v2372
      %v2454 = vadd.f32 %v2453, %v2374
      %v2455 = vadd.f32 %v2454, %v2376
      %v2456 = vadd.f32 %v2455, %v2378
      %v2457 = vadd.f32 %v2456, %v2380
      %v2458 = vadd.f32 %v2457, %v2382
      %v2459 = vadd.f32 %v2458, %v2384
      %v2460 = vadd.f32 %v2459, %v2386
      %v2461 = vadd.f32 %v2460, %v2388
      %v2462 = vadd.f32 %v2461, %v2390
      %v2463 = vadd.f32 %v2462, %v2392
      %v2464 = vadd.f32 %v2463, %v2394
      %v2465 = vadd.f32 %v2464, %v2396
      %v2466 = vadd.f32 %v2465, %v2398
      %v2467 = vrot.slane %v2466, 4
      %v2468 = vadd.f32 %v2466, %v2467
      %v2469 = vrot.slane %v2468, 2
      %v2470 = vadd.f32 %v2468, %v2469
      %v2471 = vrot.slane %v2470, 1
      %v2472 = vadd.f32 %v2470, %v2471
      %v2473 = vadd.f32 %v2435, 0.0
      %v2474 = vadd.f32 %v2472, 0.0
      %2475 = vst [vmem:[#allocation3] sm:$0xff] %v2195
      %2476 = vst [vmem:[#allocation3 + $0x8] sm:$0xff] %v2196
      %2477 = vst [vmem:[#allocation3 + $0x10] sm:$0xff] %v2197
      %2478 = vst [vmem:[#allocation3 + $0x18] sm:$0xff] %v2198
      %2479 = vst [vmem:[#allocation3 + $0x40] sm:$0xff] %v2199
      %2480 = vst [vmem:[#allocation3 + $0x48] sm:$0xff] %v2200
      %2481 = vst [vmem:[#allocation3 + $0x50] sm:$0xff] %v2201
      %2482 = vst [vmem:[#allocation3 + $0x58] sm:$0xff] %v2202
      %2483 = vst [vmem:[#allocation3 + $0x80] sm:$0xff] %v2203
      %2484 = vst [vmem:[#allocation3 + $0x88] sm:$0xff] %v2204
      %2485 = vst [vmem:[#allocation3 + $0x90] sm:$0xff] %v2205
      %2486 = vst [vmem:[#allocation3 + $0x98] sm:$0xff] %v2206
      %2487 = vst [vmem:[#allocation3 + $0xc0] sm:$0xff] %v2207
      %2488 = vst [vmem:[#allocation3 + $0xc8] sm:$0xff] %v2208
      %2489 = vst [vmem:[#allocation3 + $0xd0] sm:$0xff] %v2209
      %2490 = vst [vmem:[#allocation3 + $0xd8] sm:$0xff] %v2210
      %2491 = vst [vmem:[#allocation3 + $0x100] sm:$0xff] %v2211
      %2492 = vst [vmem:[#allocation3 + $0x108] sm:$0xff] %v2212
      %2493 = vst [vmem:[#allocation3 + $0x110] sm:$0xff] %v2213
      %2494 = vst [vmem:[#allocation3 + $0x118] sm:$0xff] %v2214
      %2495 = vst [vmem:[#allocation3 + $0x140] sm:$0xff] %v2215
      %2496 = vst [vmem:[#allocation3 + $0x148] sm:$0xff] %v2216
      %2497 = vst [vmem:[#allocation3 + $0x150] sm:$0xff] %v2217
      %2498 = vst [vmem:[#allocation3 + $0x158] sm:$0xff] %v2218
      %2499 = vst [vmem:[#allocation3 + $0x180] sm:$0xff] %v2219
      %2500 = vst [vmem:[#allocation3 + $0x188] sm:$0xff] %v2220
      %2501 = vst [vmem:[#allocation3 + $0x190] sm:$0xff] %v2221
      %2502 = vst [vmem:[#allocation3 + $0x198] sm:$0xff] %v2222
      %2503 = vst [vmem:[#allocation3 + $0x1c0] sm:$0xff] %v2223
      %2504 = vst [vmem:[#allocation3 + $0x1c8] sm:$0xff] %v2224
      %2505 = vst [vmem:[#allocation3 + $0x1d0] sm:$0xff] %v2225
      %2506 = vst [vmem:[#allocation3 + $0x1d8] sm:$0xff] %v2226
      %2507 = vst [vmem:[#allocation3 + $0x200] sm:$0xff] %v2227
      %2508 = vst [vmem:[#allocation3 + $0x208] sm:$0xff] %v2228
      %2509 = vst [vmem:[#allocation3 + $0x210] sm:$0xff] %v2229
      %2510 = vst [vmem:[#allocation3 + $0x218] sm:$0xff] %v2230
      %2511 = vst [vmem:[#allocation3 + $0x240] sm:$0xff] %v2231
      %2512 = vst [vmem:[#allocation3 + $0x248] sm:$0xff] %v2232
      %2513 = vst [vmem:[#allocation3 + $0x250] sm:$0xff] %v2233
      %2514 = vst [vmem:[#allocation3 + $0x258] sm:$0xff] %v2234
      %2515 = vst [vmem:[#allocation3 + $0x280] sm:$0xff] %v2235
      %2516 = vst [vmem:[#allocation3 + $0x288] sm:$0xff] %v2236
      %2517 = vst [vmem:[#allocation3 + $0x290] sm:$0xff] %v2237
      %2518 = vst [vmem:[#allocation3 + $0x298] sm:$0xff] %v2238
      %2519 = vst [vmem:[#allocation3 + $0x2c0] sm:$0xff] %v2239
      %2520 = vst [vmem:[#allocation3 + $0x2c8] sm:$0xff] %v2240
      %2521 = vst [vmem:[#allocation3 + $0x2d0] sm:$0xff] %v2241
      %2522 = vst [vmem:[#allocation3 + $0x2d8] sm:$0xff] %v2242
      %2523 = vst [vmem:[#allocation3 + $0x300] sm:$0xff] %v2243
      %2524 = vst [vmem:[#allocation3 + $0x308] sm:$0xff] %v2244
      %2525 = vst [vmem:[#allocation3 + $0x310] sm:$0xff] %v2245
      %2526 = vst [vmem:[#allocation3 + $0x318] sm:$0xff] %v2246
      %2527 = vst [vmem:[#allocation3 + $0x340] sm:$0xff] %v2247
      %2528 = vst [vmem:[#allocation3 + $0x348] sm:$0xff] %v2248
      %2529 = vst [vmem:[#allocation3 + $0x350] sm:$0xff] %v2249
      %2530 = vst [vmem:[#allocation3 + $0x358] sm:$0xff] %v2250
      %2531 = vst [vmem:[#allocation3 + $0x380] sm:$0xff] %v2251
      %2532 = vst [vmem:[#allocation3 + $0x388] sm:$0xff] %v2252
      %2533 = vst [vmem:[#allocation3 + $0x390] sm:$0xff] %v2253
      %2534 = vst [vmem:[#allocation3 + $0x398] sm:$0xff] %v2254
      %2535 = vst [vmem:[#allocation3 + $0x3c0] sm:$0xff] %v2255
      %2536 = vst [vmem:[#allocation3 + $0x3c8] sm:$0xff] %v2256
      %2537 = vst [vmem:[#allocation3 + $0x3d0] sm:$0xff] %v2257
      %2538 = vst [vmem:[#allocation3 + $0x3d8] sm:$0xff] %v2258
      %s2539 = scalar_lea.vmem %s1, 128
      %v2540 = vld [vmem:[%s2539] sm:$0xff]
      %v2541 = vld [vmem:[%s2539 + $0x8] sm:$0xff]
      %v2542 = vld [vmem:[%s2539 + $0x10] sm:$0xff]
      %v2543 = vld [vmem:[%s2539 + $0x18] sm:$0xff]
      %v2544 = vld [vmem:[%s2539 + $0x20] sm:$0xff]
      %v2545 = vld [vmem:[%s2539 + $0x28] sm:$0xff]
      %v2546 = vld [vmem:[%s2539 + $0x30] sm:$0xff]
      %v2547 = vld [vmem:[%s2539 + $0x38] sm:$0xff]
      %v2548 = vld [vmem:[%s2539 + $0x40] sm:$0xff]
      %v2549 = vld [vmem:[%s2539 + $0x48] sm:$0xff]
      %v2550 = vld [vmem:[%s2539 + $0x50] sm:$0xff]
      %v2551 = vld [vmem:[%s2539 + $0x58] sm:$0xff]
      %v2552 = vld [vmem:[%s2539 + $0x60] sm:$0xff]
      %v2553 = vld [vmem:[%s2539 + $0x68] sm:$0xff]
      %v2554 = vld [vmem:[%s2539 + $0x70] sm:$0xff]
      %v2555 = vld [vmem:[%s2539 + $0x78] sm:$0xff]
      %v2572 = vunpack.c.l.b16 %v2540
      %v2573 = vunpack.c.h.b16 %v2540
      %v2574 = vunpack.c.l.b16 %v2541
      %v2575 = vunpack.c.h.b16 %v2541
      %v2576 = vunpack.c.l.b16 %v2542
      %v2577 = vunpack.c.h.b16 %v2542
      %v2578 = vunpack.c.l.b16 %v2543
      %v2579 = vunpack.c.h.b16 %v2543
      %v2580 = vunpack.c.l.b16 %v2544
      %v2581 = vunpack.c.h.b16 %v2544
      %v2582 = vunpack.c.l.b16 %v2545
      %v2583 = vunpack.c.h.b16 %v2545
      %v2584 = vunpack.c.l.b16 %v2546
      %v2585 = vunpack.c.h.b16 %v2546
      %v2586 = vunpack.c.l.b16 %v2547
      %v2587 = vunpack.c.h.b16 %v2547
      %v2588 = vunpack.c.l.b16 %v2548
      %v2589 = vunpack.c.h.b16 %v2548
      %v2590 = vunpack.c.l.b16 %v2549
      %v2591 = vunpack.c.h.b16 %v2549
      %v2592 = vunpack.c.l.b16 %v2550
      %v2593 = vunpack.c.h.b16 %v2550
      %v2594 = vunpack.c.l.b16 %v2551
      %v2595 = vunpack.c.h.b16 %v2551
      %v2596 = vunpack.c.l.b16 %v2552
      %v2597 = vunpack.c.h.b16 %v2552
      %v2598 = vunpack.c.l.b16 %v2553
      %v2599 = vunpack.c.h.b16 %v2553
      %v2600 = vunpack.c.l.b16 %v2554
      %v2601 = vunpack.c.h.b16 %v2554
      %v2602 = vunpack.c.l.b16 %v2555
      %v2603 = vunpack.c.h.b16 %v2555
      %v2604 = vpack.c.b16 %v2574, %v2572
      %v2605 = vpack.c.b16 %v2575, %v2573
      %v2606 = vpack.c.b16 %v2578, %v2576
      %v2607 = vpack.c.b16 %v2579, %v2577
      %v2608 = vpack.c.b16 %v2582, %v2580
      %v2609 = vpack.c.b16 %v2583, %v2581
      %v2610 = vpack.c.b16 %v2586, %v2584
      %v2611 = vpack.c.b16 %v2587, %v2585
      %v2612 = vpack.c.b16 %v2590, %v2588
      %v2613 = vpack.c.b16 %v2591, %v2589
      %v2614 = vpack.c.b16 %v2594, %v2592
      %v2615 = vpack.c.b16 %v2595, %v2593
      %v2616 = vpack.c.b16 %v2598, %v2596
      %v2617 = vpack.c.b16 %v2599, %v2597
      %v2618 = vpack.c.b16 %v2602, %v2600
      %v2619 = vpack.c.b16 %v2603, %v2601
      %2636 = vmatprep.subr.bf16.mxu0 %v2619
      %2637 = vmatpush1.bf16.msra.mxu0 %v2618
      %2638 = vmatprep.subr.bf16.mxu0 %v2617
      %2639 = vmatpush1.bf16.msra.mxu0 %v2616
      %2640 = vmatprep.subr.bf16.mxu0 %v2615
      %2641 = vmatpush1.bf16.msra.mxu0 %v2614
      %2642 = vmatprep.subr.bf16.mxu0 %v2613
      %2643 = vmatpush1.bf16.msra.mxu0 %v2612
      %2644 = vmatprep.subr.bf16.mxu0 %v2611
      %2645 = vmatpush1.bf16.msra.mxu0 %v2610
      %2646 = vmatprep.subr.bf16.mxu0 %v2609
      %2647 = vmatpush1.bf16.msra.mxu0 %v2608
      %2648 = vmatprep.subr.bf16.mxu0 %v2607
      %2649 = vmatpush1.bf16.msra.mxu0 %v2606
      %2650 = vmatprep.subr.bf16.mxu0 %v2605
      %2651 = vmatpush1.bf16.msra.mxu0 %v2604
      %2652 = vmatprep.subr.bf16.mxu0 0
      %2653 = vmatpush2.bf16.msra.mxu0 0
      %2654 = vmatprep.subr.bf16.mxu0 0
      %2655 = vmatpush2.bf16.msra.mxu0 0
      %2656 = vmatprep.subr.bf16.mxu0 0
      %2657 = vmatpush2.bf16.msra.mxu0 0
      %2658 = vmatprep.subr.bf16.mxu0 0
      %2659 = vmatpush2.bf16.msra.mxu0 0
      %2660 = vmatprep.subr.bf16.mxu0 0
      %2661 = vmatpush2.bf16.msra.mxu0 0
      %2662 = vmatprep.subr.bf16.mxu0 0
      %2663 = vmatpush2.bf16.msra.mxu0 0
      %2664 = vmatprep.subr.bf16.mxu0 0
      %2665 = vmatpush2.bf16.msra.mxu0 0
      %2666 = vmatprep.subr.bf16.mxu0 0
      %2667 = vmatpush2.bf16.msra.mxu0 0
      %2668 = vmatprep.mubr.bf16.mxu0 0
      %2669 = vmatmul.mubr.bf16.gmra.mxu0 %v1762
      %v2670 = vpop.f32.mrf.mxu0
      %v2671 = vadd.f32 %v1691, %v2670
      %v2672 = vpop.f32.mrf.mxu0
      %v2673 = vadd.f32 %v1695, %v2672
      %v2674 = vpop.f32.mrf.mxu0
      %v2675 = vadd.f32 %v1691, %v2674
      %v2676 = vpop.f32.mrf.mxu0
      %v2677 = vadd.f32 %v1695, %v2676
      %2678 = vmatprep.mubr.bf16.mxu0 0
      %2679 = vmatmul.mubr.bf16.gmra.mxu0 %v1763
      %v2680 = vpop.f32.mrf.mxu0
      %v2681 = vadd.f32 %v1691, %v2680
      %v2682 = vpop.f32.mrf.mxu0
      %v2683 = vadd.f32 %v1695, %v2682
      %v2684 = vpop.f32.mrf.mxu0
      %v2685 = vadd.f32 %v1691, %v2684
      %v2686 = vpop.f32.mrf.mxu0
      %v2687 = vadd.f32 %v1695, %v2686
      %2688 = vmatprep.mubr.bf16.mxu0 0
      %2689 = vmatmul.mubr.bf16.gmra.mxu0 %v1764
      %v2690 = vpop.f32.mrf.mxu0
      %v2691 = vadd.f32 %v1691, %v2690
      %v2692 = vpop.f32.mrf.mxu0
      %v2693 = vadd.f32 %v1695, %v2692
      %v2694 = vpop.f32.mrf.mxu0
      %v2695 = vadd.f32 %v1691, %v2694
      %v2696 = vpop.f32.mrf.mxu0
      %v2697 = vadd.f32 %v1695, %v2696
      %2698 = vmatprep.mubr.bf16.mxu0 0
      %2699 = vmatmul.mubr.bf16.gmra.mxu0 %v1765
      %v2700 = vpop.f32.mrf.mxu0
      %v2701 = vadd.f32 %v1691, %v2700
      %v2702 = vpop.f32.mrf.mxu0
      %v2703 = vadd.f32 %v1695, %v2702
      %v2704 = vpop.f32.mrf.mxu0
      %v2705 = vadd.f32 %v1691, %v2704
      %v2706 = vpop.f32.mrf.mxu0
      %v2707 = vadd.f32 %v1695, %v2706
      %2708 = vmatprep.mubr.bf16.mxu0 0
      %2709 = vmatmul.mubr.bf16.gmra.mxu0 %v1766
      %v2710 = vpop.f32.mrf.mxu0
      %v2711 = vadd.f32 %v1691, %v2710
      %v2712 = vpop.f32.mrf.mxu0
      %v2713 = vadd.f32 %v1695, %v2712
      %v2714 = vpop.f32.mrf.mxu0
      %v2715 = vadd.f32 %v1691, %v2714
      %v2716 = vpop.f32.mrf.mxu0
      %v2717 = vadd.f32 %v1695, %v2716
      %2718 = vmatprep.mubr.bf16.mxu0 0
      %2719 = vmatmul.mubr.bf16.gmra.mxu0 %v1767
      %v2720 = vpop.f32.mrf.mxu0
      %v2721 = vadd.f32 %v1691, %v2720
      %v2722 = vpop.f32.mrf.mxu0
      %v2723 = vadd.f32 %v1695, %v2722
      %v2724 = vpop.f32.mrf.mxu0
      %v2725 = vadd.f32 %v1691, %v2724
      %v2726 = vpop.f32.mrf.mxu0
      %v2727 = vadd.f32 %v1695, %v2726
      %2728 = vmatprep.mubr.bf16.mxu0 0
      %2729 = vmatmul.mubr.bf16.gmra.mxu0 %v1768
      %v2730 = vpop.f32.mrf.mxu0
      %v2731 = vadd.f32 %v1691, %v2730
      %v2732 = vpop.f32.mrf.mxu0
      %v2733 = vadd.f32 %v1695, %v2732
      %v2734 = vpop.f32.mrf.mxu0
      %v2735 = vadd.f32 %v1691, %v2734
      %v2736 = vpop.f32.mrf.mxu0
      %v2737 = vadd.f32 %v1695, %v2736
      %2738 = vmatprep.mubr.bf16.mxu0 0
      %2739 = vmatmul.mubr.bf16.gmra.mxu0 %v1769
      %v2740 = vpop.f32.mrf.mxu0
      %v2741 = vadd.f32 %v1691, %v2740
      %v2742 = vpop.f32.mrf.mxu0
      %v2743 = vadd.f32 %v1695, %v2742
      %v2744 = vpop.f32.mrf.mxu0
      %v2745 = vadd.f32 %v1691, %v2744
      %v2746 = vpop.f32.mrf.mxu0
      %v2747 = vadd.f32 %v1695, %v2746
      %2748 = vmatprep.mubr.bf16.mxu0 0
      %2749 = vmatmul.mubr.bf16.gmra.mxu0 %v1770
      %v2750 = vpop.f32.mrf.mxu0
      %v2751 = vadd.f32 %v1691, %v2750
      %v2752 = vpop.f32.mrf.mxu0
      %v2753 = vadd.f32 %v1695, %v2752
      %v2754 = vpop.f32.mrf.mxu0
      %v2755 = vadd.f32 %v1691, %v2754
      %v2756 = vpop.f32.mrf.mxu0
      %v2757 = vadd.f32 %v1695, %v2756
      %2758 = vmatprep.mubr.bf16.mxu0 0
      %2759 = vmatmul.mubr.bf16.gmra.mxu0 %v1771
      %v2760 = vpop.f32.mrf.mxu0
      %v2761 = vadd.f32 %v1691, %v2760
      %v2762 = vpop.f32.mrf.mxu0
      %v2763 = vadd.f32 %v1695, %v2762
      %v2764 = vpop.f32.mrf.mxu0
      %v2765 = vadd.f32 %v1691, %v2764
      %v2766 = vpop.f32.mrf.mxu0
      %v2767 = vadd.f32 %v1695, %v2766
      %2768 = vmatprep.mubr.bf16.mxu0 0
      %2769 = vmatmul.mubr.bf16.gmra.mxu0 %v1772
      %v2770 = vpop.f32.mrf.mxu0
      %v2771 = vadd.f32 %v1691, %v2770
      %v2772 = vpop.f32.mrf.mxu0
      %v2773 = vadd.f32 %v1695, %v2772
      %v2774 = vpop.f32.mrf.mxu0
      %v2775 = vadd.f32 %v1691, %v2774
      %v2776 = vpop.f32.mrf.mxu0
      %v2777 = vadd.f32 %v1695, %v2776
      %2778 = vmatprep.mubr.bf16.mxu0 0
      %2779 = vmatmul.mubr.bf16.gmra.mxu0 %v1773
      %v2780 = vpop.f32.mrf.mxu0
      %v2781 = vadd.f32 %v1691, %v2780
      %v2782 = vpop.f32.mrf.mxu0
      %v2783 = vadd.f32 %v1695, %v2782
      %v2784 = vpop.f32.mrf.mxu0
      %v2785 = vadd.f32 %v1691, %v2784
      %v2786 = vpop.f32.mrf.mxu0
      %v2787 = vadd.f32 %v1695, %v2786
      %2788 = vmatprep.mubr.bf16.mxu0 0
      %2789 = vmatmul.mubr.bf16.gmra.mxu0 %v1774
      %v2790 = vpop.f32.mrf.mxu0
      %v2791 = vadd.f32 %v1691, %v2790
      %v2792 = vpop.f32.mrf.mxu0
      %v2793 = vadd.f32 %v1695, %v2792
      %v2794 = vpop.f32.mrf.mxu0
      %v2795 = vadd.f32 %v1691, %v2794
      %v2796 = vpop.f32.mrf.mxu0
      %v2797 = vadd.f32 %v1695, %v2796
      %2798 = vmatprep.mubr.bf16.mxu0 0
      %2799 = vmatmul.mubr.bf16.gmra.mxu0 %v1775
      %v2800 = vpop.f32.mrf.mxu0
      %v2801 = vadd.f32 %v1691, %v2800
      %v2802 = vpop.f32.mrf.mxu0
      %v2803 = vadd.f32 %v1695, %v2802
      %v2804 = vpop.f32.mrf.mxu0
      %v2805 = vadd.f32 %v1691, %v2804
      %v2806 = vpop.f32.mrf.mxu0
      %v2807 = vadd.f32 %v1695, %v2806
      %2808 = vmatprep.mubr.bf16.mxu0 0
      %2809 = vmatmul.mubr.bf16.gmra.mxu0 %v1776
      %v2810 = vpop.f32.mrf.mxu0
      %v2811 = vadd.f32 %v1691, %v2810
      %v2812 = vpop.f32.mrf.mxu0
      %v2813 = vadd.f32 %v1695, %v2812
      %v2814 = vpop.f32.mrf.mxu0
      %v2815 = vadd.f32 %v1691, %v2814
      %v2816 = vpop.f32.mrf.mxu0
      %v2817 = vadd.f32 %v1695, %v2816
      %2818 = vmatprep.mubr.bf16.mxu0 0
      %2819 = vmatmul.mubr.bf16.gmra.mxu0 %v1777
      %v2820 = vpop.f32.mrf.mxu0
      %v2821 = vadd.f32 %v1691, %v2820
      %v2822 = vpop.f32.mrf.mxu0
      %v2823 = vadd.f32 %v1695, %v2822
      %v2824 = vpop.f32.mrf.mxu0
      %v2825 = vadd.f32 %v1691, %v2824
      %v2826 = vpop.f32.mrf.mxu0
      %v2827 = vadd.f32 %v1695, %v2826
      %2828 = vdwg.mxu0
      %vm2829 = vcmp.ge.f32.partialorder %v2671, 0.0
      %vm2830 = vcmp.ge.f32.partialorder %v2673, 0.0
      %vm2831 = vcmp.ge.f32.partialorder %v2675, 0.0
      %vm2832 = vcmp.ge.f32.partialorder %v2677, 0.0
      %vm2833 = vcmp.ge.f32.partialorder %v2681, 0.0
      %vm2834 = vcmp.ge.f32.partialorder %v2683, 0.0
      %vm2835 = vcmp.ge.f32.partialorder %v2685, 0.0
      %vm2836 = vcmp.ge.f32.partialorder %v2687, 0.0
      %vm2837 = vcmp.ge.f32.partialorder %v2691, 0.0
      %vm2838 = vcmp.ge.f32.partialorder %v2693, 0.0
      %vm2839 = vcmp.ge.f32.partialorder %v2695, 0.0
      %vm2840 = vcmp.ge.f32.partialorder %v2697, 0.0
      %vm2841 = vcmp.ge.f32.partialorder %v2701, 0.0
      %vm2842 = vcmp.ge.f32.partialorder %v2703, 0.0
      %vm2843 = vcmp.ge.f32.partialorder %v2705, 0.0
      %vm2844 = vcmp.ge.f32.partialorder %v2707, 0.0
      %vm2845 = vcmp.ge.f32.partialorder %v2711, 0.0
      %vm2846 = vcmp.ge.f32.partialorder %v2713, 0.0
      %vm2847 = vcmp.ge.f32.partialorder %v2715, 0.0
      %vm2848 = vcmp.ge.f32.partialorder %v2717, 0.0
      %vm2849 = vcmp.ge.f32.partialorder %v2721, 0.0
      %vm2850 = vcmp.ge.f32.partialorder %v2723, 0.0
      %vm2851 = vcmp.ge.f32.partialorder %v2725, 0.0
      %vm2852 = vcmp.ge.f32.partialorder %v2727, 0.0
      %vm2853 = vcmp.ge.f32.partialorder %v2731, 0.0
      %vm2854 = vcmp.ge.f32.partialorder %v2733, 0.0
      %vm2855 = vcmp.ge.f32.partialorder %v2735, 0.0
      %vm2856 = vcmp.ge.f32.partialorder %v2737, 0.0
      %vm2857 = vcmp.ge.f32.partialorder %v2741, 0.0
      %vm2858 = vcmp.ge.f32.partialorder %v2743, 0.0
      %vm2859 = vcmp.ge.f32.partialorder %v2745, 0.0
      %vm2860 = vcmp.ge.f32.partialorder %v2747, 0.0
      %vm2861 = vcmp.ge.f32.partialorder %v2751, 0.0
      %vm2862 = vcmp.ge.f32.partialorder %v2753, 0.0
      %vm2863 = vcmp.ge.f32.partialorder %v2755, 0.0
      %vm2864 = vcmp.ge.f32.partialorder %v2757, 0.0
      %vm2865 = vcmp.ge.f32.partialorder %v2761, 0.0
      %vm2866 = vcmp.ge.f32.partialorder %v2763, 0.0
      %vm2867 = vcmp.ge.f32.partialorder %v2765, 0.0
      %vm2868 = vcmp.ge.f32.partialorder %v2767, 0.0
      %vm2869 = vcmp.ge.f32.partialorder %v2771, 0.0
      %vm2870 = vcmp.ge.f32.partialorder %v2773, 0.0
      %vm2871 = vcmp.ge.f32.partialorder %v2775, 0.0
      %vm2872 = vcmp.ge.f32.partialorder %v2777, 0.0
      %vm2873 = vcmp.ge.f32.partialorder %v2781, 0.0
      %vm2874 = vcmp.ge.f32.partialorder %v2783, 0.0
      %vm2875 = vcmp.ge.f32.partialorder %v2785, 0.0
      %vm2876 = vcmp.ge.f32.partialorder %v2787, 0.0
      %vm2877 = vcmp.ge.f32.partialorder %v2791, 0.0
      %vm2878 = vcmp.ge.f32.partialorder %v2793, 0.0
      %vm2879 = vcmp.ge.f32.partialorder %v2795, 0.0
      %vm2880 = vcmp.ge.f32.partialorder %v2797, 0.0
      %vm2881 = vcmp.ge.f32.partialorder %v2801, 0.0
      %vm2882 = vcmp.ge.f32.partialorder %v2803, 0.0
      %vm2883 = vcmp.ge.f32.partialorder %v2805, 0.0
      %vm2884 = vcmp.ge.f32.partialorder %v2807, 0.0
      %vm2885 = vcmp.ge.f32.partialorder %v2811, 0.0
      %vm2886 = vcmp.ge.f32.partialorder %v2813, 0.0
      %vm2887 = vcmp.ge.f32.partialorder %v2815, 0.0
      %vm2888 = vcmp.ge.f32.partialorder %v2817, 0.0
      %vm2889 = vcmp.ge.f32.partialorder %v2821, 0.0
      %vm2890 = vcmp.ge.f32.partialorder %v2823, 0.0
      %vm2891 = vcmp.ge.f32.partialorder %v2825, 0.0
      %vm2892 = vcmp.ge.f32.partialorder %v2827, 0.0
      %v2893 = vmul.f32 %v2671, 0.2
      %v2894 = vmul.f32 %v2673, 0.2
      %v2895 = vmul.f32 %v2675, 0.2
      %v2896 = vmul.f32 %v2677, 0.2
      %v2897 = vmul.f32 %v2681, 0.2
      %v2898 = vmul.f32 %v2683, 0.2
      %v2899 = vmul.f32 %v2685, 0.2
      %v2900 = vmul.f32 %v2687, 0.2
      %v2901 = vmul.f32 %v2691, 0.2
      %v2902 = vmul.f32 %v2693, 0.2
      %v2903 = vmul.f32 %v2695, 0.2
      %v2904 = vmul.f32 %v2697, 0.2
      %v2905 = vmul.f32 %v2701, 0.2
      %v2906 = vmul.f32 %v2703, 0.2
      %v2907 = vmul.f32 %v2705, 0.2
      %v2908 = vmul.f32 %v2707, 0.2
      %v2909 = vmul.f32 %v2711, 0.2
      %v2910 = vmul.f32 %v2713, 0.2
      %v2911 = vmul.f32 %v2715, 0.2
      %v2912 = vmul.f32 %v2717, 0.2
      %v2913 = vmul.f32 %v2721, 0.2
      %v2914 = vmul.f32 %v2723, 0.2
      %v2915 = vmul.f32 %v2725, 0.2
      %v2916 = vmul.f32 %v2727, 0.2
      %v2917 = vmul.f32 %v2731, 0.2
      %v2918 = vmul.f32 %v2733, 0.2
      %v2919 = vmul.f32 %v2735, 0.2
      %v2920 = vmul.f32 %v2737, 0.2
      %v2921 = vmul.f32 %v2741, 0.2
      %v2922 = vmul.f32 %v2743, 0.2
      %v2923 = vmul.f32 %v2745, 0.2
      %v2924 = vmul.f32 %v2747, 0.2
      %v2925 = vmul.f32 %v2751, 0.2
      %v2926 = vmul.f32 %v2753, 0.2
      %v2927 = vmul.f32 %v2755, 0.2
      %v2928 = vmul.f32 %v2757, 0.2
      %v2929 = vmul.f32 %v2761, 0.2
      %v2930 = vmul.f32 %v2763, 0.2
      %v2931 = vmul.f32 %v2765, 0.2
      %v2932 = vmul.f32 %v2767, 0.2
      %v2933 = vmul.f32 %v2771, 0.2
      %v2934 = vmul.f32 %v2773, 0.2
      %v2935 = vmul.f32 %v2775, 0.2
      %v2936 = vmul.f32 %v2777, 0.2
      %v2937 = vmul.f32 %v2781, 0.2
      %v2938 = vmul.f32 %v2783, 0.2
      %v2939 = vmul.f32 %v2785, 0.2
      %v2940 = vmul.f32 %v2787, 0.2
      %v2941 = vmul.f32 %v2791, 0.2
      %v2942 = vmul.f32 %v2793, 0.2
      %v2943 = vmul.f32 %v2795, 0.2
      %v2944 = vmul.f32 %v2797, 0.2
      %v2945 = vmul.f32 %v2801, 0.2
      %v2946 = vmul.f32 %v2803, 0.2
      %v2947 = vmul.f32 %v2805, 0.2
      %v2948 = vmul.f32 %v2807, 0.2
      %v2949 = vmul.f32 %v2811, 0.2
      %v2950 = vmul.f32 %v2813, 0.2
      %v2951 = vmul.f32 %v2815, 0.2
      %v2952 = vmul.f32 %v2817, 0.2
      %v2953 = vmul.f32 %v2821, 0.2
      %v2954 = vmul.f32 %v2823, 0.2
      %v2955 = vmul.f32 %v2825, 0.2
      %v2956 = vmul.f32 %v2827, 0.2
      %v2957 = vsel %vm2829, %v2671, %v2893
      %v2958 = vsel %vm2830, %v2673, %v2894
      %v2959 = vsel %vm2831, %v2675, %v2895
      %v2960 = vsel %vm2832, %v2677, %v2896
      %v2961 = vsel %vm2833, %v2681, %v2897
      %v2962 = vsel %vm2834, %v2683, %v2898
      %v2963 = vsel %vm2835, %v2685, %v2899
      %v2964 = vsel %vm2836, %v2687, %v2900
      %v2965 = vsel %vm2837, %v2691, %v2901
      %v2966 = vsel %vm2838, %v2693, %v2902
      %v2967 = vsel %vm2839, %v2695, %v2903
      %v2968 = vsel %vm2840, %v2697, %v2904
      %v2969 = vsel %vm2841, %v2701, %v2905
      %v2970 = vsel %vm2842, %v2703, %v2906
      %v2971 = vsel %vm2843, %v2705, %v2907
      %v2972 = vsel %vm2844, %v2707, %v2908
      %v2973 = vsel %vm2845, %v2711, %v2909
      %v2974 = vsel %vm2846, %v2713, %v2910
      %v2975 = vsel %vm2847, %v2715, %v2911
      %v2976 = vsel %vm2848, %v2717, %v2912
      %v2977 = vsel %vm2849, %v2721, %v2913
      %v2978 = vsel %vm2850, %v2723, %v2914
      %v2979 = vsel %vm2851, %v2725, %v2915
      %v2980 = vsel %vm2852, %v2727, %v2916
      %v2981 = vsel %vm2853, %v2731, %v2917
      %v2982 = vsel %vm2854, %v2733, %v2918
      %v2983 = vsel %vm2855, %v2735, %v2919
      %v2984 = vsel %vm2856, %v2737, %v2920
      %v2985 = vsel %vm2857, %v2741, %v2921
      %v2986 = vsel %vm2858, %v2743, %v2922
      %v2987 = vsel %vm2859, %v2745, %v2923
      %v2988 = vsel %vm2860, %v2747, %v2924
      %v2989 = vsel %vm2861, %v2751, %v2925
      %v2990 = vsel %vm2862, %v2753, %v2926
      %v2991 = vsel %vm2863, %v2755, %v2927
      %v2992 = vsel %vm2864, %v2757, %v2928
      %v2993 = vsel %vm2865, %v2761, %v2929
      %v2994 = vsel %vm2866, %v2763, %v2930
      %v2995 = vsel %vm2867, %v2765, %v2931
      %v2996 = vsel %vm2868, %v2767, %v2932
      %v2997 = vsel %vm2869, %v2771, %v2933
      %v2998 = vsel %vm2870, %v2773, %v2934
      %v2999 = vsel %vm2871, %v2775, %v2935
      %v3000 = vsel %vm2872, %v2777, %v2936
      %v3001 = vsel %vm2873, %v2781, %v2937
      %v3002 = vsel %vm2874, %v2783, %v2938
      %v3003 = vsel %vm2875, %v2785, %v2939
      %v3004 = vsel %vm2876, %v2787, %v2940
      %v3005 = vsel %vm2877, %v2791, %v2941
      %v3006 = vsel %vm2878, %v2793, %v2942
      %v3007 = vsel %vm2879, %v2795, %v2943
      %v3008 = vsel %vm2880, %v2797, %v2944
      %v3009 = vsel %vm2881, %v2801, %v2945
      %v3010 = vsel %vm2882, %v2803, %v2946
      %v3011 = vsel %vm2883, %v2805, %v2947
      %v3012 = vsel %vm2884, %v2807, %v2948
      %v3013 = vsel %vm2885, %v2811, %v2949
      %v3014 = vsel %vm2886, %v2813, %v2950
      %v3015 = vsel %vm2887, %v2815, %v2951
      %v3016 = vsel %vm2888, %v2817, %v2952
      %v3017 = vsel %vm2889, %v2821, %v2953
      %v3018 = vsel %vm2890, %v2823, %v2954
      %v3019 = vsel %vm2891, %v2825, %v2955
      %v3020 = vsel %vm2892, %v2827, %v2956
      %v3021 = vadd.f32 %v2957, %v2959
      %v3022 = vadd.f32 %v3021, %v2961
      %v3023 = vadd.f32 %v3022, %v2963
      %v3024 = vadd.f32 %v3023, %v2965
      %v3025 = vadd.f32 %v3024, %v2967
      %v3026 = vadd.f32 %v3025, %v2969
      %v3027 = vadd.f32 %v3026, %v2971
      %v3028 = vadd.f32 %v3027, %v2973
      %v3029 = vadd.f32 %v3028, %v2975
      %v3030 = vadd.f32 %v3029, %v2977
      %v3031 = vadd.f32 %v3030, %v2979
      %v3032 = vadd.f32 %v3031, %v2981
      %v3033 = vadd.f32 %v3032, %v2983
      %v3034 = vadd.f32 %v3033, %v2985
      %v3035 = vadd.f32 %v3034, %v2987
      %v3036 = vadd.f32 %v3035, %v2989
      %v3037 = vadd.f32 %v3036, %v2991
      %v3038 = vadd.f32 %v3037, %v2993
      %v3039 = vadd.f32 %v3038, %v2995
      %v3040 = vadd.f32 %v3039, %v2997
      %v3041 = vadd.f32 %v3040, %v2999
      %v3042 = vadd.f32 %v3041, %v3001
      %v3043 = vadd.f32 %v3042, %v3003
      %v3044 = vadd.f32 %v3043, %v3005
      %v3045 = vadd.f32 %v3044, %v3007
      %v3046 = vadd.f32 %v3045, %v3009
      %v3047 = vadd.f32 %v3046, %v3011
      %v3048 = vadd.f32 %v3047, %v3013
      %v3049 = vadd.f32 %v3048, %v3015
      %v3050 = vadd.f32 %v3049, %v3017
      %v3051 = vadd.f32 %v3050, %v3019
      %v3052 = vrot.slane %v3051, 4
      %v3053 = vadd.f32 %v3051, %v3052
      %v3054 = vrot.slane %v3053, 2
      %v3055 = vadd.f32 %v3053, %v3054
      %v3056 = vrot.slane %v3055, 1
      %v3057 = vadd.f32 %v3055, %v3056
      %v3058 = vadd.f32 %v2958, %v2960
      %v3059 = vadd.f32 %v3058, %v2962
      %v3060 = vadd.f32 %v3059, %v2964
      %v3061 = vadd.f32 %v3060, %v2966
      %v3062 = vadd.f32 %v3061, %v2968
      %v3063 = vadd.f32 %v3062, %v2970
      %v3064 = vadd.f32 %v3063, %v2972
      %v3065 = vadd.f32 %v3064, %v2974
      %v3066 = vadd.f32 %v3065, %v2976
      %v3067 = vadd.f32 %v3066, %v2978
      %v3068 = vadd.f32 %v3067, %v2980
      %v3069 = vadd.f32 %v3068, %v2982
      %v3070 = vadd.f32 %v3069, %v2984
      %v3071 = vadd.f32 %v3070, %v2986
      %v3072 = vadd.f32 %v3071, %v2988
      %v3073 = vadd.f32 %v3072, %v2990
      %v3074 = vadd.f32 %v3073, %v2992
      %v3075 = vadd.f32 %v3074, %v2994
      %v3076 = vadd.f32 %v3075, %v2996
      %v3077 = vadd.f32 %v3076, %v2998
      %v3078 = vadd.f32 %v3077, %v3000
      %v3079 = vadd.f32 %v3078, %v3002
      %v3080 = vadd.f32 %v3079, %v3004
      %v3081 = vadd.f32 %v3080, %v3006
      %v3082 = vadd.f32 %v3081, %v3008
      %v3083 = vadd.f32 %v3082, %v3010
      %v3084 = vadd.f32 %v3083, %v3012
      %v3085 = vadd.f32 %v3084, %v3014
      %v3086 = vadd.f32 %v3085, %v3016
      %v3087 = vadd.f32 %v3086, %v3018
      %v3088 = vadd.f32 %v3087, %v3020
      %v3089 = vrot.slane %v3088, 4
      %v3090 = vadd.f32 %v3088, %v3089
      %v3091 = vrot.slane %v3090, 2
      %v3092 = vadd.f32 %v3090, %v3091
      %v3093 = vrot.slane %v3092, 1
      %v3094 = vadd.f32 %v3092, %v3093
      %v3095 = vadd.f32 %v2333, %v3057
      %v3096 = vadd.f32 %v2334, %v3094
      %v3097 = vmul.f32 %v2957, %v2957
      %v3098 = vmul.f32 %v2958, %v2958
      %v3099 = vmul.f32 %v2959, %v2959
      %v3100 = vmul.f32 %v2960, %v2960
      %v3101 = vmul.f32 %v2961, %v2961
      %v3102 = vmul.f32 %v2962, %v2962
      %v3103 = vmul.f32 %v2963, %v2963
      %v3104 = vmul.f32 %v2964, %v2964
      %v3105 = vmul.f32 %v2965, %v2965
      %v3106 = vmul.f32 %v2966, %v2966
      %v3107 = vmul.f32 %v2967, %v2967
      %v3108 = vmul.f32 %v2968, %v2968
      %v3109 = vmul.f32 %v2969, %v2969
      %v3110 = vmul.f32 %v2970, %v2970
      %v3111 = vmul.f32 %v2971, %v2971
      %v3112 = vmul.f32 %v2972, %v2972
      %v3113 = vmul.f32 %v2973, %v2973
      %v3114 = vmul.f32 %v2974, %v2974
      %v3115 = vmul.f32 %v2975, %v2975
      %v3116 = vmul.f32 %v2976, %v2976
      %v3117 = vmul.f32 %v2977, %v2977
      %v3118 = vmul.f32 %v2978, %v2978
      %v3119 = vmul.f32 %v2979, %v2979
      %v3120 = vmul.f32 %v2980, %v2980
      %v3121 = vmul.f32 %v2981, %v2981
      %v3122 = vmul.f32 %v2982, %v2982
      %v3123 = vmul.f32 %v2983, %v2983
      %v3124 = vmul.f32 %v2984, %v2984
      %v3125 = vmul.f32 %v2985, %v2985
      %v3126 = vmul.f32 %v2986, %v2986
      %v3127 = vmul.f32 %v2987, %v2987
      %v3128 = vmul.f32 %v2988, %v2988
      %v3129 = vmul.f32 %v2989, %v2989
      %v3130 = vmul.f32 %v2990, %v2990
      %v3131 = vmul.f32 %v2991, %v2991
      %v3132 = vmul.f32 %v2992, %v2992
      %v3133 = vmul.f32 %v2993, %v2993
      %v3134 = vmul.f32 %v2994, %v2994
      %v3135 = vmul.f32 %v2995, %v2995
      %v3136 = vmul.f32 %v2996, %v2996
      %v3137 = vmul.f32 %v2997, %v2997
      %v3138 = vmul.f32 %v2998, %v2998
      %v3139 = vmul.f32 %v2999, %v2999
      %v3140 = vmul.f32 %v3000, %v3000
      %v3141 = vmul.f32 %v3001, %v3001
      %v3142 = vmul.f32 %v3002, %v3002
      %v3143 = vmul.f32 %v3003, %v3003
      %v3144 = vmul.f32 %v3004, %v3004
      %v3145 = vmul.f32 %v3005, %v3005
      %v3146 = vmul.f32 %v3006, %v3006
      %v3147 = vmul.f32 %v3007, %v3007
      %v3148 = vmul.f32 %v3008, %v3008
      %v3149 = vmul.f32 %v3009, %v3009
      %v3150 = vmul.f32 %v3010, %v3010
      %v3151 = vmul.f32 %v3011, %v3011
      %v3152 = vmul.f32 %v3012, %v3012
      %v3153 = vmul.f32 %v3013, %v3013
      %v3154 = vmul.f32 %v3014, %v3014
      %v3155 = vmul.f32 %v3015, %v3015
      %v3156 = vmul.f32 %v3016, %v3016
      %v3157 = vmul.f32 %v3017, %v3017
      %v3158 = vmul.f32 %v3018, %v3018
      %v3159 = vmul.f32 %v3019, %v3019
      %v3160 = vmul.f32 %v3020, %v3020
      %v3161 = vadd.f32 %v3097, %v3099
      %v3162 = vadd.f32 %v3161, %v3101
      %v3163 = vadd.f32 %v3162, %v3103
      %v3164 = vadd.f32 %v3163, %v3105
      %v3165 = vadd.f32 %v3164, %v3107
      %v3166 = vadd.f32 %v3165, %v3109
      %v3167 = vadd.f32 %v3166, %v3111
      %v3168 = vadd.f32 %v3167, %v3113
      %v3169 = vadd.f32 %v3168, %v3115
      %v3170 = vadd.f32 %v3169, %v3117
      %v3171 = vadd.f32 %v3170, %v3119
      %v3172 = vadd.f32 %v3171, %v3121
      %v3173 = vadd.f32 %v3172, %v3123
      %v3174 = vadd.f32 %v3173, %v3125
      %v3175 = vadd.f32 %v3174, %v3127
      %v3176 = vadd.f32 %v3175, %v3129
      %v3177 = vadd.f32 %v3176, %v3131
      %v3178 = vadd.f32 %v3177, %v3133
      %v3179 = vadd.f32 %v3178, %v3135
      %v3180 = vadd.f32 %v3179, %v3137
      %v3181 = vadd.f32 %v3180, %v3139
      %v3182 = vadd.f32 %v3181, %v3141
      %v3183 = vadd.f32 %v3182, %v3143
      %v3184 = vadd.f32 %v3183, %v3145
      %v3185 = vadd.f32 %v3184, %v3147
      %v3186 = vadd.f32 %v3185, %v3149
      %v3187 = vadd.f32 %v3186, %v3151
      %v3188 = vadd.f32 %v3187, %v3153
      %v3189 = vadd.f32 %v3188, %v3155
      %v3190 = vadd.f32 %v3189, %v3157
      %v3191 = vadd.f32 %v3190, %v3159
      %v3192 = vrot.slane %v3191, 4
      %v3193 = vadd.f32 %v3191, %v3192
      %v3194 = vrot.slane %v3193, 2
      %v3195 = vadd.f32 %v3193, %v3194
      %v3196 = vrot.slane %v3195, 1
      %v3197 = vadd.f32 %v3195, %v3196
      %v3198 = vadd.f32 %v3098, %v3100
      %v3199 = vadd.f32 %v3198, %v3102
      %v3200 = vadd.f32 %v3199, %v3104
      %v3201 = vadd.f32 %v3200, %v3106
      %v3202 = vadd.f32 %v3201, %v3108
      %v3203 = vadd.f32 %v3202, %v3110
      %v3204 = vadd.f32 %v3203, %v3112
      %v3205 = vadd.f32 %v3204, %v3114
      %v3206 = vadd.f32 %v3205, %v3116
      %v3207 = vadd.f32 %v3206, %v3118
      %v3208 = vadd.f32 %v3207, %v3120
      %v3209 = vadd.f32 %v3208, %v3122
      %v3210 = vadd.f32 %v3209, %v3124
      %v3211 = vadd.f32 %v3210, %v3126
      %v3212 = vadd.f32 %v3211, %v3128
      %v3213 = vadd.f32 %v3212, %v3130
      %v3214 = vadd.f32 %v3213, %v3132
      %v3215 = vadd.f32 %v3214, %v3134
      %v3216 = vadd.f32 %v3215, %v3136
      %v3217 = vadd.f32 %v3216, %v3138
      %v3218 = vadd.f32 %v3217, %v3140
      %v3219 = vadd.f32 %v3218, %v3142
      %v3220 = vadd.f32 %v3219, %v3144
      %v3221 = vadd.f32 %v3220, %v3146
      %v3222 = vadd.f32 %v3221, %v3148
      %v3223 = vadd.f32 %v3222, %v3150
      %v3224 = vadd.f32 %v3223, %v3152
      %v3225 = vadd.f32 %v3224, %v3154
      %v3226 = vadd.f32 %v3225, %v3156
      %v3227 = vadd.f32 %v3226, %v3158
      %v3228 = vadd.f32 %v3227, %v3160
      %v3229 = vrot.slane %v3228, 4
      %v3230 = vadd.f32 %v3228, %v3229
      %v3231 = vrot.slane %v3230, 2
      %v3232 = vadd.f32 %v3230, %v3231
      %v3233 = vrot.slane %v3232, 1
      %v3234 = vadd.f32 %v3232, %v3233
      %v3235 = vadd.f32 %v2473, %v3197
      %v3236 = vadd.f32 %v2474, %v3234
      %s3237 = scalar_lea.vmem [#allocation3], 32
      %3238 = vst [vmem:[%s3237] sm:$0xff] %v2957
      %3239 = vst [vmem:[%s3237 + $0x8] sm:$0xff] %v2958
      %3240 = vst [vmem:[%s3237 + $0x10] sm:$0xff] %v2959
      %3241 = vst [vmem:[%s3237 + $0x18] sm:$0xff] %v2960
      %3242 = vst [vmem:[%s3237 + $0x40] sm:$0xff] %v2961
      %3243 = vst [vmem:[%s3237 + $0x48] sm:$0xff] %v2962
      %3244 = vst [vmem:[%s3237 + $0x50] sm:$0xff] %v2963
      %3245 = vst [vmem:[%s3237 + $0x58] sm:$0xff] %v2964
      %3246 = vst [vmem:[%s3237 + $0x80] sm:$0xff] %v2965
      %3247 = vst [vmem:[%s3237 + $0x88] sm:$0xff] %v2966
      %3248 = vst [vmem:[%s3237 + $0x90] sm:$0xff] %v2967
      %3249 = vst [vmem:[%s3237 + $0x98] sm:$0xff] %v2968
      %3250 = vst [vmem:[%s3237 + $0xc0] sm:$0xff] %v2969
      %3251 = vst [vmem:[%s3237 + $0xc8] sm:$0xff] %v2970
      %3252 = vst [vmem:[%s3237 + $0xd0] sm:$0xff] %v2971
      %3253 = vst [vmem:[%s3237 + $0xd8] sm:$0xff] %v2972
      %3254 = vst [vmem:[%s3237 + $0x100] sm:$0xff] %v2973
      %3255 = vst [vmem:[%s3237 + $0x108] sm:$0xff] %v2974
      %3256 = vst [vmem:[%s3237 + $0x110] sm:$0xff] %v2975
      %3257 = vst [vmem:[%s3237 + $0x118] sm:$0xff] %v2976
      %3258 = vst [vmem:[%s3237 + $0x140] sm:$0xff] %v2977
      %3259 = vst [vmem:[%s3237 + $0x148] sm:$0xff] %v2978
      %3260 = vst [vmem:[%s3237 + $0x150] sm:$0xff] %v2979
      %3261 = vst [vmem:[%s3237 + $0x158] sm:$0xff] %v2980
      %3262 = vst [vmem:[%s3237 + $0x180] sm:$0xff] %v2981
      %3263 = vst [vmem:[%s3237 + $0x188] sm:$0xff] %v2982
      %3264 = vst [vmem:[%s3237 + $0x190] sm:$0xff] %v2983
      %3265 = vst [vmem:[%s3237 + $0x198] sm:$0xff] %v2984
      %3266 = vst [vmem:[%s3237 + $0x1c0] sm:$0xff] %v2985
      %3267 = vst [vmem:[%s3237 + $0x1c8] sm:$0xff] %v2986
      %3268 = vst [vmem:[%s3237 + $0x1d0] sm:$0xff] %v2987
      %3269 = vst [vmem:[%s3237 + $0x1d8] sm:$0xff] %v2988
      %3270 = vst [vmem:[%s3237 + $0x200] sm:$0xff] %v2989
      %3271 = vst [vmem:[%s3237 + $0x208] sm:$0xff] %v2990
      %3272 = vst [vmem:[%s3237 + $0x210] sm:$0xff] %v2991
      %3273 = vst [vmem:[%s3237 + $0x218] sm:$0xff] %v2992
      %3274 = vst [vmem:[%s3237 + $0x240] sm:$0xff] %v2993
      %3275 = vst [vmem:[%s3237 + $0x248] sm:$0xff] %v2994
      %3276 = vst [vmem:[%s3237 + $0x250] sm:$0xff] %v2995
      %3277 = vst [vmem:[%s3237 + $0x258] sm:$0xff] %v2996
      %3278 = vst [vmem:[%s3237 + $0x280] sm:$0xff] %v2997
      %3279 = vst [vmem:[%s3237 + $0x288] sm:$0xff] %v2998
      %3280 = vst [vmem:[%s3237 + $0x290] sm:$0xff] %v2999
      %3281 = vst [vmem:[%s3237 + $0x298] sm:$0xff] %v3000
      %3282 = vst [vmem:[%s3237 + $0x2c0] sm:$0xff] %v3001
      %3283 = vst [vmem:[%s3237 + $0x2c8] sm:$0xff] %v3002
      %3284 = vst [vmem:[%s3237 + $0x2d0] sm:$0xff] %v3003
      %3285 = vst [vmem:[%s3237 + $0x2d8] sm:$0xff] %v3004
      %3286 = vst [vmem:[%s3237 + $0x300] sm:$0xff] %v3005
      %3287 = vst [vmem:[%s3237 + $0x308] sm:$0xff] %v3006
      %3288 = vst [vmem:[%s3237 + $0x310] sm:$0xff] %v3007
      %3289 = vst [vmem:[%s3237 + $0x318] sm:$0xff] %v3008
      %3290 = vst [vmem:[%s3237 + $0x340] sm:$0xff] %v3009
      %3291 = vst [vmem:[%s3237 + $0x348] sm:$0xff] %v3010
      %3292 = vst [vmem:[%s3237 + $0x350] sm:$0xff] %v3011
      %3293 = vst [vmem:[%s3237 + $0x358] sm:$0xff] %v3012
      %3294 = vst [vmem:[%s3237 + $0x380] sm:$0xff] %v3013
      %3295 = vst [vmem:[%s3237 + $0x388] sm:$0xff] %v3014
      %3296 = vst [vmem:[%s3237 + $0x390] sm:$0xff] %v3015
      %3297 = vst [vmem:[%s3237 + $0x398] sm:$0xff] %v3016
      %3298 = vst [vmem:[%s3237 + $0x3c0] sm:$0xff] %v3017
      %3299 = vst [vmem:[%s3237 + $0x3c8] sm:$0xff] %v3018
      %3300 = vst [vmem:[%s3237 + $0x3d0] sm:$0xff] %v3019
      %3301 = vst [vmem:[%s3237 + $0x3d8] sm:$0xff] %v3020
      %v3302 = vld [vmem:[#allocation3] sm:$0xff]
      %v3303 = vld [vmem:[#allocation3 + $0x8] sm:$0xff]
      %v3304 = vld [vmem:[#allocation3 + $0x10] sm:$0xff]
      %v3305 = vld [vmem:[#allocation3 + $0x18] sm:$0xff]
      %v3306 = vld [vmem:[#allocation3 + $0x20] sm:$0xff]
      %v3307 = vld [vmem:[#allocation3 + $0x28] sm:$0xff]
      %v3308 = vld [vmem:[#allocation3 + $0x30] sm:$0xff]
      %v3309 = vld [vmem:[#allocation3 + $0x38] sm:$0xff]
      %v3310 = vld [vmem:[#allocation3 + $0x40] sm:$0xff]
      %v3311 = vld [vmem:[#allocation3 + $0x48] sm:$0xff]
      %v3312 = vld [vmem:[#allocation3 + $0x50] sm:$0xff]
      %v3313 = vld [vmem:[#allocation3 + $0x58] sm:$0xff]
      %v3314 = vld [vmem:[#allocation3 + $0x60] sm:$0xff]
      %v3315 = vld [vmem:[#allocation3 + $0x68] sm:$0xff]
      %v3316 = vld [vmem:[#allocation3 + $0x70] sm:$0xff]
      %v3317 = vld [vmem:[#allocation3 + $0x78] sm:$0xff]
      %v3318 = vld [vmem:[#allocation3 + $0x80] sm:$0xff]
      %v3319 = vld [vmem:[#allocation3 + $0x88] sm:$0xff]
      %v3320 = vld [vmem:[#allocation3 + $0x90] sm:$0xff]
      %v3321 = vld [vmem:[#allocation3 + $0x98] sm:$0xff]
      %v3322 = vld [vmem:[#allocation3 + $0xa0] sm:$0xff]
      %v3323 = vld [vmem:[#allocation3 + $0xa8] sm:$0xff]
      %v3324 = vld [vmem:[#allocation3 + $0xb0] sm:$0xff]
      %v3325 = vld [vmem:[#allocation3 + $0xb8] sm:$0xff]
      %v3326 = vld [vmem:[#allocation3 + $0xc0] sm:$0xff]
      %v3327 = vld [vmem:[#allocation3 + $0xc8] sm:$0xff]
      %v3328 = vld [vmem:[#allocation3 + $0xd0] sm:$0xff]
      %v3329 = vld [vmem:[#allocation3 + $0xd8] sm:$0xff]
      %v3330 = vld [vmem:[#allocation3 + $0xe0] sm:$0xff]
      %v3331 = vld [vmem:[#allocation3 + $0xe8] sm:$0xff]
      %v3332 = vld [vmem:[#allocation3 + $0xf0] sm:$0xff]
      %v3333 = vld [vmem:[#allocation3 + $0xf8] sm:$0xff]
      %v3334 = vld [vmem:[#allocation3 + $0x100] sm:$0xff]
      %v3335 = vld [vmem:[#allocation3 + $0x108] sm:$0xff]
      %v3336 = vld [vmem:[#allocation3 + $0x110] sm:$0xff]
      %v3337 = vld [vmem:[#allocation3 + $0x118] sm:$0xff]
      %v3338 = vld [vmem:[#allocation3 + $0x120] sm:$0xff]
      %v3339 = vld [vmem:[#allocation3 + $0x128] sm:$0xff]
      %v3340 = vld [vmem:[#allocation3 + $0x130] sm:$0xff]
      %v3341 = vld [vmem:[#allocation3 + $0x138] sm:$0xff]
      %v3342 = vld [vmem:[#allocation3 + $0x140] sm:$0xff]
      %v3343 = vld [vmem:[#allocation3 + $0x148] sm:$0xff]
      %v3344 = vld [vmem:[#allocation3 + $0x150] sm:$0xff]
      %v3345 = vld [vmem:[#allocation3 + $0x158] sm:$0xff]
      %v3346 = vld [vmem:[#allocation3 + $0x160] sm:$0xff]
      %v3347 = vld [vmem:[#allocation3 + $0x168] sm:$0xff]
      %v3348 = vld [vmem:[#allocation3 + $0x170] sm:$0xff]
      %v3349 = vld [vmem:[#allocation3 + $0x178] sm:$0xff]
      %v3350 = vld [vmem:[#allocation3 + $0x180] sm:$0xff]
      %v3351 = vld [vmem:[#allocation3 + $0x188] sm:$0xff]
      %v3352 = vld [vmem:[#allocation3 + $0x190] sm:$0xff]
      %v3353 = vld [vmem:[#allocation3 + $0x198] sm:$0xff]
      %v3354 = vld [vmem:[#allocation3 + $0x1a0] sm:$0xff]
      %v3355 = vld [vmem:[#allocation3 + $0x1a8] sm:$0xff]
      %v3356 = vld [vmem:[#allocation3 + $0x1b0] sm:$0xff]
      %v3357 = vld [vmem:[#allocation3 + $0x1b8] sm:$0xff]
      %v3358 = vld [vmem:[#allocation3 + $0x1c0] sm:$0xff]
      %v3359 = vld [vmem:[#allocation3 + $0x1c8] sm:$0xff]
      %v3360 = vld [vmem:[#allocation3 + $0x1d0] sm:$0xff]
      %v3361 = vld [vmem:[#allocation3 + $0x1d8] sm:$0xff]
      %v3362 = vld [vmem:[#allocation3 + $0x1e0] sm:$0xff]
      %v3363 = vld [vmem:[#allocation3 + $0x1e8] sm:$0xff]
      %v3364 = vld [vmem:[#allocation3 + $0x1f0] sm:$0xff]
      %v3365 = vld [vmem:[#allocation3 + $0x1f8] sm:$0xff]
      %v3366 = vld [vmem:[#allocation3 + $0x200] sm:$0xff]
      %v3367 = vld [vmem:[#allocation3 + $0x208] sm:$0xff]
      %v3368 = vld [vmem:[#allocation3 + $0x210] sm:$0xff]
      %v3369 = vld [vmem:[#allocation3 + $0x218] sm:$0xff]
      %v3370 = vld [vmem:[#allocation3 + $0x220] sm:$0xff]
      %v3371 = vld [vmem:[#allocation3 + $0x228] sm:$0xff]
      %v3372 = vld [vmem:[#allocation3 + $0x230] sm:$0xff]
      %v3373 = vld [vmem:[#allocation3 + $0x238] sm:$0xff]
      %v3374 = vld [vmem:[#allocation3 + $0x240] sm:$0xff]
      %v3375 = vld [vmem:[#allocation3 + $0x248] sm:$0xff]
      %v3376 = vld [vmem:[#allocation3 + $0x250] sm:$0xff]
      %v3377 = vld [vmem:[#allocation3 + $0x258] sm:$0xff]
      %v3378 = vld [vmem:[#allocation3 + $0x260] sm:$0xff]
      %v3379 = vld [vmem:[#allocation3 + $0x268] sm:$0xff]
      %v3380 = vld [vmem:[#allocation3 + $0x270] sm:$0xff]
      %v3381 = vld [vmem:[#allocation3 + $0x278] sm:$0xff]
      %v3382 = vld [vmem:[#allocation3 + $0x280] sm:$0xff]
      %v3383 = vld [vmem:[#allocation3 + $0x288] sm:$0xff]
      %v3384 = vld [vmem:[#allocation3 + $0x290] sm:$0xff]
      %v3385 = vld [vmem:[#allocation3 + $0x298] sm:$0xff]
      %v3386 = vld [vmem:[#allocation3 + $0x2a0] sm:$0xff]
      %v3387 = vld [vmem:[#allocation3 + $0x2a8] sm:$0xff]
      %v3388 = vld [vmem:[#allocation3 + $0x2b0] sm:$0xff]
      %v3389 = vld [vmem:[#allocation3 + $0x2b8] sm:$0xff]
      %v3390 = vld [vmem:[#allocation3 + $0x2c0] sm:$0xff]
      %v3391 = vld [vmem:[#allocation3 + $0x2c8] sm:$0xff]
      %v3392 = vld [vmem:[#allocation3 + $0x2d0] sm:$0xff]
      %v3393 = vld [vmem:[#allocation3 + $0x2d8] sm:$0xff]
      %v3394 = vld [vmem:[#allocation3 + $0x2e0] sm:$0xff]
      %v3395 = vld [vmem:[#allocation3 + $0x2e8] sm:$0xff]
      %v3396 = vld [vmem:[#allocation3 + $0x2f0] sm:$0xff]
      %v3397 = vld [vmem:[#allocation3 + $0x2f8] sm:$0xff]
      %v3398 = vld [vmem:[#allocation3 + $0x300] sm:$0xff]
      %v3399 = vld [vmem:[#allocation3 + $0x308] sm:$0xff]
      %v3400 = vld [vmem:[#allocation3 + $0x310] sm:$0xff]
      %v3401 = vld [vmem:[#allocation3 + $0x318] sm:$0xff]
      %v3402 = vld [vmem:[#allocation3 + $0x320] sm:$0xff]
      %v3403 = vld [vmem:[#allocation3 + $0x328] sm:$0xff]
      %v3404 = vld [vmem:[#allocation3 + $0x330] sm:$0xff]
      %v3405 = vld [vmem:[#allocation3 + $0x338] sm:$0xff]
      %v3406 = vld [vmem:[#allocation3 + $0x340] sm:$0xff]
      %v3407 = vld [vmem:[#allocation3 + $0x348] sm:$0xff]
      %v3408 = vld [vmem:[#allocation3 + $0x350] sm:$0xff]
      %v3409 = vld [vmem:[#allocation3 + $0x358] sm:$0xff]
      %v3410 = vld [vmem:[#allocation3 + $0x360] sm:$0xff]
      %v3411 = vld [vmem:[#allocation3 + $0x368] sm:$0xff]
      %v3412 = vld [vmem:[#allocation3 + $0x370] sm:$0xff]
      %v3413 = vld [vmem:[#allocation3 + $0x378] sm:$0xff]
      %v3414 = vld [vmem:[#allocation3 + $0x380] sm:$0xff]
      %v3415 = vld [vmem:[#allocation3 + $0x388] sm:$0xff]
      %v3416 = vld [vmem:[#allocation3 + $0x390] sm:$0xff]
      %v3417 = vld [vmem:[#allocation3 + $0x398] sm:$0xff]
      %v3418 = vld [vmem:[#allocation3 + $0x3a0] sm:$0xff]
      %v3419 = vld [vmem:[#allocation3 + $0x3a8] sm:$0xff]
      %v3420 = vld [vmem:[#allocation3 + $0x3b0] sm:$0xff]
      %v3421 = vld [vmem:[#allocation3 + $0x3b8] sm:$0xff]
      %v3422 = vld [vmem:[#allocation3 + $0x3c0] sm:$0xff]
      %v3423 = vld [vmem:[#allocation3 + $0x3c8] sm:$0xff]
      %v3424 = vld [vmem:[#allocation3 + $0x3d0] sm:$0xff]
      %v3425 = vld [vmem:[#allocation3 + $0x3d8] sm:$0xff]
      %v3426 = vld [vmem:[#allocation3 + $0x3e0] sm:$0xff]
      %v3427 = vld [vmem:[#allocation3 + $0x3e8] sm:$0xff]
      %v3428 = vld [vmem:[#allocation3 + $0x3f0] sm:$0xff]
      %v3429 = vld [vmem:[#allocation3 + $0x3f8] sm:$0xff]
      %3430 = vst [vmem:[%s235] sm:$0xff] %v3302
      %3431 = vst [vmem:[%s235 + $0x8] sm:$0xff] %v3303
      %3432 = vst [vmem:[%s235 + $0x10] sm:$0xff] %v3304
      %3433 = vst [vmem:[%s235 + $0x18] sm:$0xff] %v3305
      %3434 = vst [vmem:[%s235 + $0x20] sm:$0xff] %v3306
      %3435 = vst [vmem:[%s235 + $0x28] sm:$0xff] %v3307
      %3436 = vst [vmem:[%s235 + $0x30] sm:$0xff] %v3308
      %3437 = vst [vmem:[%s235 + $0x38] sm:$0xff] %v3309
      %3438 = vst [vmem:[%s235 + $0x40] sm:$0xff] %v3310
      %3439 = vst [vmem:[%s235 + $0x48] sm:$0xff] %v3311
      %3440 = vst [vmem:[%s235 + $0x50] sm:$0xff] %v3312
      %3441 = vst [vmem:[%s235 + $0x58] sm:$0xff] %v3313
      %3442 = vst [vmem:[%s235 + $0x60] sm:$0xff] %v3314
      %3443 = vst [vmem:[%s235 + $0x68] sm:$0xff] %v3315
      %3444 = vst [vmem:[%s235 + $0x70] sm:$0xff] %v3316
      %3445 = vst [vmem:[%s235 + $0x78] sm:$0xff] %v3317
      %3446 = vst [vmem:[%s235 + $0x80] sm:$0xff] %v3318
      %3447 = vst [vmem:[%s235 + $0x88] sm:$0xff] %v3319
      %3448 = vst [vmem:[%s235 + $0x90] sm:$0xff] %v3320
      %3449 = vst [vmem:[%s235 + $0x98] sm:$0xff] %v3321
      %3450 = vst [vmem:[%s235 + $0xa0] sm:$0xff] %v3322
      %3451 = vst [vmem:[%s235 + $0xa8] sm:$0xff] %v3323
      %3452 = vst [vmem:[%s235 + $0xb0] sm:$0xff] %v3324
      %3453 = vst [vmem:[%s235 + $0xb8] sm:$0xff] %v3325
      %3454 = vst [vmem:[%s235 + $0xc0] sm:$0xff] %v3326
      %3455 = vst [vmem:[%s235 + $0xc8] sm:$0xff] %v3327
      %3456 = vst [vmem:[%s235 + $0xd0] sm:$0xff] %v3328
      %3457 = vst [vmem:[%s235 + $0xd8] sm:$0xff] %v3329
      %3458 = vst [vmem:[%s235 + $0xe0] sm:$0xff] %v3330
      %3459 = vst [vmem:[%s235 + $0xe8] sm:$0xff] %v3331
      %3460 = vst [vmem:[%s235 + $0xf0] sm:$0xff] %v3332
      %3461 = vst [vmem:[%s235 + $0xf8] sm:$0xff] %v3333
      %3462 = vst [vmem:[%s235 + $0x100] sm:$0xff] %v3334
      %3463 = vst [vmem:[%s235 + $0x108] sm:$0xff] %v3335
      %3464 = vst [vmem:[%s235 + $0x110] sm:$0xff] %v3336
      %3465 = vst [vmem:[%s235 + $0x118] sm:$0xff] %v3337
      %3466 = vst [vmem:[%s235 + $0x120] sm:$0xff] %v3338
      %3467 = vst [vmem:[%s235 + $0x128] sm:$0xff] %v3339
      %3468 = vst [vmem:[%s235 + $0x130] sm:$0xff] %v3340
      %3469 = vst [vmem:[%s235 + $0x138] sm:$0xff] %v3341
      %3470 = vst [vmem:[%s235 + $0x140] sm:$0xff] %v3342
      %3471 = vst [vmem:[%s235 + $0x148] sm:$0xff] %v3343
      %3472 = vst [vmem:[%s235 + $0x150] sm:$0xff] %v3344
      %3473 = vst [vmem:[%s235 + $0x158] sm:$0xff] %v3345
      %3474 = vst [vmem:[%s235 + $0x160] sm:$0xff] %v3346
      %3475 = vst [vmem:[%s235 + $0x168] sm:$0xff] %v3347
      %3476 = vst [vmem:[%s235 + $0x170] sm:$0xff] %v3348
      %3477 = vst [vmem:[%s235 + $0x178] sm:$0xff] %v3349
      %3478 = vst [vmem:[%s235 + $0x180] sm:$0xff] %v3350
      %3479 = vst [vmem:[%s235 + $0x188] sm:$0xff] %v3351
      %3480 = vst [vmem:[%s235 + $0x190] sm:$0xff] %v3352
      %3481 = vst [vmem:[%s235 + $0x198] sm:$0xff] %v3353
      %3482 = vst [vmem:[%s235 + $0x1a0] sm:$0xff] %v3354
      %3483 = vst [vmem:[%s235 + $0x1a8] sm:$0xff] %v3355
      %3484 = vst [vmem:[%s235 + $0x1b0] sm:$0xff] %v3356
      %3485 = vst [vmem:[%s235 + $0x1b8] sm:$0xff] %v3357
      %3486 = vst [vmem:[%s235 + $0x1c0] sm:$0xff] %v3358
      %3487 = vst [vmem:[%s235 + $0x1c8] sm:$0xff] %v3359
      %3488 = vst [vmem:[%s235 + $0x1d0] sm:$0xff] %v3360
      %3489 = vst [vmem:[%s235 + $0x1d8] sm:$0xff] %v3361
      %3490 = vst [vmem:[%s235 + $0x1e0] sm:$0xff] %v3362
      %3491 = vst [vmem:[%s235 + $0x1e8] sm:$0xff] %v3363
      %3492 = vst [vmem:[%s235 + $0x1f0] sm:$0xff] %v3364
      %3493 = vst [vmem:[%s235 + $0x1f8] sm:$0xff] %v3365
      %3494 = vst [vmem:[%s235 + $0x200] sm:$0xff] %v3366
      %3495 = vst [vmem:[%s235 + $0x208] sm:$0xff] %v3367
      %3496 = vst [vmem:[%s235 + $0x210] sm:$0xff] %v3368
      %3497 = vst [vmem:[%s235 + $0x218] sm:$0xff] %v3369
      %3498 = vst [vmem:[%s235 + $0x220] sm:$0xff] %v3370
      %3499 = vst [vmem:[%s235 + $0x228] sm:$0xff] %v3371
      %3500 = vst [vmem:[%s235 + $0x230] sm:$0xff] %v3372
      %3501 = vst [vmem:[%s235 + $0x238] sm:$0xff] %v3373
      %3502 = vst [vmem:[%s235 + $0x240] sm:$0xff] %v3374
      %3503 = vst [vmem:[%s235 + $0x248] sm:$0xff] %v3375
      %3504 = vst [vmem:[%s235 + $0x250] sm:$0xff] %v3376
      %3505 = vst [vmem:[%s235 + $0x258] sm:$0xff] %v3377
      %3506 = vst [vmem:[%s235 + $0x260] sm:$0xff] %v3378
      %3507 = vst [vmem:[%s235 + $0x268] sm:$0xff] %v3379
      %3508 = vst [vmem:[%s235 + $0x270] sm:$0xff] %v3380
      %3509 = vst [vmem:[%s235 + $0x278] sm:$0xff] %v3381
      %3510 = vst [vmem:[%s235 + $0x280] sm:$0xff] %v3382
      %3511 = vst [vmem:[%s235 + $0x288] sm:$0xff] %v3383
      %3512 = vst [vmem:[%s235 + $0x290] sm:$0xff] %v3384
      %3513 = vst [vmem:[%s235 + $0x298] sm:$0xff] %v3385
      %3514 = vst [vmem:[%s235 + $0x2a0] sm:$0xff] %v3386
      %3515 = vst [vmem:[%s235 + $0x2a8] sm:$0xff] %v3387
      %3516 = vst [vmem:[%s235 + $0x2b0] sm:$0xff] %v3388
      %3517 = vst [vmem:[%s235 + $0x2b8] sm:$0xff] %v3389
      %3518 = vst [vmem:[%s235 + $0x2c0] sm:$0xff] %v3390
      %3519 = vst [vmem:[%s235 + $0x2c8] sm:$0xff] %v3391
      %3520 = vst [vmem:[%s235 + $0x2d0] sm:$0xff] %v3392
      %3521 = vst [vmem:[%s235 + $0x2d8] sm:$0xff] %v3393
      %3522 = vst [vmem:[%s235 + $0x2e0] sm:$0xff] %v3394
      %3523 = vst [vmem:[%s235 + $0x2e8] sm:$0xff] %v3395
      %3524 = vst [vmem:[%s235 + $0x2f0] sm:$0xff] %v3396
      %3525 = vst [vmem:[%s235 + $0x2f8] sm:$0xff] %v3397
      %3526 = vst [vmem:[%s235 + $0x300] sm:$0xff] %v3398
      %3527 = vst [vmem:[%s235 + $0x308] sm:$0xff] %v3399
      %3528 = vst [vmem:[%s235 + $0x310] sm:$0xff] %v3400
      %3529 = vst [vmem:[%s235 + $0x318] sm:$0xff] %v3401
      %3530 = vst [vmem:[%s235 + $0x320] sm:$0xff] %v3402
      %3531 = vst [vmem:[%s235 + $0x328] sm:$0xff] %v3403
      %3532 = vst [vmem:[%s235 + $0x330] sm:$0xff] %v3404
      %3533 = vst [vmem:[%s235 + $0x338] sm:$0xff] %v3405
      %3534 = vst [vmem:[%s235 + $0x340] sm:$0xff] %v3406
      %3535 = vst [vmem:[%s235 + $0x348] sm:$0xff] %v3407
      %3536 = vst [vmem:[%s235 + $0x350] sm:$0xff] %v3408
      %3537 = vst [vmem:[%s235 + $0x358] sm:$0xff] %v3409
      %3538 = vst [vmem:[%s235 + $0x360] sm:$0xff] %v3410
      %3539 = vst [vmem:[%s235 + $0x368] sm:$0xff] %v3411
      %3540 = vst [vmem:[%s235 + $0x370] sm:$0xff] %v3412
      %3541 = vst [vmem:[%s235 + $0x378] sm:$0xff] %v3413
      %3542 = vst [vmem:[%s235 + $0x380] sm:$0xff] %v3414
      %3543 = vst [vmem:[%s235 + $0x388] sm:$0xff] %v3415
      %3544 = vst [vmem:[%s235 + $0x390] sm:$0xff] %v3416
      %3545 = vst [vmem:[%s235 + $0x398] sm:$0xff] %v3417
      %3546 = vst [vmem:[%s235 + $0x3a0] sm:$0xff] %v3418
      %3547 = vst [vmem:[%s235 + $0x3a8] sm:$0xff] %v3419
      %3548 = vst [vmem:[%s235 + $0x3b0] sm:$0xff] %v3420
      %3549 = vst [vmem:[%s235 + $0x3b8] sm:$0xff] %v3421
      %3550 = vst [vmem:[%s235 + $0x3c0] sm:$0xff] %v3422
      %3551 = vst [vmem:[%s235 + $0x3c8] sm:$0xff] %v3423
      %3552 = vst [vmem:[%s235 + $0x3d0] sm:$0xff] %v3424
      %3553 = vst [vmem:[%s235 + $0x3d8] sm:$0xff] %v3425
      %3554 = vst [vmem:[%s235 + $0x3e0] sm:$0xff] %v3426
      %3555 = vst [vmem:[%s235 + $0x3e8] sm:$0xff] %v3427
      %3556 = vst [vmem:[%s235 + $0x3f0] sm:$0xff] %v3428
      %3557 = vst [vmem:[%s235 + $0x3f8] sm:$0xff] %v3429
      %vm3558 = vcmask 1040384
      %v3559 = vsel %vm3558, %v3095, %v3235
      %v3560 = vsel %vm3558, %v3096, %v3236
      %v3563 = vcombine.low %v3559, %v3560
      %v3565 = vunpack.c.l.s4 1983009808
      %v3566 = vunpack.c.0.s8 %v3565
      %v3567 = vlaneseq
      %v3568 = vshrl.u32 %v3567, 7
      %v3569 = vsub.s32 %v3566, %v3568
      %v3570 = vrot.slane %v3563, %v3569
      %3572 = vst [vmem:[%s245] sm:$0xf] %v3570
      %s3573 = smul.u32 32, %s21
      %p3574 = scmp.lt.s32.totalorder %s20, 1
      %s3575 = scalar_select %p3574, %s20, 1
      %p3576 = scmp.lt.s32.totalorder %s3573, 31
      %s3577 = scalar_select %p3576, %s3573, 31
      %s3578 = smul.addr %s3577, 4
      %s3579 = smul.addr %s3575, 128
      %s3580 = sadd.s32 %s3578, %s3579
      %s3581 = smul.addr %s3580, 8
      %s3582 = scalar_lea.vmem %s3, %s3581
      %p3583 = scmp.lt.s32.totalorder %s20, 1
      %s3584 = scalar_select %p3583, %s20, 1
      %p3585 = scmp.lt.s32.totalorder %s21, 0
      %s3586 = scalar_select %p3585, %s21, 0
      %s3587 = smul.addr %s3586, 2
      %s3588 = smul.addr %s3584, 2
      %s3589 = sadd.s32 %s3587, %s3588
      %s3590 = smul.addr %s3589, 2
      %s3591 = scalar_lea.vmem %s4, %s3590
      // Predicated region
      $region33: #{conv_transpose_block_forward.2} parent=31 // pred_check
        %p3592 = pneg %p116
      $region34: #{conv_transpose_block_forward.2} parent=31 // pred_check_branch
        %3594 = sbr.rel (%p3592) target = $region36
      $region35: #{conv_transpose_block_forward.2} parent=31 // pred_region
        %s3595 = smul.u32 32, %s21
      $region36: #{conv_transpose_block_forward.2} parent=31 // pred_fallthru
        _
      // Predicated region
      $region37: #{conv_transpose_block_forward.2} parent=31 // pred_check
        %p3596 = pneg %p144
      $region38: #{conv_transpose_block_forward.2} parent=31 // pred_check_branch
        %3598 = sbr.rel (%p3596) target = $region40
      $region39: #{conv_transpose_block_forward.2} parent=31 // pred_region
        _
      $region40: #{conv_transpose_block_forward.2} parent=31 // pred_fallthru
        _
    $region32: #{conv_transpose_block_forward.2} parent=5 // pred_fallthru
      _
    %p3599 = scmp.le.s32.totalorder 2, %s11
    // Predicated region
    $region41: #{conv_transpose_block_forward.2} parent=5 // pred_check
      %p3600 = pneg %p3599
    $region42: #{conv_transpose_block_forward.2} parent=5 // pred_check_branch
      %3602 = sbr.rel (%p3600) target = $region44
    $region43: #{conv_transpose_block_forward.2} parent=5 // pred_region
      %s3603 = ssub.s32 %s11, 2
      // Predicated region
      $region45: #{conv_transpose_block_forward.2} parent=43 // pred_check
        %p3604 = pneg %p122
      $region46: #{conv_transpose_block_forward.2} parent=43 // pred_check_branch
        %3606 = sbr.rel (%p3604) target = $region48
      $region47: #{conv_transpose_block_forward.2} parent=43 // pred_region
        %s3607 = smul.u32 32, %s23
        %p3608 = scmp.lt.s32.totalorder %s22, 1
        %s3609 = scalar_select %p3608, %s22, 1
        %p3610 = scmp.lt.s32.totalorder %s3607, 31
        %s3611 = scalar_select %p3610, %s3607, 31
        %s3612 = smul.addr %s3611, 4
        %s3613 = smul.addr %s3609, 128
        %s3614 = sadd.s32 %s3612, %s3613
        %s3615 = smul.addr %s3614, 8
        %s3616 = scalar_lea.vmem %s3, %s3615
      $region48: #{conv_transpose_block_forward.2} parent=43 // pred_fallthru
        _
      // Predicated region
      $region49: #{conv_transpose_block_forward.2} parent=43 // pred_check
        %p3617 = pneg %p150
      $region50: #{conv_transpose_block_forward.2} parent=43 // pred_check_branch
        %3619 = sbr.rel (%p3617) target = $region52
      $region51: #{conv_transpose_block_forward.2} parent=43 // pred_region
        %p3620 = scmp.lt.s32.totalorder %s22, 1
        %s3621 = scalar_select %p3620, %s22, 1
        %p3622 = scmp.lt.s32.totalorder %s23, 0
        %s3623 = scalar_select %p3622, %s23, 0
        %s3624 = smul.addr %s3623, 2
        %s3625 = smul.addr %s3621, 2
        %s3626 = sadd.s32 %s3624, %s3625
        %s3627 = smul.addr %s3626, 2
        %s3628 = scalar_lea.vmem %s4, %s3627
      $region52: #{conv_transpose_block_forward.2} parent=43 // pred_fallthru
        _
    $region44: #{conv_transpose_block_forward.2} parent=5 // pred_fallthru
      _
  $region6: #{conv_transpose_block_forward.2} parent=0 // loop_footer
    %s15 = sadd.s32 1, %s11
  $region7: #{conv_transpose_block_forward.2} parent=0 // loop_footer_branch
    %10 = sbr.rel target = $region3
  $region8: #{conv_transpose_block_forward.2} parent=0 // loop_exit
    _

</llo_original>
